<compile_context>
chip_gen: v7x
topology: tpu7x:2x2x1
jax: 0.10.0
libtpu: 0.0.40
codegen_flags: <defaults>
</compile_context>

<pallas_src>
import functools

import numpy as np

import jax
import jax.numpy as jnp
from jax.experimental import pallas as pl
from jax.experimental.pallas import tpu as pltpu

CONV_KERNEL_SIZE = 3
CONV_STRIDE = 2
CONV_PADDING = 1


def compute_output_size(size, k, s, p):
    return (size + 2 * p - k) // s + 1


def compute_flattened_size(c, h, w):
    return c * h * w


# --------------------------------------------------------------------------
# One-hot "im2col" gather matrices (shape-only constants, built once).
# G[t, ho*Wo+wo, h*W+w] = 1 iff (h, w) == (s*ho + kh - p, s*wo + kw - p) is in
# bounds, with t = kh*k + kw.  Out-of-bounds taps give an all-zero row, i.e.
# zero padding comes for free.
# --------------------------------------------------------------------------
def _build_gather_matrices(H, W, Ho, Wo, k=CONV_KERNEL_SIZE,
                           s=CONV_STRIDE, p=CONV_PADDING):
    out_h = np.arange(Ho * Wo) // Wo
    out_w = np.arange(Ho * Wo) % Wo
    mats = np.zeros((k * k, Ho * Wo, H * W), np.float32)
    for kh in range(k):
        for kw in range(k):
            t = kh * k + kw
            src_h = s * out_h + kh - p
            src_w = s * out_w + kw - p
            valid = (src_h >= 0) & (src_h < H) & (src_w >= 0) & (src_w < W)
            src_idx = np.clip(src_h, 0, H - 1) * W + np.clip(src_w, 0, W - 1)
            rows = np.nonzero(valid)[0]
            mats[t, rows, src_idx[rows]] = 1.0
    return mats


# --------------------------- fused encoder kernel ---------------------------
def _encoder_kernel(x_ref, *refs, num_conv_layers):
    out_ref = refs[-1]
    wl_ref = refs[-3]        # (Hf*Wf, Cf, latent)  pre-permuted Linear weight (bf16)
    bl_ref = refs[-2]        # (1, latent)          Linear bias (f32)

    a = x_ref[0]             # (H*W, C_in) bf16 activation of the current layer

    for l in range(num_conv_layers):
        g_ref = refs[3 * l]         # (9, Ho*Wo, H*W)  one-hot gather (bf16)
        w_ref = refs[3 * l + 1]     # (9, C_in, C_out) conv weights per tap (bf16)
        b_ref = refs[3 * l + 2]     # (1, C_out)       bias (f32)
        c_in, c_out = w_ref.shape[1], w_ref.shape[2]
        howo = g_ref.shape[1]

        acc = jnp.zeros((howo, c_out), jnp.float32)
        for t in range(g_ref.shape[0]):                 # 9 taps, fully unrolled
            g_t = g_ref[t]
            w_t = w_ref[t]
            if c_in == 1:
                # Apply the (1, C_out) weight as a broadcast multiply first,
                # then gather: avoids K=1 matmuls and 1-lane intermediates.
                bt = (a.astype(jnp.float32) * w_t.astype(jnp.float32))
                acc = acc + jnp.dot(g_t, bt.astype(jnp.bfloat16),
                                    preferred_element_type=jnp.float32)
            else:
                # Gather first (exact: G_t is one-hot, so the tap is a pure
                # permutation of bf16 values), then a bf16 GEMM on the MXU.
                tap = jnp.dot(g_t, a, preferred_element_type=jnp.float32)
                acc = acc + jnp.dot(tap.astype(jnp.bfloat16), w_t,
                                    preferred_element_type=jnp.float32)
        acc = acc + b_ref[...].astype(jnp.float32)      # bias in f32
        a = jnp.maximum(acc, 0.0).astype(jnp.bfloat16)  # ReLU -> next activation

    # Final Linear.  wl_ref is permuted so contracting a[hw, c] over (hw, c)
    # reproduces PyTorch's (C, H, W) flatten followed by `x @ W.T`.
    latent = wl_ref.shape[2]
    y = jnp.zeros((1, latent), jnp.float32)
    for r in range(wl_ref.shape[0]):                    # Hf*Wf rows, unrolled
        y = y + jnp.dot(a[r:r + 1, :], wl_ref[r],
                        preferred_element_type=jnp.float32)
    y = y + bl_ref[...].astype(jnp.float32)
    out_ref[0] = y.astype(out_ref.dtype)


# ------------------------------ host wrapper ---------------------------------
def encoder_forward(prepared, x_nchw):
    N, C, H, W = x_nchw.shape
    # NCHW -> (N, H*W, C): channels on lanes, spatial on sublanes.
    x = jnp.transpose(x_nchw, (0, 2, 3, 1)).reshape(N, H * W, C).astype(jnp.bfloat16)

    conv_ops = prepared["convs"]
    wl, bl = prepared["linear"]
    latent = wl.shape[2]

    operands = [x]
    in_specs = [pl.BlockSpec((1, H * W, C), lambda n: (n, 0, 0))]
    for (G, Wt, b) in conv_ops:
        operands.extend([G, Wt, b])
        in_specs.extend([
            pl.BlockSpec(G.shape, lambda n: (0, 0, 0)),
            pl.BlockSpec(Wt.shape, lambda n: (0, 0, 0)),
            pl.BlockSpec(b.shape, lambda n: (0, 0)),
        ])
    operands.extend([wl, bl])
    in_specs.extend([
        pl.BlockSpec(wl.shape, lambda n: (0, 0, 0)),
        pl.BlockSpec(bl.shape, lambda n: (0, 0)),
    ])

    # Advisory cost estimate so XLA schedules the custom call sensibly.
    flops = 0
    for (G, Wt, _) in conv_ops:
        taps, howo, hw_in = G.shape
        _, c_in, c_out = Wt.shape
        if c_in == 1:
            flops += taps * (hw_in * c_out + 2 * howo * hw_in * c_out)
        else:
            flops += taps * (2 * howo * hw_in * c_in + 2 * howo * c_in * c_out)
    flops += 2 * wl.shape[0] * wl.shape[1] * wl.shape[2]
    flops *= N
    bytes_accessed = sum(int(np.prod(o.shape)) * o.dtype.itemsize for o in operands)
    bytes_accessed += N * latent * 4

    out = pl.pallas_call(
        functools.partial(_encoder_kernel, num_conv_layers=len(conv_ops)),
        out_shape=jax.ShapeDtypeStruct((N, 1, latent), jnp.float32),
        grid=(N,),
        in_specs=in_specs,
        out_specs=pl.BlockSpec((1, 1, latent), lambda n: (n, 0, 0)),
        compiler_params=pltpu.CompilerParams(
            dimension_semantics=("parallel",)),
        cost_estimate=pl.CostEstimate(
            flops=int(flops), transcendentals=0,
            bytes_accessed=int(bytes_accessed)),
    )(*operands)
    return out.reshape(N, latent)


# ---------------------- params: init + one-time repack ----------------------
def init_encoder_params(key, input_height, input_width, latent_dim,
                        in_channels, filters):
    """PyTorch-style uniform(+-1/sqrt(fan_in)) init; returns raw f32 params."""
    params = {"convs": []}
    h, w = input_height, input_width
    c_in = in_channels
    for c_out in filters:
        key, k1, k2 = jax.random.split(key, 3)
        fan_in = c_in * CONV_KERNEL_SIZE * CONV_KERNEL_SIZE
        bound = 1.0 / float(fan_in) ** 0.5
        Wc = jax.random.uniform(
            k1, (c_out, c_in, CONV_KERNEL_SIZE, CONV_KERNEL_SIZE),
            jnp.float32, -bound, bound)
        bc = jax.random.uniform(k2, (c_out,), jnp.float32, -bound, bound)
        params["convs"].append((Wc, bc))
        h = compute_output_size(h, CONV_KERNEL_SIZE, CONV_STRIDE, CONV_PADDING)
        w = compute_output_size(w, CONV_KERNEL_SIZE, CONV_STRIDE, CONV_PADDING)
        c_in = c_out
    flattened = compute_flattened_size(filters[-1], h, w)
    key, k1, k2 = jax.random.split(key, 3)
    bound = 1.0 / float(flattened) ** 0.5
    Wl = jax.random.uniform(k1, (latent_dim, flattened), jnp.float32, -bound, bound)
    bl = jax.random.uniform(k2, (latent_dim,), jnp.float32, -bound, bound)
    params["linear"] = (Wl, bl)
    return params, (filters[-1], h, w)


def prepare_encoder_params(params, input_height, input_width):
    """One-time repack into kernel-ready constants: gather matrices, bf16
    tap-stacked conv weights, and the flatten-order-permuted Linear weight."""
    kk = CONV_KERNEL_SIZE * CONV_KERNEL_SIZE
    prepared = {"convs": []}
    h, w = input_height, input_width
    for (Wc, bc) in params["convs"]:
        c_out, c_in = Wc.shape[0], Wc.shape[1]
        ho = compute_output_size(h, CONV_KERNEL_SIZE, CONV_STRIDE, CONV_PADDING)
        wo = compute_output_size(w, CONV_KERNEL_SIZE, CONV_STRIDE, CONV_PADDING)
        G = jnp.asarray(_build_gather_matrices(h, w, ho, wo), dtype=jnp.bfloat16)
        # (C_out, C_in, 3, 3) -> (9, C_in, C_out), tap index t = kh*3 + kw.
        Wt = jnp.transpose(Wc, (2, 3, 1, 0)).reshape(kk, c_in, c_out).astype(jnp.bfloat16)
        b = bc.reshape(1, c_out).astype(jnp.float32)
        prepared["convs"].append((G, Wt, b))
        h, w = ho, wo
    Wl, bl = params["linear"]
    latent = Wl.shape[0]
    c_f = params["convs"][-1][0].shape[0]
    # PyTorch flatten order is (C, H, W); fold it into the weight once:
    #   Wl_perm[h*W + w, c, j] = Wl[j, c*(H*W) + h*W + w]
    Wl_perm = jnp.transpose(Wl.reshape(latent, c_f, h * w), (2, 1, 0)).astype(jnp.bfloat16)
    prepared["linear"] = (Wl_perm, bl.reshape(1, latent).astype(jnp.float32))
    return prepared


# ----------------------------- f32 XLA reference -----------------------------
def encoder_reference(params, x_nchw):
    x = x_nchw
    for (Wc, bc) in params["convs"]:
        x = jax.lax.conv_general_dilated(
            x, Wc, window_strides=(CONV_STRIDE, CONV_STRIDE),
            padding=((CONV_PADDING, CONV_PADDING), (CONV_PADDING, CONV_PADDING)),
            dimension_numbers=("NCHW", "OIHW", "NCHW"))
        x = jnp.maximum(x + bc.reshape(1, -1, 1, 1), 0.0)
    Wl, bl = params["linear"]
    flat = x.reshape(x.shape[0], -1)
    return flat @ Wl.T + bl


if __name__ == "__main__":
    batch = 2
    in_channels = 1
    input_height = input_width = 16
    latent_dim = 32
    filters = [32, 64, 128]

    key = jax.random.PRNGKey(0)
    key, pkey, xkey = jax.random.split(key, 3)
    params, out_chw = init_encoder_params(
        pkey, input_height, input_width, latent_dim, in_channels, filters)
    prepared = prepare_encoder_params(params, input_height, input_width)

    x = jax.random.normal(
        xkey, (batch, in_channels, input_height, input_width), jnp.float32)

    fwd = jax.jit(encoder_forward)
    y = fwd(prepared, x)
    jax.block_until_ready(y)

    assert y.shape == (batch, latent_dim), y.shape
    assert out_chw == (filters[-1], 2, 2), out_chw

    # Parity check vs an f32 XLA reference (exact PyTorch semantics).  The
    # kernel uses bf16 operands with f32 accumulation, so use a loose but
    # meaningful tolerance (expected max error ~5e-3).
    y_ref = encoder_reference(params, x)
    max_err = float(jnp.max(jnp.abs(y - y_ref)))
    if max_err > 5e-2:
        raise AssertionError(f"kernel/reference mismatch: max abs err = {max_err}")

    print("KERNEL_OK")
</pallas_src>

<mosaic_0001>
module attributes {stable_mosaic.version = 11 : i64} {
  func.func @_encoder_kernel(%arg0: i32, %arg1: memref<1x256x1xbf16, #tpu.memory_space<vmem>>, %arg2: memref<9x64x256xbf16, #tpu.memory_space<vmem>>, %arg3: memref<9x1x32xbf16, #tpu.memory_space<vmem>>, %arg4: memref<1x32xf32, #tpu.memory_space<vmem>>, %arg5: memref<9x16x64xbf16, #tpu.memory_space<vmem>>, %arg6: memref<9x32x64xbf16, #tpu.memory_space<vmem>>, %arg7: memref<1x64xf32, #tpu.memory_space<vmem>>, %arg8: memref<9x4x16xbf16, #tpu.memory_space<vmem>>, %arg9: memref<9x64x128xbf16, #tpu.memory_space<vmem>>, %arg10: memref<1x128xf32, #tpu.memory_space<vmem>>, %arg11: memref<4x128x32xbf16, #tpu.memory_space<vmem>>, %arg12: memref<1x32xf32, #tpu.memory_space<vmem>>, %arg13: memref<1x1x32xf32, #tpu.memory_space<vmem>>) attributes {dimension_semantics = [#tpu.dimension_semantics<parallel>], iteration_bounds = array<i64: 2>, scalar_prefetch = 0 : i64, scratch_operands = 0 : i64, tpu.core_type = #tpu.core_type<tc>, window_params = [{transform_indices = @transform_0, window_bounds = array<i64: 1, 256, 1>}, {pipeline_mode = #tpu.pipeline_mode<synchronous>, transform_indices = @transform_1, window_bounds = array<i64: 9, 64, 256>}, {pipeline_mode = #tpu.pipeline_mode<synchronous>, transform_indices = @transform_2, window_bounds = array<i64: 9, 1, 32>}, {pipeline_mode = #tpu.pipeline_mode<synchronous>, transform_indices = @transform_3, window_bounds = array<i64: 1, 32>}, {pipeline_mode = #tpu.pipeline_mode<synchronous>, transform_indices = @transform_4, window_bounds = array<i64: 9, 16, 64>}, {pipeline_mode = #tpu.pipeline_mode<synchronous>, transform_indices = @transform_5, window_bounds = array<i64: 9, 32, 64>}, {pipeline_mode = #tpu.pipeline_mode<synchronous>, transform_indices = @transform_6, window_bounds = array<i64: 1, 64>}, {pipeline_mode = #tpu.pipeline_mode<synchronous>, transform_indices = @transform_7, window_bounds = array<i64: 9, 4, 16>}, {pipeline_mode = #tpu.pipeline_mode<synchronous>, transform_indices = @transform_8, window_bounds = array<i64: 9, 64, 128>}, {pipeline_mode = #tpu.pipeline_mode<synchronous>, transform_indices = @transform_9, window_bounds = array<i64: 1, 128>}, {pipeline_mode = #tpu.pipeline_mode<synchronous>, transform_indices = @transform_10, window_bounds = array<i64: 4, 128, 32>}, {pipeline_mode = #tpu.pipeline_mode<synchronous>, transform_indices = @transform_11, window_bounds = array<i64: 1, 32>}, {transform_indices = @transform_12, window_bounds = array<i64: 1, 1, 32>}]} {
    %c0 = arith.constant 0 : index
    %c0_0 = arith.constant 0 : index
    %c0_1 = arith.constant 0 : index
    %0 = vector.load %arg1[%c0, %c0_0, %c0_1] : memref<1x256x1xbf16, #tpu.memory_space<vmem>>, vector<1x256x1xbf16>
    %1 = vector.shape_cast %0 : vector<1x256x1xbf16> to vector<256x1xbf16>
    %cst = arith.constant 0.000000e+00 : f32
    %2 = vector.broadcast %cst : f32 to vector<64x32xf32>
    %c0_2 = arith.constant 0 : index
    %c0_3 = arith.constant 0 : index
    %c0_4 = arith.constant 0 : index
    %3 = vector.load %arg2[%c0_2, %c0_3, %c0_4] : memref<9x64x256xbf16, #tpu.memory_space<vmem>>, vector<1x64x256xbf16>
    %4 = vector.shape_cast %3 : vector<1x64x256xbf16> to vector<64x256xbf16>
    %c0_5 = arith.constant 0 : index
    %c0_6 = arith.constant 0 : index
    %c0_7 = arith.constant 0 : index
    %5 = vector.load %arg3[%c0_5, %c0_6, %c0_7] : memref<9x1x32xbf16, #tpu.memory_space<vmem>>, vector<1x1x32xbf16>
    %6 = vector.shape_cast %5 : vector<1x1x32xbf16> to vector<1x32xbf16>
    %7 = arith.extf %1 : vector<256x1xbf16> to vector<256x1xf32>
    %8 = arith.extf %6 : vector<1x32xbf16> to vector<1x32xf32>
    %9 = vector.broadcast %7 : vector<256x1xf32> to vector<256x32xf32>
    %10 = vector.broadcast %8 : vector<1x32xf32> to vector<256x32xf32>
    %11 = arith.mulf %9, %10 : vector<256x32xf32>
    %12 = arith.truncf %11 : vector<256x32xf32> to vector<256x32xbf16>
    %cst_8 = arith.constant dense<0.000000e+00> : vector<64x32xf32>
    %13 = tpu.matmul %4, %12, %cst_8 {dimension_numbers = #tpu.dot_dimension_numbers<[1], [0], [0], [1], [0, 0, 1, 1], [], []>} : vector<64x256xbf16>, vector<256x32xbf16>, vector<64x32xf32> -> vector<64x32xf32>
    %14 = arith.addf %2, %13 : vector<64x32xf32>
    %c1 = arith.constant 1 : index
    %c0_9 = arith.constant 0 : index
    %c0_10 = arith.constant 0 : index
    %15 = vector.load %arg2[%c1, %c0_9, %c0_10] : memref<9x64x256xbf16, #tpu.memory_space<vmem>>, vector<1x64x256xbf16>
    %16 = vector.shape_cast %15 : vector<1x64x256xbf16> to vector<64x256xbf16>
    %c1_11 = arith.constant 1 : index
    %c0_12 = arith.constant 0 : index
    %c0_13 = arith.constant 0 : index
    %17 = vector.load %arg3[%c1_11, %c0_12, %c0_13] : memref<9x1x32xbf16, #tpu.memory_space<vmem>>, vector<1x1x32xbf16>
    %18 = vector.shape_cast %17 : vector<1x1x32xbf16> to vector<1x32xbf16>
    %19 = arith.extf %1 : vector<256x1xbf16> to vector<256x1xf32>
    %20 = arith.extf %18 : vector<1x32xbf16> to vector<1x32xf32>
    %21 = vector.broadcast %19 : vector<256x1xf32> to vector<256x32xf32>
    %22 = vector.broadcast %20 : vector<1x32xf32> to vector<256x32xf32>
    %23 = arith.mulf %21, %22 : vector<256x32xf32>
    %24 = arith.truncf %23 : vector<256x32xf32> to vector<256x32xbf16>
    %cst_14 = arith.constant dense<0.000000e+00> : vector<64x32xf32>
    %25 = tpu.matmul %16, %24, %cst_14 {dimension_numbers = #tpu.dot_dimension_numbers<[1], [0], [0], [1], [0, 0, 1, 1], [], []>} : vector<64x256xbf16>, vector<256x32xbf16>, vector<64x32xf32> -> vector<64x32xf32>
    %26 = arith.addf %14, %25 : vector<64x32xf32>
    %c2 = arith.constant 2 : index
    %c0_15 = arith.constant 0 : index
    %c0_16 = arith.constant 0 : index
    %27 = vector.load %arg2[%c2, %c0_15, %c0_16] : memref<9x64x256xbf16, #tpu.memory_space<vmem>>, vector<1x64x256xbf16>
    %28 = vector.shape_cast %27 : vector<1x64x256xbf16> to vector<64x256xbf16>
    %c2_17 = arith.constant 2 : index
    %c0_18 = arith.constant 0 : index
    %c0_19 = arith.constant 0 : index
    %29 = vector.load %arg3[%c2_17, %c0_18, %c0_19] : memref<9x1x32xbf16, #tpu.memory_space<vmem>>, vector<1x1x32xbf16>
    %30 = vector.shape_cast %29 : vector<1x1x32xbf16> to vector<1x32xbf16>
    %31 = arith.extf %1 : vector<256x1xbf16> to vector<256x1xf32>
    %32 = arith.extf %30 : vector<1x32xbf16> to vector<1x32xf32>
    %33 = vector.broadcast %31 : vector<256x1xf32> to vector<256x32xf32>
    %34 = vector.broadcast %32 : vector<1x32xf32> to vector<256x32xf32>
    %35 = arith.mulf %33, %34 : vector<256x32xf32>
    %36 = arith.truncf %35 : vector<256x32xf32> to vector<256x32xbf16>
    %cst_20 = arith.constant dense<0.000000e+00> : vector<64x32xf32>
    %37 = tpu.matmul %28, %36, %cst_20 {dimension_numbers = #tpu.dot_dimension_numbers<[1], [0], [0], [1], [0, 0, 1, 1], [], []>} : vector<64x256xbf16>, vector<256x32xbf16>, vector<64x32xf32> -> vector<64x32xf32>
    %38 = arith.addf %26, %37 : vector<64x32xf32>
    %c3 = arith.constant 3 : index
    %c0_21 = arith.constant 0 : index
    %c0_22 = arith.constant 0 : index
    %39 = vector.load %arg2[%c3, %c0_21, %c0_22] : memref<9x64x256xbf16, #tpu.memory_space<vmem>>, vector<1x64x256xbf16>
    %40 = vector.shape_cast %39 : vector<1x64x256xbf16> to vector<64x256xbf16>
    %c3_23 = arith.constant 3 : index
    %c0_24 = arith.constant 0 : index
    %c0_25 = arith.constant 0 : index
    %41 = vector.load %arg3[%c3_23, %c0_24, %c0_25] : memref<9x1x32xbf16, #tpu.memory_space<vmem>>, vector<1x1x32xbf16>
    %42 = vector.shape_cast %41 : vector<1x1x32xbf16> to vector<1x32xbf16>
    %43 = arith.extf %1 : vector<256x1xbf16> to vector<256x1xf32>
    %44 = arith.extf %42 : vector<1x32xbf16> to vector<1x32xf32>
    %45 = vector.broadcast %43 : vector<256x1xf32> to vector<256x32xf32>
    %46 = vector.broadcast %44 : vector<1x32xf32> to vector<256x32xf32>
    %47 = arith.mulf %45, %46 : vector<256x32xf32>
    %48 = arith.truncf %47 : vector<256x32xf32> to vector<256x32xbf16>
    %cst_26 = arith.constant dense<0.000000e+00> : vector<64x32xf32>
    %49 = tpu.matmul %40, %48, %cst_26 {dimension_numbers = #tpu.dot_dimension_numbers<[1], [0], [0], [1], [0, 0, 1, 1], [], []>} : vector<64x256xbf16>, vector<256x32xbf16>, vector<64x32xf32> -> vector<64x32xf32>
    %50 = arith.addf %38, %49 : vector<64x32xf32>
    %c4 = arith.constant 4 : index
    %c0_27 = arith.constant 0 : index
    %c0_28 = arith.constant 0 : index
    %51 = vector.load %arg2[%c4, %c0_27, %c0_28] : memref<9x64x256xbf16, #tpu.memory_space<vmem>>, vector<1x64x256xbf16>
    %52 = vector.shape_cast %51 : vector<1x64x256xbf16> to vector<64x256xbf16>
    %c4_29 = arith.constant 4 : index
    %c0_30 = arith.constant 0 : index
    %c0_31 = arith.constant 0 : index
    %53 = vector.load %arg3[%c4_29, %c0_30, %c0_31] : memref<9x1x32xbf16, #tpu.memory_space<vmem>>, vector<1x1x32xbf16>
    %54 = vector.shape_cast %53 : vector<1x1x32xbf16> to vector<1x32xbf16>
    %55 = arith.extf %1 : vector<256x1xbf16> to vector<256x1xf32>
    %56 = arith.extf %54 : vector<1x32xbf16> to vector<1x32xf32>
    %57 = vector.broadcast %55 : vector<256x1xf32> to vector<256x32xf32>
    %58 = vector.broadcast %56 : vector<1x32xf32> to vector<256x32xf32>
    %59 = arith.mulf %57, %58 : vector<256x32xf32>
    %60 = arith.truncf %59 : vector<256x32xf32> to vector<256x32xbf16>
    %cst_32 = arith.constant dense<0.000000e+00> : vector<64x32xf32>
    %61 = tpu.matmul %52, %60, %cst_32 {dimension_numbers = #tpu.dot_dimension_numbers<[1], [0], [0], [1], [0, 0, 1, 1], [], []>} : vector<64x256xbf16>, vector<256x32xbf16>, vector<64x32xf32> -> vector<64x32xf32>
    %62 = arith.addf %50, %61 : vector<64x32xf32>
    %c5 = arith.constant 5 : index
    %c0_33 = arith.constant 0 : index
    %c0_34 = arith.constant 0 : index
    %63 = vector.load %arg2[%c5, %c0_33, %c0_34] : memref<9x64x256xbf16, #tpu.memory_space<vmem>>, vector<1x64x256xbf16>
    %64 = vector.shape_cast %63 : vector<1x64x256xbf16> to vector<64x256xbf16>
    %c5_35 = arith.constant 5 : index
    %c0_36 = arith.constant 0 : index
    %c0_37 = arith.constant 0 : index
    %65 = vector.load %arg3[%c5_35, %c0_36, %c0_37] : memref<9x1x32xbf16, #tpu.memory_space<vmem>>, vector<1x1x32xbf16>
    %66 = vector.shape_cast %65 : vector<1x1x32xbf16> to vector<1x32xbf16>
    %67 = arith.extf %1 : vector<256x1xbf16> to vector<256x1xf32>
    %68 = arith.extf %66 : vector<1x32xbf16> to vector<1x32xf32>
    %69 = vector.broadcast %67 : vector<256x1xf32> to vector<256x32xf32>
    %70 = vector.broadcast %68 : vector<1x32xf32> to vector<256x32xf32>
    %71 = arith.mulf %69, %70 : vector<256x32xf32>
    %72 = arith.truncf %71 : vector<256x32xf32> to vector<256x32xbf16>
    %cst_38 = arith.constant dense<0.000000e+00> : vector<64x32xf32>
    %73 = tpu.matmul %64, %72, %cst_38 {dimension_numbers = #tpu.dot_dimension_numbers<[1], [0], [0], [1], [0, 0, 1, 1], [], []>} : vector<64x256xbf16>, vector<256x32xbf16>, vector<64x32xf32> -> vector<64x32xf32>
    %74 = arith.addf %62, %73 : vector<64x32xf32>
    %c6 = arith.constant 6 : index
    %c0_39 = arith.constant 0 : index
    %c0_40 = arith.constant 0 : index
    %75 = vector.load %arg2[%c6, %c0_39, %c0_40] : memref<9x64x256xbf16, #tpu.memory_space<vmem>>, vector<1x64x256xbf16>
    %76 = vector.shape_cast %75 : vector<1x64x256xbf16> to vector<64x256xbf16>
    %c6_41 = arith.constant 6 : index
    %c0_42 = arith.constant 0 : index
    %c0_43 = arith.constant 0 : index
    %77 = vector.load %arg3[%c6_41, %c0_42, %c0_43] : memref<9x1x32xbf16, #tpu.memory_space<vmem>>, vector<1x1x32xbf16>
    %78 = vector.shape_cast %77 : vector<1x1x32xbf16> to vector<1x32xbf16>
    %79 = arith.extf %1 : vector<256x1xbf16> to vector<256x1xf32>
    %80 = arith.extf %78 : vector<1x32xbf16> to vector<1x32xf32>
    %81 = vector.broadcast %79 : vector<256x1xf32> to vector<256x32xf32>
    %82 = vector.broadcast %80 : vector<1x32xf32> to vector<256x32xf32>
    %83 = arith.mulf %81, %82 : vector<256x32xf32>
    %84 = arith.truncf %83 : vector<256x32xf32> to vector<256x32xbf16>
    %cst_44 = arith.constant dense<0.000000e+00> : vector<64x32xf32>
    %85 = tpu.matmul %76, %84, %cst_44 {dimension_numbers = #tpu.dot_dimension_numbers<[1], [0], [0], [1], [0, 0, 1, 1], [], []>} : vector<64x256xbf16>, vector<256x32xbf16>, vector<64x32xf32> -> vector<64x32xf32>
    %86 = arith.addf %74, %85 : vector<64x32xf32>
    %c7 = arith.constant 7 : index
    %c0_45 = arith.constant 0 : index
    %c0_46 = arith.constant 0 : index
    %87 = vector.load %arg2[%c7, %c0_45, %c0_46] : memref<9x64x256xbf16, #tpu.memory_space<vmem>>, vector<1x64x256xbf16>
    %88 = vector.shape_cast %87 : vector<1x64x256xbf16> to vector<64x256xbf16>
    %c7_47 = arith.constant 7 : index
    %c0_48 = arith.constant 0 : index
    %c0_49 = arith.constant 0 : index
    %89 = vector.load %arg3[%c7_47, %c0_48, %c0_49] : memref<9x1x32xbf16, #tpu.memory_space<vmem>>, vector<1x1x32xbf16>
    %90 = vector.shape_cast %89 : vector<1x1x32xbf16> to vector<1x32xbf16>
    %91 = arith.extf %1 : vector<256x1xbf16> to vector<256x1xf32>
    %92 = arith.extf %90 : vector<1x32xbf16> to vector<1x32xf32>
    %93 = vector.broadcast %91 : vector<256x1xf32> to vector<256x32xf32>
    %94 = vector.broadcast %92 : vector<1x32xf32> to vector<256x32xf32>
    %95 = arith.mulf %93, %94 : vector<256x32xf32>
    %96 = arith.truncf %95 : vector<256x32xf32> to vector<256x32xbf16>
    %cst_50 = arith.constant dense<0.000000e+00> : vector<64x32xf32>
    %97 = tpu.matmul %88, %96, %cst_50 {dimension_numbers = #tpu.dot_dimension_numbers<[1], [0], [0], [1], [0, 0, 1, 1], [], []>} : vector<64x256xbf16>, vector<256x32xbf16>, vector<64x32xf32> -> vector<64x32xf32>
    %98 = arith.addf %86, %97 : vector<64x32xf32>
    %c8 = arith.constant 8 : index
    %c0_51 = arith.constant 0 : index
    %c0_52 = arith.constant 0 : index
    %99 = vector.load %arg2[%c8, %c0_51, %c0_52] : memref<9x64x256xbf16, #tpu.memory_space<vmem>>, vector<1x64x256xbf16>
    %100 = vector.shape_cast %99 : vector<1x64x256xbf16> to vector<64x256xbf16>
    %c8_53 = arith.constant 8 : index
    %c0_54 = arith.constant 0 : index
    %c0_55 = arith.constant 0 : index
    %101 = vector.load %arg3[%c8_53, %c0_54, %c0_55] : memref<9x1x32xbf16, #tpu.memory_space<vmem>>, vector<1x1x32xbf16>
    %102 = vector.shape_cast %101 : vector<1x1x32xbf16> to vector<1x32xbf16>
    %103 = arith.extf %1 : vector<256x1xbf16> to vector<256x1xf32>
    %104 = arith.extf %102 : vector<1x32xbf16> to vector<1x32xf32>
    %105 = vector.broadcast %103 : vector<256x1xf32> to vector<256x32xf32>
    %106 = vector.broadcast %104 : vector<1x32xf32> to vector<256x32xf32>
    %107 = arith.mulf %105, %106 : vector<256x32xf32>
    %108 = arith.truncf %107 : vector<256x32xf32> to vector<256x32xbf16>
    %cst_56 = arith.constant dense<0.000000e+00> : vector<64x32xf32>
    %109 = tpu.matmul %100, %108, %cst_56 {dimension_numbers = #tpu.dot_dimension_numbers<[1], [0], [0], [1], [0, 0, 1, 1], [], []>} : vector<64x256xbf16>, vector<256x32xbf16>, vector<64x32xf32> -> vector<64x32xf32>
    %110 = arith.addf %98, %109 : vector<64x32xf32>
    %c0_57 = arith.constant 0 : index
    %c0_58 = arith.constant 0 : index
    %111 = vector.load %arg4[%c0_57, %c0_58] : memref<1x32xf32, #tpu.memory_space<vmem>>, vector<1x32xf32>
    %112 = vector.broadcast %111 : vector<1x32xf32> to vector<64x32xf32>
    %113 = arith.addf %110, %112 : vector<64x32xf32>
    %cst_59 = arith.constant 0.000000e+00 : f32
    %114 = vector.broadcast %cst_59 : f32 to vector<64x32xf32>
    %115 = arith.maximumf %113, %114 : vector<64x32xf32>
    %116 = arith.truncf %115 : vector<64x32xf32> to vector<64x32xbf16>
    %cst_60 = arith.constant 0.000000e+00 : f32
    %117 = vector.broadcast %cst_60 : f32 to vector<16x64xf32>
    %c0_61 = arith.constant 0 : index
    %c0_62 = arith.constant 0 : index
    %c0_63 = arith.constant 0 : index
    %118 = vector.load %arg5[%c0_61, %c0_62, %c0_63] : memref<9x16x64xbf16, #tpu.memory_space<vmem>>, vector<1x16x64xbf16>
    %119 = vector.shape_cast %118 : vector<1x16x64xbf16> to vector<16x64xbf16>
    %c0_64 = arith.constant 0 : index
    %c0_65 = arith.constant 0 : index
    %c0_66 = arith.constant 0 : index
    %120 = vector.load %arg6[%c0_64, %c0_65, %c0_66] : memref<9x32x64xbf16, #tpu.memory_space<vmem>>, vector<1x32x64xbf16>
    %121 = vector.shape_cast %120 : vector<1x32x64xbf16> to vector<32x64xbf16>
    %cst_67 = arith.constant dense<0.000000e+00> : vector<16x32xf32>
    %122 = tpu.matmul %119, %116, %cst_67 {dimension_numbers = #tpu.dot_dimension_numbers<[1], [0], [0], [1], [0, 0, 1, 1], [], []>} : vector<16x64xbf16>, vector<64x32xbf16>, vector<16x32xf32> -> vector<16x32xf32>
    %123 = arith.truncf %122 : vector<16x32xf32> to vector<16x32xbf16>
    %cst_68 = arith.constant dense<0.000000e+00> : vector<16x64xf32>
    %124 = tpu.matmul %123, %121, %cst_68 {dimension_numbers = #tpu.dot_dimension_numbers<[1], [0], [0], [1], [0, 0, 1, 1], [], []>} : vector<16x32xbf16>, vector<32x64xbf16>, vector<16x64xf32> -> vector<16x64xf32>
    %125 = arith.addf %117, %124 : vector<16x64xf32>
    %c1_69 = arith.constant 1 : index
    %c0_70 = arith.constant 0 : index
    %c0_71 = arith.constant 0 : index
    %126 = vector.load %arg5[%c1_69, %c0_70, %c0_71] : memref<9x16x64xbf16, #tpu.memory_space<vmem>>, vector<1x16x64xbf16>
    %127 = vector.shape_cast %126 : vector<1x16x64xbf16> to vector<16x64xbf16>
    %c1_72 = arith.constant 1 : index
    %c0_73 = arith.constant 0 : index
    %c0_74 = arith.constant 0 : index
    %128 = vector.load %arg6[%c1_72, %c0_73, %c0_74] : memref<9x32x64xbf16, #tpu.memory_space<vmem>>, vector<1x32x64xbf16>
    %129 = vector.shape_cast %128 : vector<1x32x64xbf16> to vector<32x64xbf16>
    %cst_75 = arith.constant dense<0.000000e+00> : vector<16x32xf32>
    %130 = tpu.matmul %127, %116, %cst_75 {dimension_numbers = #tpu.dot_dimension_numbers<[1], [0], [0], [1], [0, 0, 1, 1], [], []>} : vector<16x64xbf16>, vector<64x32xbf16>, vector<16x32xf32> -> vector<16x32xf32>
    %131 = arith.truncf %130 : vector<16x32xf32> to vector<16x32xbf16>
    %cst_76 = arith.constant dense<0.000000e+00> : vector<16x64xf32>
    %132 = tpu.matmul %131, %129, %cst_76 {dimension_numbers = #tpu.dot_dimension_numbers<[1], [0], [0], [1], [0, 0, 1, 1], [], []>} : vector<16x32xbf16>, vector<32x64xbf16>, vector<16x64xf32> -> vector<16x64xf32>
    %133 = arith.addf %125, %132 : vector<16x64xf32>
    %c2_77 = arith.constant 2 : index
    %c0_78 = arith.constant 0 : index
    %c0_79 = arith.constant 0 : index
    %134 = vector.load %arg5[%c2_77, %c0_78, %c0_79] : memref<9x16x64xbf16, #tpu.memory_space<vmem>>, vector<1x16x64xbf16>
    %135 = vector.shape_cast %134 : vector<1x16x64xbf16> to vector<16x64xbf16>
    %c2_80 = arith.constant 2 : index
    %c0_81 = arith.constant 0 : index
    %c0_82 = arith.constant 0 : index
    %136 = vector.load %arg6[%c2_80, %c0_81, %c0_82] : memref<9x32x64xbf16, #tpu.memory_space<vmem>>, vector<1x32x64xbf16>
    %137 = vector.shape_cast %136 : vector<1x32x64xbf16> to vector<32x64xbf16>
    %cst_83 = arith.constant dense<0.000000e+00> : vector<16x32xf32>
    %138 = tpu.matmul %135, %116, %cst_83 {dimension_numbers = #tpu.dot_dimension_numbers<[1], [0], [0], [1], [0, 0, 1, 1], [], []>} : vector<16x64xbf16>, vector<64x32xbf16>, vector<16x32xf32> -> vector<16x32xf32>
    %139 = arith.truncf %138 : vector<16x32xf32> to vector<16x32xbf16>
    %cst_84 = arith.constant dense<0.000000e+00> : vector<16x64xf32>
    %140 = tpu.matmul %139, %137, %cst_84 {dimension_numbers = #tpu.dot_dimension_numbers<[1], [0], [0], [1], [0, 0, 1, 1], [], []>} : vector<16x32xbf16>, vector<32x64xbf16>, vector<16x64xf32> -> vector<16x64xf32>
    %141 = arith.addf %133, %140 : vector<16x64xf32>
    %c3_85 = arith.constant 3 : index
    %c0_86 = arith.constant 0 : index
    %c0_87 = arith.constant 0 : index
    %142 = vector.load %arg5[%c3_85, %c0_86, %c0_87] : memref<9x16x64xbf16, #tpu.memory_space<vmem>>, vector<1x16x64xbf16>
    %143 = vector.shape_cast %142 : vector<1x16x64xbf16> to vector<16x64xbf16>
    %c3_88 = arith.constant 3 : index
    %c0_89 = arith.constant 0 : index
    %c0_90 = arith.constant 0 : index
    %144 = vector.load %arg6[%c3_88, %c0_89, %c0_90] : memref<9x32x64xbf16, #tpu.memory_space<vmem>>, vector<1x32x64xbf16>
    %145 = vector.shape_cast %144 : vector<1x32x64xbf16> to vector<32x64xbf16>
    %cst_91 = arith.constant dense<0.000000e+00> : vector<16x32xf32>
    %146 = tpu.matmul %143, %116, %cst_91 {dimension_numbers = #tpu.dot_dimension_numbers<[1], [0], [0], [1], [0, 0, 1, 1], [], []>} : vector<16x64xbf16>, vector<64x32xbf16>, vector<16x32xf32> -> vector<16x32xf32>
    %147 = arith.truncf %146 : vector<16x32xf32> to vector<16x32xbf16>
    %cst_92 = arith.constant dense<0.000000e+00> : vector<16x64xf32>
    %148 = tpu.matmul %147, %145, %cst_92 {dimension_numbers = #tpu.dot_dimension_numbers<[1], [0], [0], [1], [0, 0, 1, 1], [], []>} : vector<16x32xbf16>, vector<32x64xbf16>, vector<16x64xf32> -> vector<16x64xf32>
    %149 = arith.addf %141, %148 : vector<16x64xf32>
    %c4_93 = arith.constant 4 : index
    %c0_94 = arith.constant 0 : index
    %c0_95 = arith.constant 0 : index
    %150 = vector.load %arg5[%c4_93, %c0_94, %c0_95] : memref<9x16x64xbf16, #tpu.memory_space<vmem>>, vector<1x16x64xbf16>
    %151 = vector.shape_cast %150 : vector<1x16x64xbf16> to vector<16x64xbf16>
    %c4_96 = arith.constant 4 : index
    %c0_97 = arith.constant 0 : index
    %c0_98 = arith.constant 0 : index
    %152 = vector.load %arg6[%c4_96, %c0_97, %c0_98] : memref<9x32x64xbf16, #tpu.memory_space<vmem>>, vector<1x32x64xbf16>
    %153 = vector.shape_cast %152 : vector<1x32x64xbf16> to vector<32x64xbf16>
    %cst_99 = arith.constant dense<0.000000e+00> : vector<16x32xf32>
    %154 = tpu.matmul %151, %116, %cst_99 {dimension_numbers = #tpu.dot_dimension_numbers<[1], [0], [0], [1], [0, 0, 1, 1], [], []>} : vector<16x64xbf16>, vector<64x32xbf16>, vector<16x32xf32> -> vector<16x32xf32>
    %155 = arith.truncf %154 : vector<16x32xf32> to vector<16x32xbf16>
    %cst_100 = arith.constant dense<0.000000e+00> : vector<16x64xf32>
    %156 = tpu.matmul %155, %153, %cst_100 {dimension_numbers = #tpu.dot_dimension_numbers<[1], [0], [0], [1], [0, 0, 1, 1], [], []>} : vector<16x32xbf16>, vector<32x64xbf16>, vector<16x64xf32> -> vector<16x64xf32>
    %157 = arith.addf %149, %156 : vector<16x64xf32>
    %c5_101 = arith.constant 5 : index
    %c0_102 = arith.constant 0 : index
    %c0_103 = arith.constant 0 : index
    %158 = vector.load %arg5[%c5_101, %c0_102, %c0_103] : memref<9x16x64xbf16, #tpu.memory_space<vmem>>, vector<1x16x64xbf16>
    %159 = vector.shape_cast %158 : vector<1x16x64xbf16> to vector<16x64xbf16>
    %c5_104 = arith.constant 5 : index
    %c0_105 = arith.constant 0 : index
    %c0_106 = arith.constant 0 : index
    %160 = vector.load %arg6[%c5_104, %c0_105, %c0_106] : memref<9x32x64xbf16, #tpu.memory_space<vmem>>, vector<1x32x64xbf16>
    %161 = vector.shape_cast %160 : vector<1x32x64xbf16> to vector<32x64xbf16>
    %cst_107 = arith.constant dense<0.000000e+00> : vector<16x32xf32>
    %162 = tpu.matmul %159, %116, %cst_107 {dimension_numbers = #tpu.dot_dimension_numbers<[1], [0], [0], [1], [0, 0, 1, 1], [], []>} : vector<16x64xbf16>, vector<64x32xbf16>, vector<16x32xf32> -> vector<16x32xf32>
    %163 = arith.truncf %162 : vector<16x32xf32> to vector<16x32xbf16>
    %cst_108 = arith.constant dense<0.000000e+00> : vector<16x64xf32>
    %164 = tpu.matmul %163, %161, %cst_108 {dimension_numbers = #tpu.dot_dimension_numbers<[1], [0], [0], [1], [0, 0, 1, 1], [], []>} : vector<16x32xbf16>, vector<32x64xbf16>, vector<16x64xf32> -> vector<16x64xf32>
    %165 = arith.addf %157, %164 : vector<16x64xf32>
    %c6_109 = arith.constant 6 : index
    %c0_110 = arith.constant 0 : index
    %c0_111 = arith.constant 0 : index
    %166 = vector.load %arg5[%c6_109, %c0_110, %c0_111] : memref<9x16x64xbf16, #tpu.memory_space<vmem>>, vector<1x16x64xbf16>
    %167 = vector.shape_cast %166 : vector<1x16x64xbf16> to vector<16x64xbf16>
    %c6_112 = arith.constant 6 : index
    %c0_113 = arith.constant 0 : index
    %c0_114 = arith.constant 0 : index
    %168 = vector.load %arg6[%c6_112, %c0_113, %c0_114] : memref<9x32x64xbf16, #tpu.memory_space<vmem>>, vector<1x32x64xbf16>
    %169 = vector.shape_cast %168 : vector<1x32x64xbf16> to vector<32x64xbf16>
    %cst_115 = arith.constant dense<0.000000e+00> : vector<16x32xf32>
    %170 = tpu.matmul %167, %116, %cst_115 {dimension_numbers = #tpu.dot_dimension_numbers<[1], [0], [0], [1], [0, 0, 1, 1], [], []>} : vector<16x64xbf16>, vector<64x32xbf16>, vector<16x32xf32> -> vector<16x32xf32>
    %171 = arith.truncf %170 : vector<16x32xf32> to vector<16x32xbf16>
    %cst_116 = arith.constant dense<0.000000e+00> : vector<16x64xf32>
    %172 = tpu.matmul %171, %169, %cst_116 {dimension_numbers = #tpu.dot_dimension_numbers<[1], [0], [0], [1], [0, 0, 1, 1], [], []>} : vector<16x32xbf16>, vector<32x64xbf16>, vector<16x64xf32> -> vector<16x64xf32>
    %173 = arith.addf %165, %172 : vector<16x64xf32>
    %c7_117 = arith.constant 7 : index
    %c0_118 = arith.constant 0 : index
    %c0_119 = arith.constant 0 : index
    %174 = vector.load %arg5[%c7_117, %c0_118, %c0_119] : memref<9x16x64xbf16, #tpu.memory_space<vmem>>, vector<1x16x64xbf16>
    %175 = vector.shape_cast %174 : vector<1x16x64xbf16> to vector<16x64xbf16>
    %c7_120 = arith.constant 7 : index
    %c0_121 = arith.constant 0 : index
    %c0_122 = arith.constant 0 : index
    %176 = vector.load %arg6[%c7_120, %c0_121, %c0_122] : memref<9x32x64xbf16, #tpu.memory_space<vmem>>, vector<1x32x64xbf16>
    %177 = vector.shape_cast %176 : vector<1x32x64xbf16> to vector<32x64xbf16>
    %cst_123 = arith.constant dense<0.000000e+00> : vector<16x32xf32>
    %178 = tpu.matmul %175, %116, %cst_123 {dimension_numbers = #tpu.dot_dimension_numbers<[1], [0], [0], [1], [0, 0, 1, 1], [], []>} : vector<16x64xbf16>, vector<64x32xbf16>, vector<16x32xf32> -> vector<16x32xf32>
    %179 = arith.truncf %178 : vector<16x32xf32> to vector<16x32xbf16>
    %cst_124 = arith.constant dense<0.000000e+00> : vector<16x64xf32>
    %180 = tpu.matmul %179, %177, %cst_124 {dimension_numbers = #tpu.dot_dimension_numbers<[1], [0], [0], [1], [0, 0, 1, 1], [], []>} : vector<16x32xbf16>, vector<32x64xbf16>, vector<16x64xf32> -> vector<16x64xf32>
    %181 = arith.addf %173, %180 : vector<16x64xf32>
    %c8_125 = arith.constant 8 : index
    %c0_126 = arith.constant 0 : index
    %c0_127 = arith.constant 0 : index
    %182 = vector.load %arg5[%c8_125, %c0_126, %c0_127] : memref<9x16x64xbf16, #tpu.memory_space<vmem>>, vector<1x16x64xbf16>
    %183 = vector.shape_cast %182 : vector<1x16x64xbf16> to vector<16x64xbf16>
    %c8_128 = arith.constant 8 : index
    %c0_129 = arith.constant 0 : index
    %c0_130 = arith.constant 0 : index
    %184 = vector.load %arg6[%c8_128, %c0_129, %c0_130] : memref<9x32x64xbf16, #tpu.memory_space<vmem>>, vector<1x32x64xbf16>
    %185 = vector.shape_cast %184 : vector<1x32x64xbf16> to vector<32x64xbf16>
    %cst_131 = arith.constant dense<0.000000e+00> : vector<16x32xf32>
    %186 = tpu.matmul %183, %116, %cst_131 {dimension_numbers = #tpu.dot_dimension_numbers<[1], [0], [0], [1], [0, 0, 1, 1], [], []>} : vector<16x64xbf16>, vector<64x32xbf16>, vector<16x32xf32> -> vector<16x32xf32>
    %187 = arith.truncf %186 : vector<16x32xf32> to vector<16x32xbf16>
    %cst_132 = arith.constant dense<0.000000e+00> : vector<16x64xf32>
    %188 = tpu.matmul %187, %185, %cst_132 {dimension_numbers = #tpu.dot_dimension_numbers<[1], [0], [0], [1], [0, 0, 1, 1], [], []>} : vector<16x32xbf16>, vector<32x64xbf16>, vector<16x64xf32> -> vector<16x64xf32>
    %189 = arith.addf %181, %188 : vector<16x64xf32>
    %c0_133 = arith.constant 0 : index
    %c0_134 = arith.constant 0 : index
    %190 = vector.load %arg7[%c0_133, %c0_134] : memref<1x64xf32, #tpu.memory_space<vmem>>, vector<1x64xf32>
    %191 = vector.broadcast %190 : vector<1x64xf32> to vector<16x64xf32>
    %192 = arith.addf %189, %191 : vector<16x64xf32>
    %cst_135 = arith.constant 0.000000e+00 : f32
    %193 = vector.broadcast %cst_135 : f32 to vector<16x64xf32>
    %194 = arith.maximumf %192, %193 : vector<16x64xf32>
    %195 = arith.truncf %194 : vector<16x64xf32> to vector<16x64xbf16>
    %cst_136 = arith.constant 0.000000e+00 : f32
    %196 = vector.broadcast %cst_136 : f32 to vector<4x128xf32>
    %c0_137 = arith.constant 0 : index
    %c0_138 = arith.constant 0 : index
    %c0_139 = arith.constant 0 : index
    %197 = vector.load %arg8[%c0_137, %c0_138, %c0_139] : memref<9x4x16xbf16, #tpu.memory_space<vmem>>, vector<1x4x16xbf16>
    %198 = vector.shape_cast %197 : vector<1x4x16xbf16> to vector<4x16xbf16>
    %c0_140 = arith.constant 0 : index
    %c0_141 = arith.constant 0 : index
    %c0_142 = arith.constant 0 : index
    %199 = vector.load %arg9[%c0_140, %c0_141, %c0_142] : memref<9x64x128xbf16, #tpu.memory_space<vmem>>, vector<1x64x128xbf16>
    %200 = vector.shape_cast %199 : vector<1x64x128xbf16> to vector<64x128xbf16>
    %cst_143 = arith.constant dense<0.000000e+00> : vector<4x64xf32>
    %201 = tpu.matmul %198, %195, %cst_143 {dimension_numbers = #tpu.dot_dimension_numbers<[1], [0], [0], [1], [0, 0, 1, 1], [], []>} : vector<4x16xbf16>, vector<16x64xbf16>, vector<4x64xf32> -> vector<4x64xf32>
    %202 = arith.truncf %201 : vector<4x64xf32> to vector<4x64xbf16>
    %cst_144 = arith.constant dense<0.000000e+00> : vector<4x128xf32>
    %203 = tpu.matmul %202, %200, %cst_144 {dimension_numbers = #tpu.dot_dimension_numbers<[1], [0], [0], [1], [0, 0, 1, 1], [], []>} : vector<4x64xbf16>, vector<64x128xbf16>, vector<4x128xf32> -> vector<4x128xf32>
    %204 = arith.addf %196, %203 : vector<4x128xf32>
    %c1_145 = arith.constant 1 : index
    %c0_146 = arith.constant 0 : index
    %c0_147 = arith.constant 0 : index
    %205 = vector.load %arg8[%c1_145, %c0_146, %c0_147] : memref<9x4x16xbf16, #tpu.memory_space<vmem>>, vector<1x4x16xbf16>
    %206 = vector.shape_cast %205 : vector<1x4x16xbf16> to vector<4x16xbf16>
    %c1_148 = arith.constant 1 : index
    %c0_149 = arith.constant 0 : index
    %c0_150 = arith.constant 0 : index
    %207 = vector.load %arg9[%c1_148, %c0_149, %c0_150] : memref<9x64x128xbf16, #tpu.memory_space<vmem>>, vector<1x64x128xbf16>
    %208 = vector.shape_cast %207 : vector<1x64x128xbf16> to vector<64x128xbf16>
    %cst_151 = arith.constant dense<0.000000e+00> : vector<4x64xf32>
    %209 = tpu.matmul %206, %195, %cst_151 {dimension_numbers = #tpu.dot_dimension_numbers<[1], [0], [0], [1], [0, 0, 1, 1], [], []>} : vector<4x16xbf16>, vector<16x64xbf16>, vector<4x64xf32> -> vector<4x64xf32>
    %210 = arith.truncf %209 : vector<4x64xf32> to vector<4x64xbf16>
    %cst_152 = arith.constant dense<0.000000e+00> : vector<4x128xf32>
    %211 = tpu.matmul %210, %208, %cst_152 {dimension_numbers = #tpu.dot_dimension_numbers<[1], [0], [0], [1], [0, 0, 1, 1], [], []>} : vector<4x64xbf16>, vector<64x128xbf16>, vector<4x128xf32> -> vector<4x128xf32>
    %212 = arith.addf %204, %211 : vector<4x128xf32>
    %c2_153 = arith.constant 2 : index
    %c0_154 = arith.constant 0 : index
    %c0_155 = arith.constant 0 : index
    %213 = vector.load %arg8[%c2_153, %c0_154, %c0_155] : memref<9x4x16xbf16, #tpu.memory_space<vmem>>, vector<1x4x16xbf16>
    %214 = vector.shape_cast %213 : vector<1x4x16xbf16> to vector<4x16xbf16>
    %c2_156 = arith.constant 2 : index
    %c0_157 = arith.constant 0 : index
    %c0_158 = arith.constant 0 : index
    %215 = vector.load %arg9[%c2_156, %c0_157, %c0_158] : memref<9x64x128xbf16, #tpu.memory_space<vmem>>, vector<1x64x128xbf16>
    %216 = vector.shape_cast %215 : vector<1x64x128xbf16> to vector<64x128xbf16>
    %cst_159 = arith.constant dense<0.000000e+00> : vector<4x64xf32>
    %217 = tpu.matmul %214, %195, %cst_159 {dimension_numbers = #tpu.dot_dimension_numbers<[1], [0], [0], [1], [0, 0, 1, 1], [], []>} : vector<4x16xbf16>, vector<16x64xbf16>, vector<4x64xf32> -> vector<4x64xf32>
    %218 = arith.truncf %217 : vector<4x64xf32> to vector<4x64xbf16>
    %cst_160 = arith.constant dense<0.000000e+00> : vector<4x128xf32>
    %219 = tpu.matmul %218, %216, %cst_160 {dimension_numbers = #tpu.dot_dimension_numbers<[1], [0], [0], [1], [0, 0, 1, 1], [], []>} : vector<4x64xbf16>, vector<64x128xbf16>, vector<4x128xf32> -> vector<4x128xf32>
    %220 = arith.addf %212, %219 : vector<4x128xf32>
    %c3_161 = arith.constant 3 : index
    %c0_162 = arith.constant 0 : index
    %c0_163 = arith.constant 0 : index
    %221 = vector.load %arg8[%c3_161, %c0_162, %c0_163] : memref<9x4x16xbf16, #tpu.memory_space<vmem>>, vector<1x4x16xbf16>
    %222 = vector.shape_cast %221 : vector<1x4x16xbf16> to vector<4x16xbf16>
    %c3_164 = arith.constant 3 : index
    %c0_165 = arith.constant 0 : index
    %c0_166 = arith.constant 0 : index
    %223 = vector.load %arg9[%c3_164, %c0_165, %c0_166] : memref<9x64x128xbf16, #tpu.memory_space<vmem>>, vector<1x64x128xbf16>
    %224 = vector.shape_cast %223 : vector<1x64x128xbf16> to vector<64x128xbf16>
    %cst_167 = arith.constant dense<0.000000e+00> : vector<4x64xf32>
    %225 = tpu.matmul %222, %195, %cst_167 {dimension_numbers = #tpu.dot_dimension_numbers<[1], [0], [0], [1], [0, 0, 1, 1], [], []>} : vector<4x16xbf16>, vector<16x64xbf16>, vector<4x64xf32> -> vector<4x64xf32>
    %226 = arith.truncf %225 : vector<4x64xf32> to vector<4x64xbf16>
    %cst_168 = arith.constant dense<0.000000e+00> : vector<4x128xf32>
    %227 = tpu.matmul %226, %224, %cst_168 {dimension_numbers = #tpu.dot_dimension_numbers<[1], [0], [0], [1], [0, 0, 1, 1], [], []>} : vector<4x64xbf16>, vector<64x128xbf16>, vector<4x128xf32> -> vector<4x128xf32>
    %228 = arith.addf %220, %227 : vector<4x128xf32>
    %c4_169 = arith.constant 4 : index
    %c0_170 = arith.constant 0 : index
    %c0_171 = arith.constant 0 : index
    %229 = vector.load %arg8[%c4_169, %c0_170, %c0_171] : memref<9x4x16xbf16, #tpu.memory_space<vmem>>, vector<1x4x16xbf16>
    %230 = vector.shape_cast %229 : vector<1x4x16xbf16> to vector<4x16xbf16>
    %c4_172 = arith.constant 4 : index
    %c0_173 = arith.constant 0 : index
    %c0_174 = arith.constant 0 : index
    %231 = vector.load %arg9[%c4_172, %c0_173, %c0_174] : memref<9x64x128xbf16, #tpu.memory_space<vmem>>, vector<1x64x128xbf16>
    %232 = vector.shape_cast %231 : vector<1x64x128xbf16> to vector<64x128xbf16>
    %cst_175 = arith.constant dense<0.000000e+00> : vector<4x64xf32>
    %233 = tpu.matmul %230, %195, %cst_175 {dimension_numbers = #tpu.dot_dimension_numbers<[1], [0], [0], [1], [0, 0, 1, 1], [], []>} : vector<4x16xbf16>, vector<16x64xbf16>, vector<4x64xf32> -> vector<4x64xf32>
    %234 = arith.truncf %233 : vector<4x64xf32> to vector<4x64xbf16>
    %cst_176 = arith.constant dense<0.000000e+00> : vector<4x128xf32>
    %235 = tpu.matmul %234, %232, %cst_176 {dimension_numbers = #tpu.dot_dimension_numbers<[1], [0], [0], [1], [0, 0, 1, 1], [], []>} : vector<4x64xbf16>, vector<64x128xbf16>, vector<4x128xf32> -> vector<4x128xf32>
    %236 = arith.addf %228, %235 : vector<4x128xf32>
    %c5_177 = arith.constant 5 : index
    %c0_178 = arith.constant 0 : index
    %c0_179 = arith.constant 0 : index
    %237 = vector.load %arg8[%c5_177, %c0_178, %c0_179] : memref<9x4x16xbf16, #tpu.memory_space<vmem>>, vector<1x4x16xbf16>
    %238 = vector.shape_cast %237 : vector<1x4x16xbf16> to vector<4x16xbf16>
    %c5_180 = arith.constant 5 : index
    %c0_181 = arith.constant 0 : index
    %c0_182 = arith.constant 0 : index
    %239 = vector.load %arg9[%c5_180, %c0_181, %c0_182] : memref<9x64x128xbf16, #tpu.memory_space<vmem>>, vector<1x64x128xbf16>
    %240 = vector.shape_cast %239 : vector<1x64x128xbf16> to vector<64x128xbf16>
    %cst_183 = arith.constant dense<0.000000e+00> : vector<4x64xf32>
    %241 = tpu.matmul %238, %195, %cst_183 {dimension_numbers = #tpu.dot_dimension_numbers<[1], [0], [0], [1], [0, 0, 1, 1], [], []>} : vector<4x16xbf16>, vector<16x64xbf16>, vector<4x64xf32> -> vector<4x64xf32>
    %242 = arith.truncf %241 : vector<4x64xf32> to vector<4x64xbf16>
    %cst_184 = arith.constant dense<0.000000e+00> : vector<4x128xf32>
    %243 = tpu.matmul %242, %240, %cst_184 {dimension_numbers = #tpu.dot_dimension_numbers<[1], [0], [0], [1], [0, 0, 1, 1], [], []>} : vector<4x64xbf16>, vector<64x128xbf16>, vector<4x128xf32> -> vector<4x128xf32>
    %244 = arith.addf %236, %243 : vector<4x128xf32>
    %c6_185 = arith.constant 6 : index
    %c0_186 = arith.constant 0 : index
    %c0_187 = arith.constant 0 : index
    %245 = vector.load %arg8[%c6_185, %c0_186, %c0_187] : memref<9x4x16xbf16, #tpu.memory_space<vmem>>, vector<1x4x16xbf16>
    %246 = vector.shape_cast %245 : vector<1x4x16xbf16> to vector<4x16xbf16>
    %c6_188 = arith.constant 6 : index
    %c0_189 = arith.constant 0 : index
    %c0_190 = arith.constant 0 : index
    %247 = vector.load %arg9[%c6_188, %c0_189, %c0_190] : memref<9x64x128xbf16, #tpu.memory_space<vmem>>, vector<1x64x128xbf16>
    %248 = vector.shape_cast %247 : vector<1x64x128xbf16> to vector<64x128xbf16>
    %cst_191 = arith.constant dense<0.000000e+00> : vector<4x64xf32>
    %249 = tpu.matmul %246, %195, %cst_191 {dimension_numbers = #tpu.dot_dimension_numbers<[1], [0], [0], [1], [0, 0, 1, 1], [], []>} : vector<4x16xbf16>, vector<16x64xbf16>, vector<4x64xf32> -> vector<4x64xf32>
    %250 = arith.truncf %249 : vector<4x64xf32> to vector<4x64xbf16>
    %cst_192 = arith.constant dense<0.000000e+00> : vector<4x128xf32>
    %251 = tpu.matmul %250, %248, %cst_192 {dimension_numbers = #tpu.dot_dimension_numbers<[1], [0], [0], [1], [0, 0, 1, 1], [], []>} : vector<4x64xbf16>, vector<64x128xbf16>, vector<4x128xf32> -> vector<4x128xf32>
    %252 = arith.addf %244, %251 : vector<4x128xf32>
    %c7_193 = arith.constant 7 : index
    %c0_194 = arith.constant 0 : index
    %c0_195 = arith.constant 0 : index
    %253 = vector.load %arg8[%c7_193, %c0_194, %c0_195] : memref<9x4x16xbf16, #tpu.memory_space<vmem>>, vector<1x4x16xbf16>
    %254 = vector.shape_cast %253 : vector<1x4x16xbf16> to vector<4x16xbf16>
    %c7_196 = arith.constant 7 : index
    %c0_197 = arith.constant 0 : index
    %c0_198 = arith.constant 0 : index
    %255 = vector.load %arg9[%c7_196, %c0_197, %c0_198] : memref<9x64x128xbf16, #tpu.memory_space<vmem>>, vector<1x64x128xbf16>
    %256 = vector.shape_cast %255 : vector<1x64x128xbf16> to vector<64x128xbf16>
    %cst_199 = arith.constant dense<0.000000e+00> : vector<4x64xf32>
    %257 = tpu.matmul %254, %195, %cst_199 {dimension_numbers = #tpu.dot_dimension_numbers<[1], [0], [0], [1], [0, 0, 1, 1], [], []>} : vector<4x16xbf16>, vector<16x64xbf16>, vector<4x64xf32> -> vector<4x64xf32>
    %258 = arith.truncf %257 : vector<4x64xf32> to vector<4x64xbf16>
    %cst_200 = arith.constant dense<0.000000e+00> : vector<4x128xf32>
    %259 = tpu.matmul %258, %256, %cst_200 {dimension_numbers = #tpu.dot_dimension_numbers<[1], [0], [0], [1], [0, 0, 1, 1], [], []>} : vector<4x64xbf16>, vector<64x128xbf16>, vector<4x128xf32> -> vector<4x128xf32>
    %260 = arith.addf %252, %259 : vector<4x128xf32>
    %c8_201 = arith.constant 8 : index
    %c0_202 = arith.constant 0 : index
    %c0_203 = arith.constant 0 : index
    %261 = vector.load %arg8[%c8_201, %c0_202, %c0_203] : memref<9x4x16xbf16, #tpu.memory_space<vmem>>, vector<1x4x16xbf16>
    %262 = vector.shape_cast %261 : vector<1x4x16xbf16> to vector<4x16xbf16>
    %c8_204 = arith.constant 8 : index
    %c0_205 = arith.constant 0 : index
    %c0_206 = arith.constant 0 : index
    %263 = vector.load %arg9[%c8_204, %c0_205, %c0_206] : memref<9x64x128xbf16, #tpu.memory_space<vmem>>, vector<1x64x128xbf16>
    %264 = vector.shape_cast %263 : vector<1x64x128xbf16> to vector<64x128xbf16>
    %cst_207 = arith.constant dense<0.000000e+00> : vector<4x64xf32>
    %265 = tpu.matmul %262, %195, %cst_207 {dimension_numbers = #tpu.dot_dimension_numbers<[1], [0], [0], [1], [0, 0, 1, 1], [], []>} : vector<4x16xbf16>, vector<16x64xbf16>, vector<4x64xf32> -> vector<4x64xf32>
    %266 = arith.truncf %265 : vector<4x64xf32> to vector<4x64xbf16>
    %cst_208 = arith.constant dense<0.000000e+00> : vector<4x128xf32>
    %267 = tpu.matmul %266, %264, %cst_208 {dimension_numbers = #tpu.dot_dimension_numbers<[1], [0], [0], [1], [0, 0, 1, 1], [], []>} : vector<4x64xbf16>, vector<64x128xbf16>, vector<4x128xf32> -> vector<4x128xf32>
    %268 = arith.addf %260, %267 : vector<4x128xf32>
    %c0_209 = arith.constant 0 : index
    %c0_210 = arith.constant 0 : index
    %269 = vector.load %arg10[%c0_209, %c0_210] : memref<1x128xf32, #tpu.memory_space<vmem>>, vector<1x128xf32>
    %270 = vector.broadcast %269 : vector<1x128xf32> to vector<4x128xf32>
    %271 = arith.addf %268, %270 : vector<4x128xf32>
    %cst_211 = arith.constant 0.000000e+00 : f32
    %272 = vector.broadcast %cst_211 : f32 to vector<4x128xf32>
    %273 = arith.maximumf %271, %272 : vector<4x128xf32>
    %274 = arith.truncf %273 : vector<4x128xf32> to vector<4x128xbf16>
    %cst_212 = arith.constant 0.000000e+00 : f32
    %275 = vector.broadcast %cst_212 : f32 to vector<1x32xf32>
    %276 = vector.extract_strided_slice %274 {offsets = [0, 0], sizes = [1, 128], strides = [1, 1]} : vector<4x128xbf16> to vector<1x128xbf16>
    %c0_213 = arith.constant 0 : index
    %c0_214 = arith.constant 0 : index
    %c0_215 = arith.constant 0 : index
    %277 = vector.load %arg11[%c0_213, %c0_214, %c0_215] : memref<4x128x32xbf16, #tpu.memory_space<vmem>>, vector<1x128x32xbf16>
    %278 = vector.shape_cast %277 : vector<1x128x32xbf16> to vector<128x32xbf16>
    %cst_216 = arith.constant dense<0.000000e+00> : vector<1x32xf32>
    %279 = tpu.matmul %276, %278, %cst_216 {dimension_numbers = #tpu.dot_dimension_numbers<[1], [0], [0], [1], [0, 0, 1, 1], [], []>} : vector<1x128xbf16>, vector<128x32xbf16>, vector<1x32xf32> -> vector<1x32xf32>
    %280 = arith.addf %275, %279 : vector<1x32xf32>
    %281 = vector.extract_strided_slice %274 {offsets = [1, 0], sizes = [1, 128], strides = [1, 1]} : vector<4x128xbf16> to vector<1x128xbf16>
    %c1_217 = arith.constant 1 : index
    %c0_218 = arith.constant 0 : index
    %c0_219 = arith.constant 0 : index
    %282 = vector.load %arg11[%c1_217, %c0_218, %c0_219] : memref<4x128x32xbf16, #tpu.memory_space<vmem>>, vector<1x128x32xbf16>
    %283 = vector.shape_cast %282 : vector<1x128x32xbf16> to vector<128x32xbf16>
    %cst_220 = arith.constant dense<0.000000e+00> : vector<1x32xf32>
    %284 = tpu.matmul %281, %283, %cst_220 {dimension_numbers = #tpu.dot_dimension_numbers<[1], [0], [0], [1], [0, 0, 1, 1], [], []>} : vector<1x128xbf16>, vector<128x32xbf16>, vector<1x32xf32> -> vector<1x32xf32>
    %285 = arith.addf %280, %284 : vector<1x32xf32>
    %286 = vector.extract_strided_slice %274 {offsets = [2, 0], sizes = [1, 128], strides = [1, 1]} : vector<4x128xbf16> to vector<1x128xbf16>
    %c2_221 = arith.constant 2 : index
    %c0_222 = arith.constant 0 : index
    %c0_223 = arith.constant 0 : index
    %287 = vector.load %arg11[%c2_221, %c0_222, %c0_223] : memref<4x128x32xbf16, #tpu.memory_space<vmem>>, vector<1x128x32xbf16>
    %288 = vector.shape_cast %287 : vector<1x128x32xbf16> to vector<128x32xbf16>
    %cst_224 = arith.constant dense<0.000000e+00> : vector<1x32xf32>
    %289 = tpu.matmul %286, %288, %cst_224 {dimension_numbers = #tpu.dot_dimension_numbers<[1], [0], [0], [1], [0, 0, 1, 1], [], []>} : vector<1x128xbf16>, vector<128x32xbf16>, vector<1x32xf32> -> vector<1x32xf32>
    %290 = arith.addf %285, %289 : vector<1x32xf32>
    %291 = vector.extract_strided_slice %274 {offsets = [3, 0], sizes = [1, 128], strides = [1, 1]} : vector<4x128xbf16> to vector<1x128xbf16>
    %c3_225 = arith.constant 3 : index
    %c0_226 = arith.constant 0 : index
    %c0_227 = arith.constant 0 : index
    %292 = vector.load %arg11[%c3_225, %c0_226, %c0_227] : memref<4x128x32xbf16, #tpu.memory_space<vmem>>, vector<1x128x32xbf16>
    %293 = vector.shape_cast %292 : vector<1x128x32xbf16> to vector<128x32xbf16>
    %cst_228 = arith.constant dense<0.000000e+00> : vector<1x32xf32>
    %294 = tpu.matmul %291, %293, %cst_228 {dimension_numbers = #tpu.dot_dimension_numbers<[1], [0], [0], [1], [0, 0, 1, 1], [], []>} : vector<1x128xbf16>, vector<128x32xbf16>, vector<1x32xf32> -> vector<1x32xf32>
    %295 = arith.addf %290, %294 : vector<1x32xf32>
    %c0_229 = arith.constant 0 : index
    %c0_230 = arith.constant 0 : index
    %296 = vector.load %arg12[%c0_229, %c0_230] : memref<1x32xf32, #tpu.memory_space<vmem>>, vector<1x32xf32>
    %297 = arith.addf %295, %296 : vector<1x32xf32>
    %c0_231 = arith.constant 0 : index
    %c0_232 = arith.constant 0 : index
    %c0_233 = arith.constant 0 : index
    %298 = vector.load %arg13[%c0_231, %c0_232, %c0_233] : memref<1x1x32xf32, #tpu.memory_space<vmem>>, vector<1x1x32xf32>
    %299 = vector.shape_cast %298 : vector<1x1x32xf32> to vector<1x32xf32>
    %300 = vector.shape_cast %297 : vector<1x32xf32> to vector<1x1x32xf32>
    tpu.vector_store %arg13[%c0_231, %c0_232, %c0_233], %300 {strides = array<i32>} : memref<1x1x32xf32, #tpu.memory_space<vmem>>, vector<1x1x32xf32>,
    return
  }
  func.func @transform_0(%arg0: i32) -> (i32, i32, i32) {
    %c0_i32 = arith.constant 0 : i32
    %c0_i32_0 = arith.constant 0 : i32
    %c0_i32_1 = arith.constant 0 : i32
    return %arg0, %c0_i32, %c0_i32_0 : i32, i32, i32
  }
  func.func @transform_1(%arg0: i32) -> (i32, i32, i32) {
    %c0_i32 = arith.constant 0 : i32
    %c0_i32_0 = arith.constant 0 : i32
    %c0_i32_1 = arith.constant 0 : i32
    %c0_i32_2 = arith.constant 0 : i32
    return %c0_i32, %c0_i32_0, %c0_i32_1 : i32, i32, i32
  }
  func.func @transform_2(%arg0: i32) -> (i32, i32, i32) {
    %c0_i32 = arith.constant 0 : i32
    %c0_i32_0 = arith.constant 0 : i32
    %c0_i32_1 = arith.constant 0 : i32
    %c0_i32_2 = arith.constant 0 : i32
    return %c0_i32, %c0_i32_0, %c0_i32_1 : i32, i32, i32
  }
  func.func @transform_3(%arg0: i32) -> (i32, i32) {
    %c0_i32 = arith.constant 0 : i32
    %c0_i32_0 = arith.constant 0 : i32
    %c0_i32_1 = arith.constant 0 : i32
    return %c0_i32, %c0_i32_0 : i32, i32
  }
  func.func @transform_4(%arg0: i32) -> (i32, i32, i32) {
    %c0_i32 = arith.constant 0 : i32
    %c0_i32_0 = arith.constant 0 : i32
    %c0_i32_1 = arith.constant 0 : i32
    %c0_i32_2 = arith.constant 0 : i32
    return %c0_i32, %c0_i32_0, %c0_i32_1 : i32, i32, i32
  }
  func.func @transform_5(%arg0: i32) -> (i32, i32, i32) {
    %c0_i32 = arith.constant 0 : i32
    %c0_i32_0 = arith.constant 0 : i32
    %c0_i32_1 = arith.constant 0 : i32
    %c0_i32_2 = arith.constant 0 : i32
    return %c0_i32, %c0_i32_0, %c0_i32_1 : i32, i32, i32
  }
  func.func @transform_6(%arg0: i32) -> (i32, i32) {
    %c0_i32 = arith.constant 0 : i32
    %c0_i32_0 = arith.constant 0 : i32
    %c0_i32_1 = arith.constant 0 : i32
    return %c0_i32, %c0_i32_0 : i32, i32
  }
  func.func @transform_7(%arg0: i32) -> (i32, i32, i32) {
    %c0_i32 = arith.constant 0 : i32
    %c0_i32_0 = arith.constant 0 : i32
    %c0_i32_1 = arith.constant 0 : i32
    %c0_i32_2 = arith.constant 0 : i32
    return %c0_i32, %c0_i32_0, %c0_i32_1 : i32, i32, i32
  }
  func.func @transform_8(%arg0: i32) -> (i32, i32, i32) {
    %c0_i32 = arith.constant 0 : i32
    %c0_i32_0 = arith.constant 0 : i32
    %c0_i32_1 = arith.constant 0 : i32
    %c0_i32_2 = arith.constant 0 : i32
    return %c0_i32, %c0_i32_0, %c0_i32_1 : i32, i32, i32
  }
  func.func @transform_9(%arg0: i32) -> (i32, i32) {
    %c0_i32 = arith.constant 0 : i32
    %c0_i32_0 = arith.constant 0 : i32
    %c0_i32_1 = arith.constant 0 : i32
    return %c0_i32, %c0_i32_0 : i32, i32
  }
  func.func @transform_10(%arg0: i32) -> (i32, i32, i32) {
    %c0_i32 = arith.constant 0 : i32
    %c0_i32_0 = arith.constant 0 : i32
    %c0_i32_1 = arith.constant 0 : i32
    %c0_i32_2 = arith.constant 0 : i32
    return %c0_i32, %c0_i32_0, %c0_i32_1 : i32, i32, i32
  }
  func.func @transform_11(%arg0: i32) -> (i32, i32) {
    %c0_i32 = arith.constant 0 : i32
    %c0_i32_0 = arith.constant 0 : i32
    %c0_i32_1 = arith.constant 0 : i32
    return %c0_i32, %c0_i32_0 : i32, i32
  }
  func.func @transform_12(%arg0: i32) -> (i32, i32, i32) {
    %c0_i32 = arith.constant 0 : i32
    %c0_i32_0 = arith.constant 0 : i32
    %c0_i32_1 = arith.constant 0 : i32
    return %arg0, %c0_i32, %c0_i32_0 : i32, i32, i32
  }
}

</mosaic_0001>

<llo_original>
// kernel: encoder_forward.1
$region0: #{encoder_forward.1}
  #allocation0 [shape = 'u32[]', space=smem, size = 0x4, offset = 0x4, fixed_abs, tag = 'smem constant byte address 0x4 - core index']
  #allocation1 [shape = 'u32[144,128]{1,0:T(1,128)}', space=vmem, size = 0x12000, scoped, tag = 'internal scratch']
  %s0 = inlined_call_operand.vmem [shape: bf16[2,256,1], index: 0, kind: input, shape index: {}]
  %s1 = inlined_call_operand.vmem [shape: bf16[9,64,256], index: 1, kind: input, shape index: {}]
  %s2 = inlined_call_operand.vmem [shape: bf16[9,1,32], index: 2, kind: input, shape index: {}]
  %s3 = inlined_call_operand.hbm [shape: f32[1,32], index: 3, kind: input, shape index: {}]
  %s4 = inlined_call_operand.vmem [shape: bf16[9,16,64], index: 4, kind: input, shape index: {}]
  %s5 = inlined_call_operand.hbm [shape: bf16[9,32,64], index: 5, kind: input, shape index: {}]
  %s6 = inlined_call_operand.hbm [shape: f32[1,64], index: 6, kind: input, shape index: {}]
  %s7 = inlined_call_operand.vmem [shape: bf16[9,4,16], index: 7, kind: input, shape index: {}]
  %s8 = inlined_call_operand.hbm [shape: bf16[9,64,128], index: 8, kind: input, shape index: {}]
  %s9 = inlined_call_operand.hbm [shape: f32[1,128], index: 9, kind: input, shape index: {}]
  %s10 = inlined_call_operand.vmem [shape: bf16[4,128,32], index: 10, kind: input, shape index: {}]
  %s11 = inlined_call_operand.hbm [shape: f32[1,32], index: 11, kind: input, shape index: {}]
  %s12 = inlined_call_operand.hbm [shape: f32[2,1,32], index: 12, kind: output, shape index: {}]
  %s13 = sld [smem:[#allocation0]]
  $region105: #{encoder_forward.1} parent=0
    _
  %s15 = ssub.s32 1, %s13
  %s16 = scalar_select 0, %s15, %s13
  $region1: #{encoder_forward.1} parent=0
    #allocation2 [shape = 'u8[512]{0}', space=vmem, size = 0x400, scoped, tag = 'input window, operand 3, single buffered']
    #allocation3 [shape = 's32[2]{0}', space=sflag, size = 0x8, scoped, tag = 'scoped memory for encoder_forward.1']
    #allocation4 [shape = 's32[2]{0}', space=sflag, size = 0x8, scoped, tag = 'scoped memory for encoder_forward.1']
    #allocation5 [shape = 'u8[73728]{0}', space=vmem, size = 0x12000, scoped, tag = 'input window, operand 5, single buffered']
    #allocation6 [shape = 's32[1]{0}', space=sflag, size = 0x4, scoped, tag = 'scoped memory for encoder_forward.1']
    #allocation7 [shape = 'u8[512]{0}', space=vmem, size = 0x400, scoped, tag = 'input window, operand 6, single buffered']
    #allocation8 [shape = 'u8[147456]{0}', space=vmem, size = 0x24000, scoped, tag = 'input window, operand 8, single buffered']
    #allocation9 [shape = 's32[1]{0}', space=sflag, size = 0x4, scoped, tag = 'scoped memory for encoder_forward.1']
    #allocation10 [shape = 'u8[512]{0}', space=vmem, size = 0x400, scoped, tag = 'input window, operand 9, single buffered']
    #allocation11 [shape = 'u8[512]{0}', space=vmem, size = 0x400, scoped, tag = 'input window, operand 11, single buffered']
    #allocation12 [shape = 's32[1]{0}', space=sflag, size = 0x4, scoped, tag = 'scoped memory for encoder_forward.1']
    #allocation13 [shape = 'u8[1024]{0}', space=vmem, size = 0x400, scoped, tag = 'output window, operand 0']
    %17 = vsyncpa [#allocation3], 0
    %18 = vsyncpa [#allocation6], 0
    %19 = vsyncpa [#allocation9], 0
    %20 = vsyncpa [#allocation12], 0
    %21 = vsyncpa [#allocation4], 0
    %s22 = scalar_lea.sflag [#allocation4], 1
    %23 = vsyncpa %s22, 0
    loop: start=0, step=1, limit=4
    $region2: #{encoder_forward.1} parent=1 // loop_pre_header
      _
    $region3: #{encoder_forward.1} parent=1 // loop_header
      %s25 = sphi 0, %s29
      %p26 = scmp.ge.s32.totalorder %s25, 4
      %s35 = sphi 0, %s37
      %s38 = sphi 0, %s35
      %s39 = sphi 0, %s38
      %s55 = sphi 0, %s39
      %s59 = sphi 0, %s59
      %s61 = sphi 0, %s59
      %s62 = sphi 0, %s61
      %s76 = sphi 0, %s62
      %s80 = sphi 0, %s80
      %s82 = sphi 0, %s80
      %s83 = sphi 0, %s82
      %s97 = sphi 0, %s83
      %s101 = sphi 0, %s101
      %s103 = sphi 0, %s101
      %s104 = sphi 0, %s103
      %s118 = sphi 0, %s104
      %s122 = sphi 0, %s122
      %s124 = sphi 0, %s122
      %s125 = sphi 0, %s124
      %s139 = sphi 0, %s125
      %s143 = sphi 0, %s143
      %s145 = sphi 0, %s143
      %s146 = sphi 0, %s145
      %s160 = sphi 0, %s146
      %s164 = sphi 0, %s164
      %s166 = sphi 0, %s164
      %s167 = sphi 0, %s166
      %s181 = sphi 0, %s167
      %s185 = sphi 0, %s185
      %s187 = sphi 0, %s185
      %s188 = sphi 0, %s187
      %s202 = sphi 0, %s188
      %s206 = sphi 0, %s206
      %s208 = sphi 0, %s206
      %s209 = sphi 0, %s208
      %s223 = sphi 0, %s209
      %s227 = sphi 0, %s227
      %s229 = sphi 0, %s227
      %s230 = sphi 0, %s229
      %s244 = sphi 0, %s230
      %s248 = sphi 0, %s248
      %s250 = sphi 0, %s248
      %s251 = sphi 0, %s250
      %s265 = sphi 0, %s251
      %s269 = sphi 0, %s269
      %s271 = sphi 0, %s269
      %s272 = sphi 0, %s271
      %s286 = sphi 0, %s272
      %s292 = sphi 0, %s294
      %s295 = sphi 0, %s292
      %s296 = sphi 0, %s295
      %s312 = sphi 0, %s296
    $region4: #{encoder_forward.1} parent=1 // loop_header_branch
      %28 = sbr.rel (%p26) target = $region8
    $region5: #{encoder_forward.1} parent=1 // loop_body
      %s30 = ssub.s32 %s25, 1
      %s31 = ssub.s32 %s25, 2
      %s32 = sadd.s32 %s25, 1
      %s33 = ssub.s32 %s25, %s32
      %p34 = scmp.eq.s32.totalorder %s33, 0
      %s36 = sadd.s32 %s35, 1
      %s37 = scalar_select %p34, %s35, %s36
      %p40 = pneg %p34
      %p41 = scmp.eq.s32.totalorder %s25, 1
      %p42 = por %p40, %p41
      %p43 = scmp.ne.s32.totalorder %s35, %s38
      %p44 = scmp.eq.s32.totalorder %s25, 0
      %p45 = por %p43, %p44
      %p46 = scmp.ne.s32.totalorder %s35, %s38
      %p47 = scmp.eq.s32.totalorder %s30, 1
      %p48 = por %p46, %p47
      %p49 = scmp.ne.s32.totalorder %s38, %s39
      %p50 = scmp.eq.s32.totalorder %s30, 0
      %p51 = por %p49, %p50
      %p52 = scmp.ne.s32.totalorder %s38, %s39
      %p53 = scmp.eq.s32.totalorder %s31, 1
      %p54 = por %p52, %p53
      %p56 = scmp.ne.s32.totalorder %s39, %s55
      %p57 = scmp.eq.s32.totalorder %s31, 0
      %p58 = por %p56, %p57
      %s60 = sadd.s32 %s59, 1
      %p63 = scmp.eq.s32.totalorder %s25, 1
      %p64 = scmp.ne.s32.totalorder %s59, %s61
      %p65 = scmp.eq.s32.totalorder %s25, 0
      %p66 = por %p64, %p65
      %p67 = scmp.ne.s32.totalorder %s59, %s61
      %p68 = scmp.eq.s32.totalorder %s30, 1
      %p69 = por %p67, %p68
      %p70 = scmp.ne.s32.totalorder %s61, %s62
      %p71 = scmp.eq.s32.totalorder %s30, 0
      %p72 = por %p70, %p71
      %p73 = scmp.ne.s32.totalorder %s61, %s62
      %p74 = scmp.eq.s32.totalorder %s31, 1
      %p75 = por %p73, %p74
      %p77 = scmp.ne.s32.totalorder %s62, %s76
      %p78 = scmp.eq.s32.totalorder %s31, 0
      %p79 = por %p77, %p78
      %s81 = sadd.s32 %s80, 1
      %p84 = scmp.eq.s32.totalorder %s25, 1
      %p85 = scmp.ne.s32.totalorder %s80, %s82
      %p86 = scmp.eq.s32.totalorder %s25, 0
      %p87 = por %p85, %p86
      %p88 = scmp.ne.s32.totalorder %s80, %s82
      %p89 = scmp.eq.s32.totalorder %s30, 1
      %p90 = por %p88, %p89
      %p91 = scmp.ne.s32.totalorder %s82, %s83
      %p92 = scmp.eq.s32.totalorder %s30, 0
      %p93 = por %p91, %p92
      %p94 = scmp.ne.s32.totalorder %s82, %s83
      %p95 = scmp.eq.s32.totalorder %s31, 1
      %p96 = por %p94, %p95
      %p98 = scmp.ne.s32.totalorder %s83, %s97
      %p99 = scmp.eq.s32.totalorder %s31, 0
      %p100 = por %p98, %p99
      %s102 = sadd.s32 %s101, 1
      %p105 = scmp.eq.s32.totalorder %s25, 1
      %p106 = scmp.ne.s32.totalorder %s101, %s103
      %p107 = scmp.eq.s32.totalorder %s25, 0
      %p108 = por %p106, %p107
      %p109 = scmp.ne.s32.totalorder %s101, %s103
      %p110 = scmp.eq.s32.totalorder %s30, 1
      %p111 = por %p109, %p110
      %p112 = scmp.ne.s32.totalorder %s103, %s104
      %p113 = scmp.eq.s32.totalorder %s30, 0
      %p114 = por %p112, %p113
      %p115 = scmp.ne.s32.totalorder %s103, %s104
      %p116 = scmp.eq.s32.totalorder %s31, 1
      %p117 = por %p115, %p116
      %p119 = scmp.ne.s32.totalorder %s104, %s118
      %p120 = scmp.eq.s32.totalorder %s31, 0
      %p121 = por %p119, %p120
      %s123 = sadd.s32 %s122, 1
      %p126 = scmp.eq.s32.totalorder %s25, 1
      %p127 = scmp.ne.s32.totalorder %s122, %s124
      %p128 = scmp.eq.s32.totalorder %s25, 0
      %p129 = por %p127, %p128
      %p130 = scmp.ne.s32.totalorder %s122, %s124
      %p131 = scmp.eq.s32.totalorder %s30, 1
      %p132 = por %p130, %p131
      %p133 = scmp.ne.s32.totalorder %s124, %s125
      %p134 = scmp.eq.s32.totalorder %s30, 0
      %p135 = por %p133, %p134
      %p136 = scmp.ne.s32.totalorder %s124, %s125
      %p137 = scmp.eq.s32.totalorder %s31, 1
      %p138 = por %p136, %p137
      %p140 = scmp.ne.s32.totalorder %s125, %s139
      %p141 = scmp.eq.s32.totalorder %s31, 0
      %p142 = por %p140, %p141
      %s144 = sadd.s32 %s143, 1
      %p147 = scmp.eq.s32.totalorder %s25, 1
      %p148 = scmp.ne.s32.totalorder %s143, %s145
      %p149 = scmp.eq.s32.totalorder %s25, 0
      %p150 = por %p148, %p149
      %p151 = scmp.ne.s32.totalorder %s143, %s145
      %p152 = scmp.eq.s32.totalorder %s30, 1
      %p153 = por %p151, %p152
      %p154 = scmp.ne.s32.totalorder %s145, %s146
      %p155 = scmp.eq.s32.totalorder %s30, 0
      %p156 = por %p154, %p155
      %p157 = scmp.ne.s32.totalorder %s145, %s146
      %p158 = scmp.eq.s32.totalorder %s31, 1
      %p159 = por %p157, %p158
      %p161 = scmp.ne.s32.totalorder %s146, %s160
      %p162 = scmp.eq.s32.totalorder %s31, 0
      %p163 = por %p161, %p162
      %s165 = sadd.s32 %s164, 1
      %p168 = scmp.eq.s32.totalorder %s25, 1
      %p169 = scmp.ne.s32.totalorder %s164, %s166
      %p170 = scmp.eq.s32.totalorder %s25, 0
      %p171 = por %p169, %p170
      %p172 = scmp.ne.s32.totalorder %s164, %s166
      %p173 = scmp.eq.s32.totalorder %s30, 1
      %p174 = por %p172, %p173
      %p175 = scmp.ne.s32.totalorder %s166, %s167
      %p176 = scmp.eq.s32.totalorder %s30, 0
      %p177 = por %p175, %p176
      %p178 = scmp.ne.s32.totalorder %s166, %s167
      %p179 = scmp.eq.s32.totalorder %s31, 1
      %p180 = por %p178, %p179
      %p182 = scmp.ne.s32.totalorder %s167, %s181
      %p183 = scmp.eq.s32.totalorder %s31, 0
      %p184 = por %p182, %p183
      %s186 = sadd.s32 %s185, 1
      %p189 = scmp.eq.s32.totalorder %s25, 1
      %p190 = scmp.ne.s32.totalorder %s185, %s187
      %p191 = scmp.eq.s32.totalorder %s25, 0
      %p192 = por %p190, %p191
      %p193 = scmp.ne.s32.totalorder %s185, %s187
      %p194 = scmp.eq.s32.totalorder %s30, 1
      %p195 = por %p193, %p194
      %p196 = scmp.ne.s32.totalorder %s187, %s188
      %p197 = scmp.eq.s32.totalorder %s30, 0
      %p198 = por %p196, %p197
      %p199 = scmp.ne.s32.totalorder %s187, %s188
      %p200 = scmp.eq.s32.totalorder %s31, 1
      %p201 = por %p199, %p200
      %p203 = scmp.ne.s32.totalorder %s188, %s202
      %p204 = scmp.eq.s32.totalorder %s31, 0
      %p205 = por %p203, %p204
      %s207 = sadd.s32 %s206, 1
      %p210 = scmp.eq.s32.totalorder %s25, 1
      %p211 = scmp.ne.s32.totalorder %s206, %s208
      %p212 = scmp.eq.s32.totalorder %s25, 0
      %p213 = por %p211, %p212
      %p214 = scmp.ne.s32.totalorder %s206, %s208
      %p215 = scmp.eq.s32.totalorder %s30, 1
      %p216 = por %p214, %p215
      %p217 = scmp.ne.s32.totalorder %s208, %s209
      %p218 = scmp.eq.s32.totalorder %s30, 0
      %p219 = por %p217, %p218
      %p220 = scmp.ne.s32.totalorder %s208, %s209
      %p221 = scmp.eq.s32.totalorder %s31, 1
      %p222 = por %p220, %p221
      %p224 = scmp.ne.s32.totalorder %s209, %s223
      %p225 = scmp.eq.s32.totalorder %s31, 0
      %p226 = por %p224, %p225
      %s228 = sadd.s32 %s227, 1
      %p231 = scmp.eq.s32.totalorder %s25, 1
      %p232 = scmp.ne.s32.totalorder %s227, %s229
      %p233 = scmp.eq.s32.totalorder %s25, 0
      %p234 = por %p232, %p233
      %p235 = scmp.ne.s32.totalorder %s227, %s229
      %p236 = scmp.eq.s32.totalorder %s30, 1
      %p237 = por %p235, %p236
      %p238 = scmp.ne.s32.totalorder %s229, %s230
      %p239 = scmp.eq.s32.totalorder %s30, 0
      %p240 = por %p238, %p239
      %p241 = scmp.ne.s32.totalorder %s229, %s230
      %p242 = scmp.eq.s32.totalorder %s31, 1
      %p243 = por %p241, %p242
      %p245 = scmp.ne.s32.totalorder %s230, %s244
      %p246 = scmp.eq.s32.totalorder %s31, 0
      %p247 = por %p245, %p246
      %s249 = sadd.s32 %s248, 1
      %p252 = scmp.eq.s32.totalorder %s25, 1
      %p253 = scmp.ne.s32.totalorder %s248, %s250
      %p254 = scmp.eq.s32.totalorder %s25, 0
      %p255 = por %p253, %p254
      %p256 = scmp.ne.s32.totalorder %s248, %s250
      %p257 = scmp.eq.s32.totalorder %s30, 1
      %p258 = por %p256, %p257
      %p259 = scmp.ne.s32.totalorder %s250, %s251
      %p260 = scmp.eq.s32.totalorder %s30, 0
      %p261 = por %p259, %p260
      %p262 = scmp.ne.s32.totalorder %s250, %s251
      %p263 = scmp.eq.s32.totalorder %s31, 1
      %p264 = por %p262, %p263
      %p266 = scmp.ne.s32.totalorder %s251, %s265
      %p267 = scmp.eq.s32.totalorder %s31, 0
      %p268 = por %p266, %p267
      %s270 = sadd.s32 %s269, 1
      %p273 = scmp.eq.s32.totalorder %s25, 1
      %p274 = scmp.ne.s32.totalorder %s269, %s271
      %p275 = scmp.eq.s32.totalorder %s25, 0
      %p276 = por %p274, %p275
      %p277 = scmp.ne.s32.totalorder %s269, %s271
      %p278 = scmp.eq.s32.totalorder %s30, 1
      %p279 = por %p277, %p278
      %p280 = scmp.ne.s32.totalorder %s271, %s272
      %p281 = scmp.eq.s32.totalorder %s30, 0
      %p282 = por %p280, %p281
      %p283 = scmp.ne.s32.totalorder %s271, %s272
      %p284 = scmp.eq.s32.totalorder %s31, 1
      %p285 = por %p283, %p284
      %p287 = scmp.ne.s32.totalorder %s272, %s286
      %p288 = scmp.eq.s32.totalorder %s31, 0
      %p289 = por %p287, %p288
      %s290 = ssub.s32 %s25, %s32
      %p291 = scmp.eq.s32.totalorder %s290, 0
      %s293 = sadd.s32 %s292, 1
      %s294 = scalar_select %p291, %s292, %s293
      %p297 = pneg %p291
      %p298 = scmp.eq.s32.totalorder %s25, 1
      %p299 = por %p297, %p298
      %p300 = scmp.ne.s32.totalorder %s292, %s295
      %p301 = scmp.eq.s32.totalorder %s25, 0
      %p302 = por %p300, %p301
      %p303 = scmp.ne.s32.totalorder %s292, %s295
      %p304 = scmp.eq.s32.totalorder %s30, 1
      %p305 = por %p303, %p304
      %p306 = scmp.ne.s32.totalorder %s295, %s296
      %p307 = scmp.eq.s32.totalorder %s30, 0
      %p308 = por %p306, %p307
      %p309 = scmp.ne.s32.totalorder %s295, %s296
      %p310 = scmp.eq.s32.totalorder %s31, 1
      %p311 = por %p309, %p310
      %p313 = scmp.ne.s32.totalorder %s296, %s312
      %p314 = scmp.eq.s32.totalorder %s31, 0
      %p315 = por %p313, %p314
      %p316 = scmp.le.s32.totalorder 1, %s25
      %p317 = scmp.lt.s32.totalorder %s25, 3
      %p318 = pnand %p316, %p317
      %p319 = pneg %p318
      // Predicated region
      $region9: #{encoder_forward.1} parent=5 // pred_check
        _
      $region10: #{encoder_forward.1} parent=5 // pred_check_branch
        %321 = sbr.rel (%p318) target = $region12
      $region11: #{encoder_forward.1} parent=5 // pred_region
        %s322 = ssub.s32 %s25, 1
        // Predicated region
        $region13: #{encoder_forward.1} parent=11 // pred_check
          %p323 = pneg %p72
        $region14: #{encoder_forward.1} parent=11 // pred_check_branch
          %325 = sbr.rel (%p323) target = $region16
        $region15: #{encoder_forward.1} parent=11 // pred_region
          _
        $region16: #{encoder_forward.1} parent=11 // pred_fallthru
          _
        // Predicated region
        $region17: #{encoder_forward.1} parent=11 // pred_check
          %p326 = pneg %p93
        $region18: #{encoder_forward.1} parent=11 // pred_check_branch
          %328 = sbr.rel (%p326) target = $region20
        $region19: #{encoder_forward.1} parent=11 // pred_region
          _
        $region20: #{encoder_forward.1} parent=11 // pred_fallthru
          _
        // Predicated region
        $region21: #{encoder_forward.1} parent=11 // pred_check
          %p329 = pneg %p114
        $region22: #{encoder_forward.1} parent=11 // pred_check_branch
          %331 = sbr.rel (%p329) target = $region24
        $region23: #{encoder_forward.1} parent=11 // pred_region
          %s333 = ssub.s32 16, 16
          %334 = vsyncadd [#allocation3], %s333
          %s336 = sshll.u32 [#allocation2], 4
          %s337 = int_to_ptr.vmem [resolvable:$true] %s336
          %339 = dma.hbm_to_vmem [thread:$0]  %s3, 16, %s337, [#allocation3]
        $region24: #{encoder_forward.1} parent=11 // pred_fallthru
          _
        // Predicated region
        $region25: #{encoder_forward.1} parent=11 // pred_check
          %p340 = pneg %p135
        $region26: #{encoder_forward.1} parent=11 // pred_check_branch
          %342 = sbr.rel (%p340) target = $region28
        $region27: #{encoder_forward.1} parent=11 // pred_region
          _
        $region28: #{encoder_forward.1} parent=11 // pred_fallthru
          _
        // Predicated region
        $region29: #{encoder_forward.1} parent=11 // pred_check
          %p343 = pneg %p156
        $region30: #{encoder_forward.1} parent=11 // pred_check_branch
          %345 = sbr.rel (%p343) target = $region32
        $region31: #{encoder_forward.1} parent=11 // pred_region
          %s347 = ssub.s32 2304, 2304
          %348 = vsyncadd [#allocation6], %s347
          %s349 = sshll.u32 [#allocation5], 4
          %s350 = int_to_ptr.vmem [resolvable:$true] %s349
          %355 = dma.hbm_to_vmem [thread:$0]  %s5, 2304, %s350, [#allocation6], 64, 64, 4
        $region32: #{encoder_forward.1} parent=11 // pred_fallthru
          _
        // Predicated region
        $region33: #{encoder_forward.1} parent=11 // pred_check
          %p356 = pneg %p177
        $region34: #{encoder_forward.1} parent=11 // pred_check_branch
          %358 = sbr.rel (%p356) target = $region36
        $region35: #{encoder_forward.1} parent=11 // pred_region
          %s360 = ssub.s32 16, 16
          %361 = vsyncadd [#allocation6], %s360
          %s363 = sshll.u32 [#allocation7], 4
          %s364 = int_to_ptr.vmem [resolvable:$true] %s363
          %366 = dma.hbm_to_vmem [thread:$0]  %s6, 16, %s364, [#allocation6]
        $region36: #{encoder_forward.1} parent=11 // pred_fallthru
          _
        // Predicated region
        $region37: #{encoder_forward.1} parent=11 // pred_check
          %p367 = pneg %p198
        $region38: #{encoder_forward.1} parent=11 // pred_check_branch
          %369 = sbr.rel (%p367) target = $region40
        $region39: #{encoder_forward.1} parent=11 // pred_region
          _
        $region40: #{encoder_forward.1} parent=11 // pred_fallthru
          _
        // Predicated region
        $region41: #{encoder_forward.1} parent=11 // pred_check
          %p370 = pneg %p219
        $region42: #{encoder_forward.1} parent=11 // pred_check_branch
          %372 = sbr.rel (%p370) target = $region44
        $region43: #{encoder_forward.1} parent=11 // pred_region
          %s374 = ssub.s32 4608, 4608
          %375 = vsyncadd [#allocation9], %s374
          %s376 = sshll.u32 [#allocation8], 4
          %s377 = int_to_ptr.vmem [resolvable:$true] %s376
          %382 = dma.hbm_to_vmem [thread:$0]  %s8, 4608, %s377, [#allocation9], 64, 64, 4
        $region44: #{encoder_forward.1} parent=11 // pred_fallthru
          _
        // Predicated region
        $region45: #{encoder_forward.1} parent=11 // pred_check
          %p383 = pneg %p240
        $region46: #{encoder_forward.1} parent=11 // pred_check_branch
          %385 = sbr.rel (%p383) target = $region48
        $region47: #{encoder_forward.1} parent=11 // pred_region
          %s387 = ssub.s32 16, 16
          %388 = vsyncadd [#allocation9], %s387
          %s390 = sshll.u32 [#allocation10], 4
          %s391 = int_to_ptr.vmem [resolvable:$true] %s390
          %393 = dma.hbm_to_vmem [thread:$0]  %s9, 16, %s391, [#allocation9]
        $region48: #{encoder_forward.1} parent=11 // pred_fallthru
          _
        // Predicated region
        $region49: #{encoder_forward.1} parent=11 // pred_check
          %p394 = pneg %p261
        $region50: #{encoder_forward.1} parent=11 // pred_check_branch
          %396 = sbr.rel (%p394) target = $region52
        $region51: #{encoder_forward.1} parent=11 // pred_region
          _
        $region52: #{encoder_forward.1} parent=11 // pred_fallthru
          _
        // Predicated region
        $region53: #{encoder_forward.1} parent=11 // pred_check
          %p397 = pneg %p282
        $region54: #{encoder_forward.1} parent=11 // pred_check_branch
          %399 = sbr.rel (%p397) target = $region56
        $region55: #{encoder_forward.1} parent=11 // pred_region
          %s401 = ssub.s32 16, 16
          %402 = vsyncadd [#allocation12], %s401
          %s404 = sshll.u32 [#allocation11], 4
          %s405 = int_to_ptr.vmem [resolvable:$true] %s404
          %407 = dma.hbm_to_vmem [thread:$0]  %s11, 16, %s405, [#allocation12]
        $region56: #{encoder_forward.1} parent=11 // pred_fallthru
          _
      $region12: #{encoder_forward.1} parent=5 // pred_fallthru
        _
      %p408 = scmp.lt.s32.totalorder %s25, 2
      // Predicated region
      $region57: #{encoder_forward.1} parent=5 // pred_check
        %p409 = pneg %p408
      $region58: #{encoder_forward.1} parent=5 // pred_check_branch
        %411 = sbr.rel (%p409) target = $region60
      $region59: #{encoder_forward.1} parent=5 // pred_region
        // Predicated region
        $region61: #{encoder_forward.1} parent=59 // pred_check
          %p412 = pneg %p45
        $region62: #{encoder_forward.1} parent=59 // pred_check_branch
          %414 = sbr.rel (%p412) target = $region64
        $region63: #{encoder_forward.1} parent=59 // pred_region
          %p415 = scmp.lt.s32.totalorder %s25, 1
          %s416 = scalar_select %p415, %s25, 1
          %s417 = smul.addr %s416, 32
          %s418 = smul.addr %s417, 4
          %s419 = scalar_lea.vmem %s0, %s418
        $region64: #{encoder_forward.1} parent=59 // pred_fallthru
          _
      $region60: #{encoder_forward.1} parent=5 // pred_fallthru
        _
      %p420 = scmp.le.s32.totalorder 1, %s25
      %p421 = scmp.lt.s32.totalorder %s25, 3
      %p422 = pnand %p420, %p421
      %p423 = pneg %p422
      // Predicated region
      $region65: #{encoder_forward.1} parent=5 // pred_check
        _
      $region66: #{encoder_forward.1} parent=5 // pred_check_branch
        %425 = sbr.rel (%p422) target = $region68
      $region67: #{encoder_forward.1} parent=5 // pred_region
        %s426 = ssub.s32 %s25, 1
        // Predicated region
        $region69: #{encoder_forward.1} parent=67 // pred_check
          %p427 = pneg %p114
        $region70: #{encoder_forward.1} parent=67 // pred_check_branch
          %429 = sbr.rel (%p427) target = $region72
        $region71: #{encoder_forward.1} parent=67 // pred_region
          %430 = dma.done [#allocation3], 16
        $region72: #{encoder_forward.1} parent=67 // pred_fallthru
          _
        // Predicated region
        $region73: #{encoder_forward.1} parent=67 // pred_check
          %p431 = pneg %p156
        $region74: #{encoder_forward.1} parent=67 // pred_check_branch
          %433 = sbr.rel (%p431) target = $region76
        $region75: #{encoder_forward.1} parent=67 // pred_region
          %434 = dma.done [#allocation6], 2304
        $region76: #{encoder_forward.1} parent=67 // pred_fallthru
          _
        // Predicated region
        $region77: #{encoder_forward.1} parent=67 // pred_check
          %p435 = pneg %p177
        $region78: #{encoder_forward.1} parent=67 // pred_check_branch
          %437 = sbr.rel (%p435) target = $region80
        $region79: #{encoder_forward.1} parent=67 // pred_region
          %438 = dma.done [#allocation6], 16
        $region80: #{encoder_forward.1} parent=67 // pred_fallthru
          _
        // Predicated region
        $region81: #{encoder_forward.1} parent=67 // pred_check
          %p439 = pneg %p219
        $region82: #{encoder_forward.1} parent=67 // pred_check_branch
          %441 = sbr.rel (%p439) target = $region84
        $region83: #{encoder_forward.1} parent=67 // pred_region
          %442 = dma.done [#allocation9], 4608
        $region84: #{encoder_forward.1} parent=67 // pred_fallthru
          _
        // Predicated region
        $region85: #{encoder_forward.1} parent=67 // pred_check
          %p443 = pneg %p240
        $region86: #{encoder_forward.1} parent=67 // pred_check_branch
          %445 = sbr.rel (%p443) target = $region88
        $region87: #{encoder_forward.1} parent=67 // pred_region
          %446 = dma.done [#allocation9], 16
        $region88: #{encoder_forward.1} parent=67 // pred_fallthru
          _
        // Predicated region
        $region89: #{encoder_forward.1} parent=67 // pred_check
          %p447 = pneg %p282
        $region90: #{encoder_forward.1} parent=67 // pred_check_branch
          %449 = sbr.rel (%p447) target = $region92
        $region91: #{encoder_forward.1} parent=67 // pred_region
          %450 = dma.done [#allocation12], 16
        $region92: #{encoder_forward.1} parent=67 // pred_fallthru
          _
        %p451 = scmp.lt.s32.totalorder %s30, 1
        %s452 = scalar_select %p451, %s30, 1
        %s453 = smul.addr %s452, 32
        %s454 = smul.addr %s453, 4
        %s455 = scalar_lea.vmem %s0, %s454
        %p456 = pneg %p51
        %p457 = pneg %p48
        %p458 = pneg %p72
        %p459 = pneg %p69
        %p460 = pneg %p93
        %p461 = pneg %p90
        %p462 = pneg %p114
        %p463 = pneg %p111
        %p464 = pneg %p135
        %p465 = pneg %p132
        %p466 = pneg %p156
        %p467 = pneg %p153
        %p468 = pneg %p177
        %p469 = pneg %p174
        %p470 = pneg %p198
        %p471 = pneg %p195
        %p472 = pneg %p219
        %p473 = pneg %p216
        %p474 = pneg %p240
        %p475 = pneg %p237
        %p476 = pneg %p261
        %p477 = pneg %p258
        %p478 = pneg %p282
        %p479 = pneg %p279
        %p480 = pneg %p308
        %p481 = pneg %p305
        %s482 = sand.u32 %s295, 1
        %s483 = scalar_lea.sflag [#allocation4], %s482
        %s484 = sand.u32 %s295, 1
        %s485 = scalar_lea.vmem [#allocation13], %s484
        %p486 = scmp.lt.s32.totalorder %s30, 1
        %s487 = scalar_select %p486, %s30, 1
        %s488 = smul.addr %s487, 32
        %s489 = smul.addr %s488, 4
        %s490 = scalar_lea.vmem %s0, %s489
        %v492 = vld [vmem:[%s490] sm:$0xf]
        %v493 = vld [vmem:[%s490 + $0x4] sm:$0xf]
        %v494 = vld [vmem:[%s490 + $0x8] sm:$0xf]
        %v495 = vld [vmem:[%s490 + $0xc] sm:$0xf]
        %v496 = vld [vmem:[%s490 + $0x10] sm:$0xf]
        %v497 = vld [vmem:[%s490 + $0x14] sm:$0xf]
        %v498 = vld [vmem:[%s490 + $0x18] sm:$0xf]
        %v499 = vld [vmem:[%s490 + $0x1c] sm:$0xf]
        %v500 = vld [vmem:[%s490 + $0x20] sm:$0xf]
        %v501 = vld [vmem:[%s490 + $0x24] sm:$0xf]
        %v502 = vld [vmem:[%s490 + $0x28] sm:$0xf]
        %v503 = vld [vmem:[%s490 + $0x2c] sm:$0xf]
        %v504 = vld [vmem:[%s490 + $0x30] sm:$0xf]
        %v505 = vld [vmem:[%s490 + $0x34] sm:$0xf]
        %v506 = vld [vmem:[%s490 + $0x38] sm:$0xf]
        %v507 = vld [vmem:[%s490 + $0x3c] sm:$0xf]
        %v508 = vld [vmem:[%s490 + $0x40] sm:$0xf]
        %v509 = vld [vmem:[%s490 + $0x44] sm:$0xf]
        %v510 = vld [vmem:[%s490 + $0x48] sm:$0xf]
        %v511 = vld [vmem:[%s490 + $0x4c] sm:$0xf]
        %v512 = vld [vmem:[%s490 + $0x50] sm:$0xf]
        %v513 = vld [vmem:[%s490 + $0x54] sm:$0xf]
        %v514 = vld [vmem:[%s490 + $0x58] sm:$0xf]
        %v515 = vld [vmem:[%s490 + $0x5c] sm:$0xf]
        %v516 = vld [vmem:[%s490 + $0x60] sm:$0xf]
        %v517 = vld [vmem:[%s490 + $0x64] sm:$0xf]
        %v518 = vld [vmem:[%s490 + $0x68] sm:$0xf]
        %v519 = vld [vmem:[%s490 + $0x6c] sm:$0xf]
        %v520 = vld [vmem:[%s490 + $0x70] sm:$0xf]
        %v521 = vld [vmem:[%s490 + $0x74] sm:$0xf]
        %v522 = vld [vmem:[%s490 + $0x78] sm:$0xf]
        %v523 = vld [vmem:[%s490 + $0x7c] sm:$0xf]
        %v524 = vld [vmem:[%s1] sm:$0xff]
        %v525 = vld [vmem:[%s1 + $0x8] sm:$0xff]
        %v526 = vld [vmem:[%s1 + $0x10] sm:$0xff]
        %v527 = vld [vmem:[%s1 + $0x18] sm:$0xff]
        %v528 = vld [vmem:[%s1 + $0x20] sm:$0xff]
        %v529 = vld [vmem:[%s1 + $0x28] sm:$0xff]
        %v530 = vld [vmem:[%s1 + $0x30] sm:$0xff]
        %v531 = vld [vmem:[%s1 + $0x38] sm:$0xff]
        %v532 = vld [vmem:[%s2] sm:$0x1]
        %v533 = vunpack.c.l.bf16 %v492
        %v534 = vunpack.c.l.bf16 %v493
        %v535 = vunpack.c.l.bf16 %v494
        %v536 = vunpack.c.l.bf16 %v495
        %v537 = vunpack.c.l.bf16 %v496
        %v538 = vunpack.c.l.bf16 %v497
        %v539 = vunpack.c.l.bf16 %v498
        %v540 = vunpack.c.l.bf16 %v499
        %v541 = vunpack.c.l.bf16 %v500
        %v542 = vunpack.c.l.bf16 %v501
        %v543 = vunpack.c.l.bf16 %v502
        %v544 = vunpack.c.l.bf16 %v503
        %v545 = vunpack.c.l.bf16 %v504
        %v546 = vunpack.c.l.bf16 %v505
        %v547 = vunpack.c.l.bf16 %v506
        %v548 = vunpack.c.l.bf16 %v507
        %v549 = vunpack.c.l.bf16 %v508
        %v550 = vunpack.c.l.bf16 %v509
        %v551 = vunpack.c.l.bf16 %v510
        %v552 = vunpack.c.l.bf16 %v511
        %v553 = vunpack.c.l.bf16 %v512
        %v554 = vunpack.c.l.bf16 %v513
        %v555 = vunpack.c.l.bf16 %v514
        %v556 = vunpack.c.l.bf16 %v515
        %v557 = vunpack.c.l.bf16 %v516
        %v558 = vunpack.c.l.bf16 %v517
        %v559 = vunpack.c.l.bf16 %v518
        %v560 = vunpack.c.l.bf16 %v519
        %v561 = vunpack.c.l.bf16 %v520
        %v562 = vunpack.c.l.bf16 %v521
        %v563 = vunpack.c.l.bf16 %v522
        %v564 = vunpack.c.l.bf16 %v523
        %v565 = vunpack.c.l.bf16 %v532
        %567 = vset.pattern.permute.xlu0 0
        %568 = vperm.xlu0 %567, %v533
        %v569 = vpop.permute.xlu0 %568
        %572 = vset.pattern.permute.xlu0 0
        %573 = vperm.xlu0 %572, %v534
        %v574 = vpop.permute.xlu0 %573
        %577 = vset.pattern.permute.xlu0 0
        %578 = vperm.xlu0 %577, %v535
        %v579 = vpop.permute.xlu0 %578
        %582 = vset.pattern.permute.xlu0 0
        %583 = vperm.xlu0 %582, %v536
        %v584 = vpop.permute.xlu0 %583
        %587 = vset.pattern.permute.xlu0 0
        %588 = vperm.xlu0 %587, %v537
        %v589 = vpop.permute.xlu0 %588
        %592 = vset.pattern.permute.xlu0 0
        %593 = vperm.xlu0 %592, %v538
        %v594 = vpop.permute.xlu0 %593
        %597 = vset.pattern.permute.xlu0 0
        %598 = vperm.xlu0 %597, %v539
        %v599 = vpop.permute.xlu0 %598
        %602 = vset.pattern.permute.xlu0 0
        %603 = vperm.xlu0 %602, %v540
        %v604 = vpop.permute.xlu0 %603
        %607 = vset.pattern.permute.xlu0 0
        %608 = vperm.xlu0 %607, %v541
        %v609 = vpop.permute.xlu0 %608
        %612 = vset.pattern.permute.xlu0 0
        %613 = vperm.xlu0 %612, %v542
        %v614 = vpop.permute.xlu0 %613
        %617 = vset.pattern.permute.xlu0 0
        %618 = vperm.xlu0 %617, %v543
        %v619 = vpop.permute.xlu0 %618
        %622 = vset.pattern.permute.xlu0 0
        %623 = vperm.xlu0 %622, %v544
        %v624 = vpop.permute.xlu0 %623
        %627 = vset.pattern.permute.xlu0 0
        %628 = vperm.xlu0 %627, %v545
        %v629 = vpop.permute.xlu0 %628
        %632 = vset.pattern.permute.xlu0 0
        %633 = vperm.xlu0 %632, %v546
        %v634 = vpop.permute.xlu0 %633
        %637 = vset.pattern.permute.xlu0 0
        %638 = vperm.xlu0 %637, %v547
        %v639 = vpop.permute.xlu0 %638
        %642 = vset.pattern.permute.xlu0 0
        %643 = vperm.xlu0 %642, %v548
        %v644 = vpop.permute.xlu0 %643
        %647 = vset.pattern.permute.xlu0 0
        %648 = vperm.xlu0 %647, %v549
        %v649 = vpop.permute.xlu0 %648
        %652 = vset.pattern.permute.xlu0 0
        %653 = vperm.xlu0 %652, %v550
        %v654 = vpop.permute.xlu0 %653
        %657 = vset.pattern.permute.xlu0 0
        %658 = vperm.xlu0 %657, %v551
        %v659 = vpop.permute.xlu0 %658
        %662 = vset.pattern.permute.xlu0 0
        %663 = vperm.xlu0 %662, %v552
        %v664 = vpop.permute.xlu0 %663
        %667 = vset.pattern.permute.xlu0 0
        %668 = vperm.xlu0 %667, %v553
        %v669 = vpop.permute.xlu0 %668
        %672 = vset.pattern.permute.xlu0 0
        %673 = vperm.xlu0 %672, %v554
        %v674 = vpop.permute.xlu0 %673
        %677 = vset.pattern.permute.xlu0 0
        %678 = vperm.xlu0 %677, %v555
        %v679 = vpop.permute.xlu0 %678
        %682 = vset.pattern.permute.xlu0 0
        %683 = vperm.xlu0 %682, %v556
        %v684 = vpop.permute.xlu0 %683
        %687 = vset.pattern.permute.xlu0 0
        %688 = vperm.xlu0 %687, %v557
        %v689 = vpop.permute.xlu0 %688
        %692 = vset.pattern.permute.xlu0 0
        %693 = vperm.xlu0 %692, %v558
        %v694 = vpop.permute.xlu0 %693
        %697 = vset.pattern.permute.xlu0 0
        %698 = vperm.xlu0 %697, %v559
        %v699 = vpop.permute.xlu0 %698
        %702 = vset.pattern.permute.xlu0 0
        %703 = vperm.xlu0 %702, %v560
        %v704 = vpop.permute.xlu0 %703
        %707 = vset.pattern.permute.xlu0 0
        %708 = vperm.xlu0 %707, %v561
        %v709 = vpop.permute.xlu0 %708
        %712 = vset.pattern.permute.xlu0 0
        %713 = vperm.xlu0 %712, %v562
        %v714 = vpop.permute.xlu0 %713
        %717 = vset.pattern.permute.xlu0 0
        %718 = vperm.xlu0 %717, %v563
        %v719 = vpop.permute.xlu0 %718
        %722 = vset.pattern.permute.xlu0 0
        %723 = vperm.xlu0 %722, %v564
        %v724 = vpop.permute.xlu0 %723
        %v726 = vlaneseq
        %v727 = vshrl.u32 %v726, 7
        %v728 = vsub.s32 0, %v727
        %v729 = vrot.slane %v565, %v728
        %v730 = vmul.f32 %v569, %v729
        %v731 = vmul.f32 %v574, %v729
        %v732 = vmul.f32 %v579, %v729
        %v733 = vmul.f32 %v584, %v729
        %v734 = vmul.f32 %v589, %v729
        %v735 = vmul.f32 %v594, %v729
        %v736 = vmul.f32 %v599, %v729
        %v737 = vmul.f32 %v604, %v729
        %v738 = vmul.f32 %v609, %v729
        %v739 = vmul.f32 %v614, %v729
        %v740 = vmul.f32 %v619, %v729
        %v741 = vmul.f32 %v624, %v729
        %v742 = vmul.f32 %v629, %v729
        %v743 = vmul.f32 %v634, %v729
        %v744 = vmul.f32 %v639, %v729
        %v745 = vmul.f32 %v644, %v729
        %v746 = vmul.f32 %v649, %v729
        %v747 = vmul.f32 %v654, %v729
        %v748 = vmul.f32 %v659, %v729
        %v749 = vmul.f32 %v664, %v729
        %v750 = vmul.f32 %v669, %v729
        %v751 = vmul.f32 %v674, %v729
        %v752 = vmul.f32 %v679, %v729
        %v753 = vmul.f32 %v684, %v729
        %v754 = vmul.f32 %v689, %v729
        %v755 = vmul.f32 %v694, %v729
        %v756 = vmul.f32 %v699, %v729
        %v757 = vmul.f32 %v704, %v729
        %v758 = vmul.f32 %v709, %v729
        %v759 = vmul.f32 %v714, %v729
        %v760 = vmul.f32 %v719, %v729
        %v761 = vmul.f32 %v724, %v729
        %v762 = vpack.c.bf16 %v731, %v730
        %v763 = vpack.c.bf16 %v733, %v732
        %v764 = vpack.c.bf16 %v735, %v734
        %v765 = vpack.c.bf16 %v737, %v736
        %v766 = vpack.c.bf16 %v739, %v738
        %v767 = vpack.c.bf16 %v741, %v740
        %v768 = vpack.c.bf16 %v743, %v742
        %v769 = vpack.c.bf16 %v745, %v744
        %v770 = vpack.c.bf16 %v747, %v746
        %v771 = vpack.c.bf16 %v749, %v748
        %v772 = vpack.c.bf16 %v751, %v750
        %v773 = vpack.c.bf16 %v753, %v752
        %v774 = vpack.c.bf16 %v755, %v754
        %v775 = vpack.c.bf16 %v757, %v756
        %v776 = vpack.c.bf16 %v759, %v758
        %v777 = vpack.c.bf16 %v761, %v760
        %s778 = scalar_lea.vmem %s1, 64
        %v779 = vld [vmem:[%s778] sm:$0xff]
        %v780 = vld [vmem:[%s778 + $0x8] sm:$0xff]
        %v781 = vld [vmem:[%s778 + $0x10] sm:$0xff]
        %v782 = vld [vmem:[%s778 + $0x18] sm:$0xff]
        %v783 = vld [vmem:[%s778 + $0x20] sm:$0xff]
        %v784 = vld [vmem:[%s778 + $0x28] sm:$0xff]
        %v785 = vld [vmem:[%s778 + $0x30] sm:$0xff]
        %v786 = vld [vmem:[%s778 + $0x38] sm:$0xff]
        %s787 = scalar_lea.vmem %s2, 1
        %v788 = vld [vmem:[%s787] sm:$0x1]
        %v789 = vunpack.c.l.bf16 %v788
        %v790 = vlaneseq
        %v791 = vshrl.u32 %v790, 7
        %v792 = vsub.s32 0, %v791
        %v793 = vrot.slane %v789, %v792
        %v794 = vmul.f32 %v569, %v793
        %v795 = vmul.f32 %v574, %v793
        %v796 = vmul.f32 %v579, %v793
        %v797 = vmul.f32 %v584, %v793
        %v798 = vmul.f32 %v589, %v793
        %v799 = vmul.f32 %v594, %v793
        %v800 = vmul.f32 %v599, %v793
        %v801 = vmul.f32 %v604, %v793
        %v802 = vmul.f32 %v609, %v793
        %v803 = vmul.f32 %v614, %v793
        %v804 = vmul.f32 %v619, %v793
        %v805 = vmul.f32 %v624, %v793
        %v806 = vmul.f32 %v629, %v793
        %v807 = vmul.f32 %v634, %v793
        %v808 = vmul.f32 %v639, %v793
        %v809 = vmul.f32 %v644, %v793
        %v810 = vmul.f32 %v649, %v793
        %v811 = vmul.f32 %v654, %v793
        %v812 = vmul.f32 %v659, %v793
        %v813 = vmul.f32 %v664, %v793
        %v814 = vmul.f32 %v669, %v793
        %v815 = vmul.f32 %v674, %v793
        %v816 = vmul.f32 %v679, %v793
        %v817 = vmul.f32 %v684, %v793
        %v818 = vmul.f32 %v689, %v793
        %v819 = vmul.f32 %v694, %v793
        %v820 = vmul.f32 %v699, %v793
        %v821 = vmul.f32 %v704, %v793
        %v822 = vmul.f32 %v709, %v793
        %v823 = vmul.f32 %v714, %v793
        %v824 = vmul.f32 %v719, %v793
        %v825 = vmul.f32 %v724, %v793
        %v826 = vpack.c.bf16 %v795, %v794
        %v827 = vpack.c.bf16 %v797, %v796
        %v828 = vpack.c.bf16 %v799, %v798
        %v829 = vpack.c.bf16 %v801, %v800
        %v830 = vpack.c.bf16 %v803, %v802
        %v831 = vpack.c.bf16 %v805, %v804
        %v832 = vpack.c.bf16 %v807, %v806
        %v833 = vpack.c.bf16 %v809, %v808
        %v834 = vpack.c.bf16 %v811, %v810
        %v835 = vpack.c.bf16 %v813, %v812
        %v836 = vpack.c.bf16 %v815, %v814
        %v837 = vpack.c.bf16 %v817, %v816
        %v838 = vpack.c.bf16 %v819, %v818
        %v839 = vpack.c.bf16 %v821, %v820
        %v840 = vpack.c.bf16 %v823, %v822
        %v841 = vpack.c.bf16 %v825, %v824
        %v850 = vunpack.c.l.b16 %v779
        %v851 = vunpack.c.h.b16 %v779
        %v852 = vunpack.c.l.b16 %v780
        %v853 = vunpack.c.h.b16 %v780
        %v854 = vunpack.c.l.b16 %v781
        %v855 = vunpack.c.h.b16 %v781
        %v856 = vunpack.c.l.b16 %v782
        %v857 = vunpack.c.h.b16 %v782
        %v858 = vunpack.c.l.b16 %v783
        %v859 = vunpack.c.h.b16 %v783
        %v860 = vunpack.c.l.b16 %v784
        %v861 = vunpack.c.h.b16 %v784
        %v862 = vunpack.c.l.b16 %v785
        %v863 = vunpack.c.h.b16 %v785
        %v864 = vunpack.c.l.b16 %v786
        %v865 = vunpack.c.h.b16 %v786
        %v866 = vpack.c.b16 %v852, %v850
        %v867 = vpack.c.b16 %v853, %v851
        %v868 = vpack.c.b16 %v856, %v854
        %v869 = vpack.c.b16 %v857, %v855
        %v870 = vpack.c.b16 %v860, %v858
        %v871 = vpack.c.b16 %v861, %v859
        %v872 = vpack.c.b16 %v864, %v862
        %v873 = vpack.c.b16 %v865, %v863
        %882 = vmatprep.subr.bf16.mxu0 0
        %883 = vmatpush1.bf16.msra.mxu0 %v826
        %884 = vmatprep.subr.bf16.mxu0 0
        %885 = vmatpush1.bf16.msra.mxu0 %v827
        %886 = vmatprep.subr.bf16.mxu0 0
        %887 = vmatpush1.bf16.msra.mxu0 %v828
        %888 = vmatprep.subr.bf16.mxu0 0
        %889 = vmatpush1.bf16.msra.mxu0 %v829
        %890 = vmatprep.subr.bf16.mxu0 0
        %891 = vmatpush1.bf16.msra.mxu0 %v830
        %892 = vmatprep.subr.bf16.mxu0 0
        %893 = vmatpush1.bf16.msra.mxu0 %v831
        %894 = vmatprep.subr.bf16.mxu0 0
        %895 = vmatpush1.bf16.msra.mxu0 %v832
        %896 = vmatprep.subr.bf16.mxu0 0
        %897 = vmatpush1.bf16.msra.mxu0 %v833
        %898 = vmatprep.subr.bf16.mxu0 0
        %899 = vmatpush1.bf16.msra.mxu0 %v834
        %900 = vmatprep.subr.bf16.mxu0 0
        %901 = vmatpush1.bf16.msra.mxu0 %v835
        %902 = vmatprep.subr.bf16.mxu0 0
        %903 = vmatpush1.bf16.msra.mxu0 %v836
        %904 = vmatprep.subr.bf16.mxu0 0
        %905 = vmatpush1.bf16.msra.mxu0 %v837
        %906 = vmatprep.subr.bf16.mxu0 0
        %907 = vmatpush1.bf16.msra.mxu0 %v838
        %908 = vmatprep.subr.bf16.mxu0 0
        %909 = vmatpush1.bf16.msra.mxu0 %v839
        %910 = vmatprep.subr.bf16.mxu0 0
        %911 = vmatpush1.bf16.msra.mxu0 %v840
        %912 = vmatprep.subr.bf16.mxu0 0
        %913 = vmatpush1.bf16.msra.mxu0 %v841
        %914 = vmatprep.mubr.bf16.mxu0 %v867
        %915 = vmatmul.mubr.bf16.gmra.mrb[0].mxu0 %v866
        %v916 = vpop.f32.mrb[0].mxu0
        %v917 = vadd.f32 0.0, %v916
        %v918 = vpop.f32.mrb[0].mxu0
        %v919 = vpop.f32.mrb[0].mxu0
        %v920 = vadd.f32 0.0, %v919
        %v921 = vpop.f32.mrb[0].mxu0
        %922 = vmatprep.mubr.bf16.mxu0 %v869
        %923 = vmatmul.mubr.bf16.gmra.mrb[0].mxu0 %v868
        %v924 = vpop.f32.mrb[0].mxu0
        %v925 = vadd.f32 0.0, %v924
        %v926 = vpop.f32.mrb[0].mxu0
        %v927 = vpop.f32.mrb[0].mxu0
        %v928 = vadd.f32 0.0, %v927
        %v929 = vpop.f32.mrb[0].mxu0
        %930 = vmatprep.mubr.bf16.mxu0 %v871
        %931 = vmatmul.mubr.bf16.gmra.mrb[0].mxu0 %v870
        %v932 = vpop.f32.mrb[0].mxu0
        %v933 = vadd.f32 0.0, %v932
        %v934 = vpop.f32.mrb[0].mxu0
        %v935 = vpop.f32.mrb[0].mxu0
        %v936 = vadd.f32 0.0, %v935
        %v937 = vpop.f32.mrb[0].mxu0
        %938 = vmatprep.mubr.bf16.mxu0 %v873
        %939 = vmatmul.mubr.bf16.gmra.mrb[0].mxu0 %v872
        %v940 = vpop.f32.mrb[0].mxu0
        %v941 = vadd.f32 0.0, %v940
        %v942 = vpop.f32.mrb[0].mxu0
        %v943 = vpop.f32.mrb[0].mxu0
        %v944 = vadd.f32 0.0, %v943
        %v945 = vpop.f32.mrb[0].mxu0
        %946 = vdwg.mxu0
        %v955 = vunpack.c.l.b16 %v524
        %v956 = vunpack.c.h.b16 %v524
        %v957 = vunpack.c.l.b16 %v525
        %v958 = vunpack.c.h.b16 %v525
        %v959 = vunpack.c.l.b16 %v526
        %v960 = vunpack.c.h.b16 %v526
        %v961 = vunpack.c.l.b16 %v527
        %v962 = vunpack.c.h.b16 %v527
        %v963 = vunpack.c.l.b16 %v528
        %v964 = vunpack.c.h.b16 %v528
        %v965 = vunpack.c.l.b16 %v529
        %v966 = vunpack.c.h.b16 %v529
        %v967 = vunpack.c.l.b16 %v530
        %v968 = vunpack.c.h.b16 %v530
        %v969 = vunpack.c.l.b16 %v531
        %v970 = vunpack.c.h.b16 %v531
        %v971 = vpack.c.b16 %v957, %v955
        %v972 = vpack.c.b16 %v958, %v956
        %v973 = vpack.c.b16 %v961, %v959
        %v974 = vpack.c.b16 %v962, %v960
        %v975 = vpack.c.b16 %v965, %v963
        %v976 = vpack.c.b16 %v966, %v964
        %v977 = vpack.c.b16 %v969, %v967
        %v978 = vpack.c.b16 %v970, %v968
        %987 = vmatprep.subr.bf16.mxu0 0
        %988 = vmatpush1.bf16.msra.mxu0 %v762
        %989 = vmatprep.subr.bf16.mxu0 0
        %990 = vmatpush1.bf16.msra.mxu0 %v763
        %991 = vmatprep.subr.bf16.mxu0 0
        %992 = vmatpush1.bf16.msra.mxu0 %v764
        %993 = vmatprep.subr.bf16.mxu0 0
        %994 = vmatpush1.bf16.msra.mxu0 %v765
        %995 = vmatprep.subr.bf16.mxu0 0
        %996 = vmatpush1.bf16.msra.mxu0 %v766
        %997 = vmatprep.subr.bf16.mxu0 0
        %998 = vmatpush1.bf16.msra.mxu0 %v767
        %999 = vmatprep.subr.bf16.mxu0 0
        %1000 = vmatpush1.bf16.msra.mxu0 %v768
        %1001 = vmatprep.subr.bf16.mxu0 0
        %1002 = vmatpush1.bf16.msra.mxu0 %v769
        %1003 = vmatprep.subr.bf16.mxu0 0
        %1004 = vmatpush1.bf16.msra.mxu0 %v770
        %1005 = vmatprep.subr.bf16.mxu0 0
        %1006 = vmatpush1.bf16.msra.mxu0 %v771
        %1007 = vmatprep.subr.bf16.mxu0 0
        %1008 = vmatpush1.bf16.msra.mxu0 %v772
        %1009 = vmatprep.subr.bf16.mxu0 0
        %1010 = vmatpush1.bf16.msra.mxu0 %v773
        %1011 = vmatprep.subr.bf16.mxu0 0
        %1012 = vmatpush1.bf16.msra.mxu0 %v774
        %1013 = vmatprep.subr.bf16.mxu0 0
        %1014 = vmatpush1.bf16.msra.mxu0 %v775
        %1015 = vmatprep.subr.bf16.mxu0 0
        %1016 = vmatpush1.bf16.msra.mxu0 %v776
        %1017 = vmatprep.subr.bf16.mxu0 0
        %1018 = vmatpush1.bf16.msra.mxu0 %v777
        %1019 = vmatprep.mubr.bf16.mxu0 %v972
        %1020 = vmatmul.mubr.bf16.gmra.mrb[0].mxu0 %v971
        %v1021 = vpop.f32.mrb[0].mxu0
        %v1022 = vadd.f32 %v917, %v1021
        %v1023 = vpop.f32.mrb[0].mxu0
        %v1024 = vpop.f32.mrb[0].mxu0
        %v1025 = vadd.f32 %v920, %v1024
        %v1026 = vpop.f32.mrb[0].mxu0
        %1027 = vmatprep.mubr.bf16.mxu0 %v974
        %1028 = vmatmul.mubr.bf16.gmra.mrb[0].mxu0 %v973
        %v1029 = vpop.f32.mrb[0].mxu0
        %v1030 = vadd.f32 %v925, %v1029
        %v1031 = vpop.f32.mrb[0].mxu0
        %v1032 = vpop.f32.mrb[0].mxu0
        %v1033 = vadd.f32 %v928, %v1032
        %v1034 = vpop.f32.mrb[0].mxu0
        %1035 = vmatprep.mubr.bf16.mxu0 %v976
        %1036 = vmatmul.mubr.bf16.gmra.mrb[0].mxu0 %v975
        %v1037 = vpop.f32.mrb[0].mxu0
        %v1038 = vadd.f32 %v933, %v1037
        %v1039 = vpop.f32.mrb[0].mxu0
        %v1040 = vpop.f32.mrb[0].mxu0
        %v1041 = vadd.f32 %v936, %v1040
        %v1042 = vpop.f32.mrb[0].mxu0
        %1043 = vmatprep.mubr.bf16.mxu0 %v978
        %1044 = vmatmul.mubr.bf16.gmra.mrb[0].mxu0 %v977
        %v1045 = vpop.f32.mrb[0].mxu0
        %v1046 = vadd.f32 %v941, %v1045
        %v1047 = vpop.f32.mrb[0].mxu0
        %v1048 = vpop.f32.mrb[0].mxu0
        %v1049 = vadd.f32 %v944, %v1048
        %v1050 = vpop.f32.mrb[0].mxu0
        %1051 = vdwg.mxu0
        %s1052 = scalar_lea.vmem %s1, 128
        %v1053 = vld [vmem:[%s1052] sm:$0xff]
        %v1054 = vld [vmem:[%s1052 + $0x8] sm:$0xff]
        %v1055 = vld [vmem:[%s1052 + $0x10] sm:$0xff]
        %v1056 = vld [vmem:[%s1052 + $0x18] sm:$0xff]
        %v1057 = vld [vmem:[%s1052 + $0x20] sm:$0xff]
        %v1058 = vld [vmem:[%s1052 + $0x28] sm:$0xff]
        %v1059 = vld [vmem:[%s1052 + $0x30] sm:$0xff]
        %v1060 = vld [vmem:[%s1052 + $0x38] sm:$0xff]
        %s1061 = scalar_lea.vmem %s2, 2
        %v1062 = vld [vmem:[%s1061] sm:$0x1]
        %v1063 = vunpack.c.l.bf16 %v1062
        %v1064 = vlaneseq
        %v1065 = vshrl.u32 %v1064, 7
        %v1066 = vsub.s32 0, %v1065
        %v1067 = vrot.slane %v1063, %v1066
        %v1068 = vmul.f32 %v569, %v1067
        %v1069 = vmul.f32 %v574, %v1067
        %v1070 = vmul.f32 %v579, %v1067
        %v1071 = vmul.f32 %v584, %v1067
        %v1072 = vmul.f32 %v589, %v1067
        %v1073 = vmul.f32 %v594, %v1067
        %v1074 = vmul.f32 %v599, %v1067
        %v1075 = vmul.f32 %v604, %v1067
        %v1076 = vmul.f32 %v609, %v1067
        %v1077 = vmul.f32 %v614, %v1067
        %v1078 = vmul.f32 %v619, %v1067
        %v1079 = vmul.f32 %v624, %v1067
        %v1080 = vmul.f32 %v629, %v1067
        %v1081 = vmul.f32 %v634, %v1067
        %v1082 = vmul.f32 %v639, %v1067
        %v1083 = vmul.f32 %v644, %v1067
        %v1084 = vmul.f32 %v649, %v1067
        %v1085 = vmul.f32 %v654, %v1067
        %v1086 = vmul.f32 %v659, %v1067
        %v1087 = vmul.f32 %v664, %v1067
        %v1088 = vmul.f32 %v669, %v1067
        %v1089 = vmul.f32 %v674, %v1067
        %v1090 = vmul.f32 %v679, %v1067
        %v1091 = vmul.f32 %v684, %v1067
        %v1092 = vmul.f32 %v689, %v1067
        %v1093 = vmul.f32 %v694, %v1067
        %v1094 = vmul.f32 %v699, %v1067
        %v1095 = vmul.f32 %v704, %v1067
        %v1096 = vmul.f32 %v709, %v1067
        %v1097 = vmul.f32 %v714, %v1067
        %v1098 = vmul.f32 %v719, %v1067
        %v1099 = vmul.f32 %v724, %v1067
        %v1100 = vpack.c.bf16 %v1069, %v1068
        %v1101 = vpack.c.bf16 %v1071, %v1070
        %v1102 = vpack.c.bf16 %v1073, %v1072
        %v1103 = vpack.c.bf16 %v1075, %v1074
        %v1104 = vpack.c.bf16 %v1077, %v1076
        %v1105 = vpack.c.bf16 %v1079, %v1078
        %v1106 = vpack.c.bf16 %v1081, %v1080
        %v1107 = vpack.c.bf16 %v1083, %v1082
        %v1108 = vpack.c.bf16 %v1085, %v1084
        %v1109 = vpack.c.bf16 %v1087, %v1086
        %v1110 = vpack.c.bf16 %v1089, %v1088
        %v1111 = vpack.c.bf16 %v1091, %v1090
        %v1112 = vpack.c.bf16 %v1093, %v1092
        %v1113 = vpack.c.bf16 %v1095, %v1094
        %v1114 = vpack.c.bf16 %v1097, %v1096
        %v1115 = vpack.c.bf16 %v1099, %v1098
        %v1124 = vunpack.c.l.b16 %v1053
        %v1125 = vunpack.c.h.b16 %v1053
        %v1126 = vunpack.c.l.b16 %v1054
        %v1127 = vunpack.c.h.b16 %v1054
        %v1128 = vunpack.c.l.b16 %v1055
        %v1129 = vunpack.c.h.b16 %v1055
        %v1130 = vunpack.c.l.b16 %v1056
        %v1131 = vunpack.c.h.b16 %v1056
        %v1132 = vunpack.c.l.b16 %v1057
        %v1133 = vunpack.c.h.b16 %v1057
        %v1134 = vunpack.c.l.b16 %v1058
        %v1135 = vunpack.c.h.b16 %v1058
        %v1136 = vunpack.c.l.b16 %v1059
        %v1137 = vunpack.c.h.b16 %v1059
        %v1138 = vunpack.c.l.b16 %v1060
        %v1139 = vunpack.c.h.b16 %v1060
        %v1140 = vpack.c.b16 %v1126, %v1124
        %v1141 = vpack.c.b16 %v1127, %v1125
        %v1142 = vpack.c.b16 %v1130, %v1128
        %v1143 = vpack.c.b16 %v1131, %v1129
        %v1144 = vpack.c.b16 %v1134, %v1132
        %v1145 = vpack.c.b16 %v1135, %v1133
        %v1146 = vpack.c.b16 %v1138, %v1136
        %v1147 = vpack.c.b16 %v1139, %v1137
        %1156 = vmatprep.subr.bf16.mxu0 0
        %1157 = vmatpush1.bf16.msra.mxu0 %v1100
        %1158 = vmatprep.subr.bf16.mxu0 0
        %1159 = vmatpush1.bf16.msra.mxu0 %v1101
        %1160 = vmatprep.subr.bf16.mxu0 0
        %1161 = vmatpush1.bf16.msra.mxu0 %v1102
        %1162 = vmatprep.subr.bf16.mxu0 0
        %1163 = vmatpush1.bf16.msra.mxu0 %v1103
        %1164 = vmatprep.subr.bf16.mxu0 0
        %1165 = vmatpush1.bf16.msra.mxu0 %v1104
        %1166 = vmatprep.subr.bf16.mxu0 0
        %1167 = vmatpush1.bf16.msra.mxu0 %v1105
        %1168 = vmatprep.subr.bf16.mxu0 0
        %1169 = vmatpush1.bf16.msra.mxu0 %v1106
        %1170 = vmatprep.subr.bf16.mxu0 0
        %1171 = vmatpush1.bf16.msra.mxu0 %v1107
        %1172 = vmatprep.subr.bf16.mxu0 0
        %1173 = vmatpush1.bf16.msra.mxu0 %v1108
        %1174 = vmatprep.subr.bf16.mxu0 0
        %1175 = vmatpush1.bf16.msra.mxu0 %v1109
        %1176 = vmatprep.subr.bf16.mxu0 0
        %1177 = vmatpush1.bf16.msra.mxu0 %v1110
        %1178 = vmatprep.subr.bf16.mxu0 0
        %1179 = vmatpush1.bf16.msra.mxu0 %v1111
        %1180 = vmatprep.subr.bf16.mxu0 0
        %1181 = vmatpush1.bf16.msra.mxu0 %v1112
        %1182 = vmatprep.subr.bf16.mxu0 0
        %1183 = vmatpush1.bf16.msra.mxu0 %v1113
        %1184 = vmatprep.subr.bf16.mxu0 0
        %1185 = vmatpush1.bf16.msra.mxu0 %v1114
        %1186 = vmatprep.subr.bf16.mxu0 0
        %1187 = vmatpush1.bf16.msra.mxu0 %v1115
        %1188 = vmatprep.mubr.bf16.mxu0 %v1141
        %1189 = vmatmul.mubr.bf16.gmra.mrb[0].mxu0 %v1140
        %v1190 = vpop.f32.mrb[0].mxu0
        %v1191 = vadd.f32 0.0, %v1190
        %v1192 = vpop.f32.mrb[0].mxu0
        %v1193 = vpop.f32.mrb[0].mxu0
        %v1194 = vadd.f32 0.0, %v1193
        %v1195 = vpop.f32.mrb[0].mxu0
        %1196 = vmatprep.mubr.bf16.mxu0 %v1143
        %1197 = vmatmul.mubr.bf16.gmra.mrb[0].mxu0 %v1142
        %v1198 = vpop.f32.mrb[0].mxu0
        %v1199 = vadd.f32 0.0, %v1198
        %v1200 = vpop.f32.mrb[0].mxu0
        %v1201 = vpop.f32.mrb[0].mxu0
        %v1202 = vadd.f32 0.0, %v1201
        %v1203 = vpop.f32.mrb[0].mxu0
        %1204 = vmatprep.mubr.bf16.mxu0 %v1145
        %1205 = vmatmul.mubr.bf16.gmra.mrb[0].mxu0 %v1144
        %v1206 = vpop.f32.mrb[0].mxu0
        %v1207 = vadd.f32 0.0, %v1206
        %v1208 = vpop.f32.mrb[0].mxu0
        %v1209 = vpop.f32.mrb[0].mxu0
        %v1210 = vadd.f32 0.0, %v1209
        %v1211 = vpop.f32.mrb[0].mxu0
        %1212 = vmatprep.mubr.bf16.mxu0 %v1147
        %1213 = vmatmul.mubr.bf16.gmra.mrb[0].mxu0 %v1146
        %v1214 = vpop.f32.mrb[0].mxu0
        %v1215 = vadd.f32 0.0, %v1214
        %v1216 = vpop.f32.mrb[0].mxu0
        %v1217 = vpop.f32.mrb[0].mxu0
        %v1218 = vadd.f32 0.0, %v1217
        %v1219 = vpop.f32.mrb[0].mxu0
        %1220 = vdwg.mxu0
        %v1221 = vadd.f32 %v1022, %v1191
        %v1222 = vadd.f32 %v1025, %v1194
        %v1223 = vadd.f32 %v1030, %v1199
        %v1224 = vadd.f32 %v1033, %v1202
        %v1225 = vadd.f32 %v1038, %v1207
        %v1226 = vadd.f32 %v1041, %v1210
        %v1227 = vadd.f32 %v1046, %v1215
        %v1228 = vadd.f32 %v1049, %v1218
        %s1229 = scalar_lea.vmem %s1, 192
        %v1230 = vld [vmem:[%s1229] sm:$0xff]
        %v1231 = vld [vmem:[%s1229 + $0x8] sm:$0xff]
        %v1232 = vld [vmem:[%s1229 + $0x10] sm:$0xff]
        %v1233 = vld [vmem:[%s1229 + $0x18] sm:$0xff]
        %v1234 = vld [vmem:[%s1229 + $0x20] sm:$0xff]
        %v1235 = vld [vmem:[%s1229 + $0x28] sm:$0xff]
        %v1236 = vld [vmem:[%s1229 + $0x30] sm:$0xff]
        %v1237 = vld [vmem:[%s1229 + $0x38] sm:$0xff]
        %s1238 = scalar_lea.vmem %s2, 3
        %v1239 = vld [vmem:[%s1238] sm:$0x1]
        %v1240 = vunpack.c.l.bf16 %v1239
        %v1241 = vlaneseq
        %v1242 = vshrl.u32 %v1241, 7
        %v1243 = vsub.s32 0, %v1242
        %v1244 = vrot.slane %v1240, %v1243
        %v1245 = vmul.f32 %v569, %v1244
        %v1246 = vmul.f32 %v574, %v1244
        %v1247 = vmul.f32 %v579, %v1244
        %v1248 = vmul.f32 %v584, %v1244
        %v1249 = vmul.f32 %v589, %v1244
        %v1250 = vmul.f32 %v594, %v1244
        %v1251 = vmul.f32 %v599, %v1244
        %v1252 = vmul.f32 %v604, %v1244
        %v1253 = vmul.f32 %v609, %v1244
        %v1254 = vmul.f32 %v614, %v1244
        %v1255 = vmul.f32 %v619, %v1244
        %v1256 = vmul.f32 %v624, %v1244
        %v1257 = vmul.f32 %v629, %v1244
        %v1258 = vmul.f32 %v634, %v1244
        %v1259 = vmul.f32 %v639, %v1244
        %v1260 = vmul.f32 %v644, %v1244
        %v1261 = vmul.f32 %v649, %v1244
        %v1262 = vmul.f32 %v654, %v1244
        %v1263 = vmul.f32 %v659, %v1244
        %v1264 = vmul.f32 %v664, %v1244
        %v1265 = vmul.f32 %v669, %v1244
        %v1266 = vmul.f32 %v674, %v1244
        %v1267 = vmul.f32 %v679, %v1244
        %v1268 = vmul.f32 %v684, %v1244
        %v1269 = vmul.f32 %v689, %v1244
        %v1270 = vmul.f32 %v694, %v1244
        %v1271 = vmul.f32 %v699, %v1244
        %v1272 = vmul.f32 %v704, %v1244
        %v1273 = vmul.f32 %v709, %v1244
        %v1274 = vmul.f32 %v714, %v1244
        %v1275 = vmul.f32 %v719, %v1244
        %v1276 = vmul.f32 %v724, %v1244
        %v1277 = vpack.c.bf16 %v1246, %v1245
        %v1278 = vpack.c.bf16 %v1248, %v1247
        %v1279 = vpack.c.bf16 %v1250, %v1249
        %v1280 = vpack.c.bf16 %v1252, %v1251
        %v1281 = vpack.c.bf16 %v1254, %v1253
        %v1282 = vpack.c.bf16 %v1256, %v1255
        %v1283 = vpack.c.bf16 %v1258, %v1257
        %v1284 = vpack.c.bf16 %v1260, %v1259
        %v1285 = vpack.c.bf16 %v1262, %v1261
        %v1286 = vpack.c.bf16 %v1264, %v1263
        %v1287 = vpack.c.bf16 %v1266, %v1265
        %v1288 = vpack.c.bf16 %v1268, %v1267
        %v1289 = vpack.c.bf16 %v1270, %v1269
        %v1290 = vpack.c.bf16 %v1272, %v1271
        %v1291 = vpack.c.bf16 %v1274, %v1273
        %v1292 = vpack.c.bf16 %v1276, %v1275
        %v1301 = vunpack.c.l.b16 %v1230
        %v1302 = vunpack.c.h.b16 %v1230
        %v1303 = vunpack.c.l.b16 %v1231
        %v1304 = vunpack.c.h.b16 %v1231
        %v1305 = vunpack.c.l.b16 %v1232
        %v1306 = vunpack.c.h.b16 %v1232
        %v1307 = vunpack.c.l.b16 %v1233
        %v1308 = vunpack.c.h.b16 %v1233
        %v1309 = vunpack.c.l.b16 %v1234
        %v1310 = vunpack.c.h.b16 %v1234
        %v1311 = vunpack.c.l.b16 %v1235
        %v1312 = vunpack.c.h.b16 %v1235
        %v1313 = vunpack.c.l.b16 %v1236
        %v1314 = vunpack.c.h.b16 %v1236
        %v1315 = vunpack.c.l.b16 %v1237
        %v1316 = vunpack.c.h.b16 %v1237
        %v1317 = vpack.c.b16 %v1303, %v1301
        %v1318 = vpack.c.b16 %v1304, %v1302
        %v1319 = vpack.c.b16 %v1307, %v1305
        %v1320 = vpack.c.b16 %v1308, %v1306
        %v1321 = vpack.c.b16 %v1311, %v1309
        %v1322 = vpack.c.b16 %v1312, %v1310
        %v1323 = vpack.c.b16 %v1315, %v1313
        %v1324 = vpack.c.b16 %v1316, %v1314
        %1333 = vmatprep.subr.bf16.mxu0 0
        %1334 = vmatpush1.bf16.msra.mxu0 %v1277
        %1335 = vmatprep.subr.bf16.mxu0 0
        %1336 = vmatpush1.bf16.msra.mxu0 %v1278
        %1337 = vmatprep.subr.bf16.mxu0 0
        %1338 = vmatpush1.bf16.msra.mxu0 %v1279
        %1339 = vmatprep.subr.bf16.mxu0 0
        %1340 = vmatpush1.bf16.msra.mxu0 %v1280
        %1341 = vmatprep.subr.bf16.mxu0 0
        %1342 = vmatpush1.bf16.msra.mxu0 %v1281
        %1343 = vmatprep.subr.bf16.mxu0 0
        %1344 = vmatpush1.bf16.msra.mxu0 %v1282
        %1345 = vmatprep.subr.bf16.mxu0 0
        %1346 = vmatpush1.bf16.msra.mxu0 %v1283
        %1347 = vmatprep.subr.bf16.mxu0 0
        %1348 = vmatpush1.bf16.msra.mxu0 %v1284
        %1349 = vmatprep.subr.bf16.mxu0 0
        %1350 = vmatpush1.bf16.msra.mxu0 %v1285
        %1351 = vmatprep.subr.bf16.mxu0 0
        %1352 = vmatpush1.bf16.msra.mxu0 %v1286
        %1353 = vmatprep.subr.bf16.mxu0 0
        %1354 = vmatpush1.bf16.msra.mxu0 %v1287
        %1355 = vmatprep.subr.bf16.mxu0 0
        %1356 = vmatpush1.bf16.msra.mxu0 %v1288
        %1357 = vmatprep.subr.bf16.mxu0 0
        %1358 = vmatpush1.bf16.msra.mxu0 %v1289
        %1359 = vmatprep.subr.bf16.mxu0 0
        %1360 = vmatpush1.bf16.msra.mxu0 %v1290
        %1361 = vmatprep.subr.bf16.mxu0 0
        %1362 = vmatpush1.bf16.msra.mxu0 %v1291
        %1363 = vmatprep.subr.bf16.mxu0 0
        %1364 = vmatpush1.bf16.msra.mxu0 %v1292
        %1365 = vmatprep.mubr.bf16.mxu0 %v1318
        %1366 = vmatmul.mubr.bf16.gmra.mrb[0].mxu0 %v1317
        %v1367 = vpop.f32.mrb[0].mxu0
        %v1368 = vadd.f32 0.0, %v1367
        %v1369 = vpop.f32.mrb[0].mxu0
        %v1370 = vpop.f32.mrb[0].mxu0
        %v1371 = vadd.f32 0.0, %v1370
        %v1372 = vpop.f32.mrb[0].mxu0
        %1373 = vmatprep.mubr.bf16.mxu0 %v1320
        %1374 = vmatmul.mubr.bf16.gmra.mrb[0].mxu0 %v1319
        %v1375 = vpop.f32.mrb[0].mxu0
        %v1376 = vadd.f32 0.0, %v1375
        %v1377 = vpop.f32.mrb[0].mxu0
        %v1378 = vpop.f32.mrb[0].mxu0
        %v1379 = vadd.f32 0.0, %v1378
        %v1380 = vpop.f32.mrb[0].mxu0
        %1381 = vmatprep.mubr.bf16.mxu0 %v1322
        %1382 = vmatmul.mubr.bf16.gmra.mrb[0].mxu0 %v1321
        %v1383 = vpop.f32.mrb[0].mxu0
        %v1384 = vadd.f32 0.0, %v1383
        %v1385 = vpop.f32.mrb[0].mxu0
        %v1386 = vpop.f32.mrb[0].mxu0
        %v1387 = vadd.f32 0.0, %v1386
        %v1388 = vpop.f32.mrb[0].mxu0
        %1389 = vmatprep.mubr.bf16.mxu0 %v1324
        %1390 = vmatmul.mubr.bf16.gmra.mrb[0].mxu0 %v1323
        %v1391 = vpop.f32.mrb[0].mxu0
        %v1392 = vadd.f32 0.0, %v1391
        %v1393 = vpop.f32.mrb[0].mxu0
        %v1394 = vpop.f32.mrb[0].mxu0
        %v1395 = vadd.f32 0.0, %v1394
        %v1396 = vpop.f32.mrb[0].mxu0
        %1397 = vdwg.mxu0
        %v1398 = vadd.f32 %v1221, %v1368
        %v1399 = vadd.f32 %v1222, %v1371
        %v1400 = vadd.f32 %v1223, %v1376
        %v1401 = vadd.f32 %v1224, %v1379
        %v1402 = vadd.f32 %v1225, %v1384
        %v1403 = vadd.f32 %v1226, %v1387
        %v1404 = vadd.f32 %v1227, %v1392
        %v1405 = vadd.f32 %v1228, %v1395
        %s1406 = scalar_lea.vmem %s1, 256
        %v1407 = vld [vmem:[%s1406] sm:$0xff]
        %v1408 = vld [vmem:[%s1406 + $0x8] sm:$0xff]
        %v1409 = vld [vmem:[%s1406 + $0x10] sm:$0xff]
        %v1410 = vld [vmem:[%s1406 + $0x18] sm:$0xff]
        %v1411 = vld [vmem:[%s1406 + $0x20] sm:$0xff]
        %v1412 = vld [vmem:[%s1406 + $0x28] sm:$0xff]
        %v1413 = vld [vmem:[%s1406 + $0x30] sm:$0xff]
        %v1414 = vld [vmem:[%s1406 + $0x38] sm:$0xff]
        %s1415 = scalar_lea.vmem %s2, 4
        %v1416 = vld [vmem:[%s1415] sm:$0x1]
        %v1417 = vunpack.c.l.bf16 %v1416
        %v1418 = vlaneseq
        %v1419 = vshrl.u32 %v1418, 7
        %v1420 = vsub.s32 0, %v1419
        %v1421 = vrot.slane %v1417, %v1420
        %v1422 = vmul.f32 %v569, %v1421
        %v1423 = vmul.f32 %v574, %v1421
        %v1424 = vmul.f32 %v579, %v1421
        %v1425 = vmul.f32 %v584, %v1421
        %v1426 = vmul.f32 %v589, %v1421
        %v1427 = vmul.f32 %v594, %v1421
        %v1428 = vmul.f32 %v599, %v1421
        %v1429 = vmul.f32 %v604, %v1421
        %v1430 = vmul.f32 %v609, %v1421
        %v1431 = vmul.f32 %v614, %v1421
        %v1432 = vmul.f32 %v619, %v1421
        %v1433 = vmul.f32 %v624, %v1421
        %v1434 = vmul.f32 %v629, %v1421
        %v1435 = vmul.f32 %v634, %v1421
        %v1436 = vmul.f32 %v639, %v1421
        %v1437 = vmul.f32 %v644, %v1421
        %v1438 = vmul.f32 %v649, %v1421
        %v1439 = vmul.f32 %v654, %v1421
        %v1440 = vmul.f32 %v659, %v1421
        %v1441 = vmul.f32 %v664, %v1421
        %v1442 = vmul.f32 %v669, %v1421
        %v1443 = vmul.f32 %v674, %v1421
        %v1444 = vmul.f32 %v679, %v1421
        %v1445 = vmul.f32 %v684, %v1421
        %v1446 = vmul.f32 %v689, %v1421
        %v1447 = vmul.f32 %v694, %v1421
        %v1448 = vmul.f32 %v699, %v1421
        %v1449 = vmul.f32 %v704, %v1421
        %v1450 = vmul.f32 %v709, %v1421
        %v1451 = vmul.f32 %v714, %v1421
        %v1452 = vmul.f32 %v719, %v1421
        %v1453 = vmul.f32 %v724, %v1421
        %v1454 = vpack.c.bf16 %v1423, %v1422
        %v1455 = vpack.c.bf16 %v1425, %v1424
        %v1456 = vpack.c.bf16 %v1427, %v1426
        %v1457 = vpack.c.bf16 %v1429, %v1428
        %v1458 = vpack.c.bf16 %v1431, %v1430
        %v1459 = vpack.c.bf16 %v1433, %v1432
        %v1460 = vpack.c.bf16 %v1435, %v1434
        %v1461 = vpack.c.bf16 %v1437, %v1436
        %v1462 = vpack.c.bf16 %v1439, %v1438
        %v1463 = vpack.c.bf16 %v1441, %v1440
        %v1464 = vpack.c.bf16 %v1443, %v1442
        %v1465 = vpack.c.bf16 %v1445, %v1444
        %v1466 = vpack.c.bf16 %v1447, %v1446
        %v1467 = vpack.c.bf16 %v1449, %v1448
        %v1468 = vpack.c.bf16 %v1451, %v1450
        %v1469 = vpack.c.bf16 %v1453, %v1452
        %v1478 = vunpack.c.l.b16 %v1407
        %v1479 = vunpack.c.h.b16 %v1407
        %v1480 = vunpack.c.l.b16 %v1408
        %v1481 = vunpack.c.h.b16 %v1408
        %v1482 = vunpack.c.l.b16 %v1409
        %v1483 = vunpack.c.h.b16 %v1409
        %v1484 = vunpack.c.l.b16 %v1410
        %v1485 = vunpack.c.h.b16 %v1410
        %v1486 = vunpack.c.l.b16 %v1411
        %v1487 = vunpack.c.h.b16 %v1411
        %v1488 = vunpack.c.l.b16 %v1412
        %v1489 = vunpack.c.h.b16 %v1412
        %v1490 = vunpack.c.l.b16 %v1413
        %v1491 = vunpack.c.h.b16 %v1413
        %v1492 = vunpack.c.l.b16 %v1414
        %v1493 = vunpack.c.h.b16 %v1414
        %v1494 = vpack.c.b16 %v1480, %v1478
        %v1495 = vpack.c.b16 %v1481, %v1479
        %v1496 = vpack.c.b16 %v1484, %v1482
        %v1497 = vpack.c.b16 %v1485, %v1483
        %v1498 = vpack.c.b16 %v1488, %v1486
        %v1499 = vpack.c.b16 %v1489, %v1487
        %v1500 = vpack.c.b16 %v1492, %v1490
        %v1501 = vpack.c.b16 %v1493, %v1491
        %1510 = vmatprep.subr.bf16.mxu0 0
        %1511 = vmatpush1.bf16.msra.mxu0 %v1454
        %1512 = vmatprep.subr.bf16.mxu0 0
        %1513 = vmatpush1.bf16.msra.mxu0 %v1455
        %1514 = vmatprep.subr.bf16.mxu0 0
        %1515 = vmatpush1.bf16.msra.mxu0 %v1456
        %1516 = vmatprep.subr.bf16.mxu0 0
        %1517 = vmatpush1.bf16.msra.mxu0 %v1457
        %1518 = vmatprep.subr.bf16.mxu0 0
        %1519 = vmatpush1.bf16.msra.mxu0 %v1458
        %1520 = vmatprep.subr.bf16.mxu0 0
        %1521 = vmatpush1.bf16.msra.mxu0 %v1459
        %1522 = vmatprep.subr.bf16.mxu0 0
        %1523 = vmatpush1.bf16.msra.mxu0 %v1460
        %1524 = vmatprep.subr.bf16.mxu0 0
        %1525 = vmatpush1.bf16.msra.mxu0 %v1461
        %1526 = vmatprep.subr.bf16.mxu0 0
        %1527 = vmatpush1.bf16.msra.mxu0 %v1462
        %1528 = vmatprep.subr.bf16.mxu0 0
        %1529 = vmatpush1.bf16.msra.mxu0 %v1463
        %1530 = vmatprep.subr.bf16.mxu0 0
        %1531 = vmatpush1.bf16.msra.mxu0 %v1464
        %1532 = vmatprep.subr.bf16.mxu0 0
        %1533 = vmatpush1.bf16.msra.mxu0 %v1465
        %1534 = vmatprep.subr.bf16.mxu0 0
        %1535 = vmatpush1.bf16.msra.mxu0 %v1466
        %1536 = vmatprep.subr.bf16.mxu0 0
        %1537 = vmatpush1.bf16.msra.mxu0 %v1467
        %1538 = vmatprep.subr.bf16.mxu0 0
        %1539 = vmatpush1.bf16.msra.mxu0 %v1468
        %1540 = vmatprep.subr.bf16.mxu0 0
        %1541 = vmatpush1.bf16.msra.mxu0 %v1469
        %1542 = vmatprep.mubr.bf16.mxu0 %v1495
        %1543 = vmatmul.mubr.bf16.gmra.mrb[0].mxu0 %v1494
        %v1544 = vpop.f32.mrb[0].mxu0
        %v1545 = vadd.f32 0.0, %v1544
        %v1546 = vpop.f32.mrb[0].mxu0
        %v1547 = vpop.f32.mrb[0].mxu0
        %v1548 = vadd.f32 0.0, %v1547
        %v1549 = vpop.f32.mrb[0].mxu0
        %1550 = vmatprep.mubr.bf16.mxu0 %v1497
        %1551 = vmatmul.mubr.bf16.gmra.mrb[0].mxu0 %v1496
        %v1552 = vpop.f32.mrb[0].mxu0
        %v1553 = vadd.f32 0.0, %v1552
        %v1554 = vpop.f32.mrb[0].mxu0
        %v1555 = vpop.f32.mrb[0].mxu0
        %v1556 = vadd.f32 0.0, %v1555
        %v1557 = vpop.f32.mrb[0].mxu0
        %1558 = vmatprep.mubr.bf16.mxu0 %v1499
        %1559 = vmatmul.mubr.bf16.gmra.mrb[0].mxu0 %v1498
        %v1560 = vpop.f32.mrb[0].mxu0
        %v1561 = vadd.f32 0.0, %v1560
        %v1562 = vpop.f32.mrb[0].mxu0
        %v1563 = vpop.f32.mrb[0].mxu0
        %v1564 = vadd.f32 0.0, %v1563
        %v1565 = vpop.f32.mrb[0].mxu0
        %1566 = vmatprep.mubr.bf16.mxu0 %v1501
        %1567 = vmatmul.mubr.bf16.gmra.mrb[0].mxu0 %v1500
        %v1568 = vpop.f32.mrb[0].mxu0
        %v1569 = vadd.f32 0.0, %v1568
        %v1570 = vpop.f32.mrb[0].mxu0
        %v1571 = vpop.f32.mrb[0].mxu0
        %v1572 = vadd.f32 0.0, %v1571
        %v1573 = vpop.f32.mrb[0].mxu0
        %1574 = vdwg.mxu0
        %v1575 = vadd.f32 %v1398, %v1545
        %v1576 = vadd.f32 %v1399, %v1548
        %v1577 = vadd.f32 %v1400, %v1553
        %v1578 = vadd.f32 %v1401, %v1556
        %v1579 = vadd.f32 %v1402, %v1561
        %v1580 = vadd.f32 %v1403, %v1564
        %v1581 = vadd.f32 %v1404, %v1569
        %v1582 = vadd.f32 %v1405, %v1572
        %s1583 = scalar_lea.vmem %s1, 320
        %v1584 = vld [vmem:[%s1583] sm:$0xff]
        %v1585 = vld [vmem:[%s1583 + $0x8] sm:$0xff]
        %v1586 = vld [vmem:[%s1583 + $0x10] sm:$0xff]
        %v1587 = vld [vmem:[%s1583 + $0x18] sm:$0xff]
        %v1588 = vld [vmem:[%s1583 + $0x20] sm:$0xff]
        %v1589 = vld [vmem:[%s1583 + $0x28] sm:$0xff]
        %v1590 = vld [vmem:[%s1583 + $0x30] sm:$0xff]
        %v1591 = vld [vmem:[%s1583 + $0x38] sm:$0xff]
        %s1592 = scalar_lea.vmem %s2, 5
        %v1593 = vld [vmem:[%s1592] sm:$0x1]
        %v1594 = vunpack.c.l.bf16 %v1593
        %v1595 = vlaneseq
        %v1596 = vshrl.u32 %v1595, 7
        %v1597 = vsub.s32 0, %v1596
        %v1598 = vrot.slane %v1594, %v1597
        %v1599 = vmul.f32 %v569, %v1598
        %v1600 = vmul.f32 %v574, %v1598
        %v1601 = vmul.f32 %v579, %v1598
        %v1602 = vmul.f32 %v584, %v1598
        %v1603 = vmul.f32 %v589, %v1598
        %v1604 = vmul.f32 %v594, %v1598
        %v1605 = vmul.f32 %v599, %v1598
        %v1606 = vmul.f32 %v604, %v1598
        %v1607 = vmul.f32 %v609, %v1598
        %v1608 = vmul.f32 %v614, %v1598
        %v1609 = vmul.f32 %v619, %v1598
        %v1610 = vmul.f32 %v624, %v1598
        %v1611 = vmul.f32 %v629, %v1598
        %v1612 = vmul.f32 %v634, %v1598
        %v1613 = vmul.f32 %v639, %v1598
        %v1614 = vmul.f32 %v644, %v1598
        %v1615 = vmul.f32 %v649, %v1598
        %v1616 = vmul.f32 %v654, %v1598
        %v1617 = vmul.f32 %v659, %v1598
        %v1618 = vmul.f32 %v664, %v1598
        %v1619 = vmul.f32 %v669, %v1598
        %v1620 = vmul.f32 %v674, %v1598
        %v1621 = vmul.f32 %v679, %v1598
        %v1622 = vmul.f32 %v684, %v1598
        %v1623 = vmul.f32 %v689, %v1598
        %v1624 = vmul.f32 %v694, %v1598
        %v1625 = vmul.f32 %v699, %v1598
        %v1626 = vmul.f32 %v704, %v1598
        %v1627 = vmul.f32 %v709, %v1598
        %v1628 = vmul.f32 %v714, %v1598
        %v1629 = vmul.f32 %v719, %v1598
        %v1630 = vmul.f32 %v724, %v1598
        %v1631 = vpack.c.bf16 %v1600, %v1599
        %v1632 = vpack.c.bf16 %v1602, %v1601
        %v1633 = vpack.c.bf16 %v1604, %v1603
        %v1634 = vpack.c.bf16 %v1606, %v1605
        %v1635 = vpack.c.bf16 %v1608, %v1607
        %v1636 = vpack.c.bf16 %v1610, %v1609
        %v1637 = vpack.c.bf16 %v1612, %v1611
        %v1638 = vpack.c.bf16 %v1614, %v1613
        %v1639 = vpack.c.bf16 %v1616, %v1615
        %v1640 = vpack.c.bf16 %v1618, %v1617
        %v1641 = vpack.c.bf16 %v1620, %v1619
        %v1642 = vpack.c.bf16 %v1622, %v1621
        %v1643 = vpack.c.bf16 %v1624, %v1623
        %v1644 = vpack.c.bf16 %v1626, %v1625
        %v1645 = vpack.c.bf16 %v1628, %v1627
        %v1646 = vpack.c.bf16 %v1630, %v1629
        %v1655 = vunpack.c.l.b16 %v1584
        %v1656 = vunpack.c.h.b16 %v1584
        %v1657 = vunpack.c.l.b16 %v1585
        %v1658 = vunpack.c.h.b16 %v1585
        %v1659 = vunpack.c.l.b16 %v1586
        %v1660 = vunpack.c.h.b16 %v1586
        %v1661 = vunpack.c.l.b16 %v1587
        %v1662 = vunpack.c.h.b16 %v1587
        %v1663 = vunpack.c.l.b16 %v1588
        %v1664 = vunpack.c.h.b16 %v1588
        %v1665 = vunpack.c.l.b16 %v1589
        %v1666 = vunpack.c.h.b16 %v1589
        %v1667 = vunpack.c.l.b16 %v1590
        %v1668 = vunpack.c.h.b16 %v1590
        %v1669 = vunpack.c.l.b16 %v1591
        %v1670 = vunpack.c.h.b16 %v1591
        %v1671 = vpack.c.b16 %v1657, %v1655
        %v1672 = vpack.c.b16 %v1658, %v1656
        %v1673 = vpack.c.b16 %v1661, %v1659
        %v1674 = vpack.c.b16 %v1662, %v1660
        %v1675 = vpack.c.b16 %v1665, %v1663
        %v1676 = vpack.c.b16 %v1666, %v1664
        %v1677 = vpack.c.b16 %v1669, %v1667
        %v1678 = vpack.c.b16 %v1670, %v1668
        %1687 = vmatprep.subr.bf16.mxu0 0
        %1688 = vmatpush1.bf16.msra.mxu0 %v1631
        %1689 = vmatprep.subr.bf16.mxu0 0
        %1690 = vmatpush1.bf16.msra.mxu0 %v1632
        %1691 = vmatprep.subr.bf16.mxu0 0
        %1692 = vmatpush1.bf16.msra.mxu0 %v1633
        %1693 = vmatprep.subr.bf16.mxu0 0
        %1694 = vmatpush1.bf16.msra.mxu0 %v1634
        %1695 = vmatprep.subr.bf16.mxu0 0
        %1696 = vmatpush1.bf16.msra.mxu0 %v1635
        %1697 = vmatprep.subr.bf16.mxu0 0
        %1698 = vmatpush1.bf16.msra.mxu0 %v1636
        %1699 = vmatprep.subr.bf16.mxu0 0
        %1700 = vmatpush1.bf16.msra.mxu0 %v1637
        %1701 = vmatprep.subr.bf16.mxu0 0
        %1702 = vmatpush1.bf16.msra.mxu0 %v1638
        %1703 = vmatprep.subr.bf16.mxu0 0
        %1704 = vmatpush1.bf16.msra.mxu0 %v1639
        %1705 = vmatprep.subr.bf16.mxu0 0
        %1706 = vmatpush1.bf16.msra.mxu0 %v1640
        %1707 = vmatprep.subr.bf16.mxu0 0
        %1708 = vmatpush1.bf16.msra.mxu0 %v1641
        %1709 = vmatprep.subr.bf16.mxu0 0
        %1710 = vmatpush1.bf16.msra.mxu0 %v1642
        %1711 = vmatprep.subr.bf16.mxu0 0
        %1712 = vmatpush1.bf16.msra.mxu0 %v1643
        %1713 = vmatprep.subr.bf16.mxu0 0
        %1714 = vmatpush1.bf16.msra.mxu0 %v1644
        %1715 = vmatprep.subr.bf16.mxu0 0
        %1716 = vmatpush1.bf16.msra.mxu0 %v1645
        %1717 = vmatprep.subr.bf16.mxu0 0
        %1718 = vmatpush1.bf16.msra.mxu0 %v1646
        %1719 = vmatprep.mubr.bf16.mxu0 %v1672
        %1720 = vmatmul.mubr.bf16.gmra.mrb[0].mxu0 %v1671
        %v1721 = vpop.f32.mrb[0].mxu0
        %v1722 = vadd.f32 0.0, %v1721
        %v1723 = vpop.f32.mrb[0].mxu0
        %v1724 = vpop.f32.mrb[0].mxu0
        %v1725 = vadd.f32 0.0, %v1724
        %v1726 = vpop.f32.mrb[0].mxu0
        %1727 = vmatprep.mubr.bf16.mxu0 %v1674
        %1728 = vmatmul.mubr.bf16.gmra.mrb[0].mxu0 %v1673
        %v1729 = vpop.f32.mrb[0].mxu0
        %v1730 = vadd.f32 0.0, %v1729
        %v1731 = vpop.f32.mrb[0].mxu0
        %v1732 = vpop.f32.mrb[0].mxu0
        %v1733 = vadd.f32 0.0, %v1732
        %v1734 = vpop.f32.mrb[0].mxu0
        %1735 = vmatprep.mubr.bf16.mxu0 %v1676
        %1736 = vmatmul.mubr.bf16.gmra.mrb[0].mxu0 %v1675
        %v1737 = vpop.f32.mrb[0].mxu0
        %v1738 = vadd.f32 0.0, %v1737
        %v1739 = vpop.f32.mrb[0].mxu0
        %v1740 = vpop.f32.mrb[0].mxu0
        %v1741 = vadd.f32 0.0, %v1740
        %v1742 = vpop.f32.mrb[0].mxu0
        %1743 = vmatprep.mubr.bf16.mxu0 %v1678
        %1744 = vmatmul.mubr.bf16.gmra.mrb[0].mxu0 %v1677
        %v1745 = vpop.f32.mrb[0].mxu0
        %v1746 = vadd.f32 0.0, %v1745
        %v1747 = vpop.f32.mrb[0].mxu0
        %v1748 = vpop.f32.mrb[0].mxu0
        %v1749 = vadd.f32 0.0, %v1748
        %v1750 = vpop.f32.mrb[0].mxu0
        %1751 = vdwg.mxu0
        %v1752 = vadd.f32 %v1575, %v1722
        %v1753 = vadd.f32 %v1576, %v1725
        %v1754 = vadd.f32 %v1577, %v1730
        %v1755 = vadd.f32 %v1578, %v1733
        %v1756 = vadd.f32 %v1579, %v1738
        %v1757 = vadd.f32 %v1580, %v1741
        %v1758 = vadd.f32 %v1581, %v1746
        %v1759 = vadd.f32 %v1582, %v1749
        %s1760 = scalar_lea.vmem %s1, 384
        %v1761 = vld [vmem:[%s1760] sm:$0xff]
        %v1762 = vld [vmem:[%s1760 + $0x8] sm:$0xff]
        %v1763 = vld [vmem:[%s1760 + $0x10] sm:$0xff]
        %v1764 = vld [vmem:[%s1760 + $0x18] sm:$0xff]
        %v1765 = vld [vmem:[%s1760 + $0x20] sm:$0xff]
        %v1766 = vld [vmem:[%s1760 + $0x28] sm:$0xff]
        %v1767 = vld [vmem:[%s1760 + $0x30] sm:$0xff]
        %v1768 = vld [vmem:[%s1760 + $0x38] sm:$0xff]
        %s1769 = scalar_lea.vmem %s2, 6
        %v1770 = vld [vmem:[%s1769] sm:$0x1]
        %v1771 = vunpack.c.l.bf16 %v1770
        %v1772 = vlaneseq
        %v1773 = vshrl.u32 %v1772, 7
        %v1774 = vsub.s32 0, %v1773
        %v1775 = vrot.slane %v1771, %v1774
        %v1776 = vmul.f32 %v569, %v1775
        %v1777 = vmul.f32 %v574, %v1775
        %v1778 = vmul.f32 %v579, %v1775
        %v1779 = vmul.f32 %v584, %v1775
        %v1780 = vmul.f32 %v589, %v1775
        %v1781 = vmul.f32 %v594, %v1775
        %v1782 = vmul.f32 %v599, %v1775
        %v1783 = vmul.f32 %v604, %v1775
        %v1784 = vmul.f32 %v609, %v1775
        %v1785 = vmul.f32 %v614, %v1775
        %v1786 = vmul.f32 %v619, %v1775
        %v1787 = vmul.f32 %v624, %v1775
        %v1788 = vmul.f32 %v629, %v1775
        %v1789 = vmul.f32 %v634, %v1775
        %v1790 = vmul.f32 %v639, %v1775
        %v1791 = vmul.f32 %v644, %v1775
        %v1792 = vmul.f32 %v649, %v1775
        %v1793 = vmul.f32 %v654, %v1775
        %v1794 = vmul.f32 %v659, %v1775
        %v1795 = vmul.f32 %v664, %v1775
        %v1796 = vmul.f32 %v669, %v1775
        %v1797 = vmul.f32 %v674, %v1775
        %v1798 = vmul.f32 %v679, %v1775
        %v1799 = vmul.f32 %v684, %v1775
        %v1800 = vmul.f32 %v689, %v1775
        %v1801 = vmul.f32 %v694, %v1775
        %v1802 = vmul.f32 %v699, %v1775
        %v1803 = vmul.f32 %v704, %v1775
        %v1804 = vmul.f32 %v709, %v1775
        %v1805 = vmul.f32 %v714, %v1775
        %v1806 = vmul.f32 %v719, %v1775
        %v1807 = vmul.f32 %v724, %v1775
        %v1808 = vpack.c.bf16 %v1777, %v1776
        %v1809 = vpack.c.bf16 %v1779, %v1778
        %v1810 = vpack.c.bf16 %v1781, %v1780
        %v1811 = vpack.c.bf16 %v1783, %v1782
        %v1812 = vpack.c.bf16 %v1785, %v1784
        %v1813 = vpack.c.bf16 %v1787, %v1786
        %v1814 = vpack.c.bf16 %v1789, %v1788
        %v1815 = vpack.c.bf16 %v1791, %v1790
        %v1816 = vpack.c.bf16 %v1793, %v1792
        %v1817 = vpack.c.bf16 %v1795, %v1794
        %v1818 = vpack.c.bf16 %v1797, %v1796
        %v1819 = vpack.c.bf16 %v1799, %v1798
        %v1820 = vpack.c.bf16 %v1801, %v1800
        %v1821 = vpack.c.bf16 %v1803, %v1802
        %v1822 = vpack.c.bf16 %v1805, %v1804
        %v1823 = vpack.c.bf16 %v1807, %v1806
        %v1832 = vunpack.c.l.b16 %v1761
        %v1833 = vunpack.c.h.b16 %v1761
        %v1834 = vunpack.c.l.b16 %v1762
        %v1835 = vunpack.c.h.b16 %v1762
        %v1836 = vunpack.c.l.b16 %v1763
        %v1837 = vunpack.c.h.b16 %v1763
        %v1838 = vunpack.c.l.b16 %v1764
        %v1839 = vunpack.c.h.b16 %v1764
        %v1840 = vunpack.c.l.b16 %v1765
        %v1841 = vunpack.c.h.b16 %v1765
        %v1842 = vunpack.c.l.b16 %v1766
        %v1843 = vunpack.c.h.b16 %v1766
        %v1844 = vunpack.c.l.b16 %v1767
        %v1845 = vunpack.c.h.b16 %v1767
        %v1846 = vunpack.c.l.b16 %v1768
        %v1847 = vunpack.c.h.b16 %v1768
        %v1848 = vpack.c.b16 %v1834, %v1832
        %v1849 = vpack.c.b16 %v1835, %v1833
        %v1850 = vpack.c.b16 %v1838, %v1836
        %v1851 = vpack.c.b16 %v1839, %v1837
        %v1852 = vpack.c.b16 %v1842, %v1840
        %v1853 = vpack.c.b16 %v1843, %v1841
        %v1854 = vpack.c.b16 %v1846, %v1844
        %v1855 = vpack.c.b16 %v1847, %v1845
        %1864 = vmatprep.subr.bf16.mxu0 0
        %1865 = vmatpush1.bf16.msra.mxu0 %v1808
        %1866 = vmatprep.subr.bf16.mxu0 0
        %1867 = vmatpush1.bf16.msra.mxu0 %v1809
        %1868 = vmatprep.subr.bf16.mxu0 0
        %1869 = vmatpush1.bf16.msra.mxu0 %v1810
        %1870 = vmatprep.subr.bf16.mxu0 0
        %1871 = vmatpush1.bf16.msra.mxu0 %v1811
        %1872 = vmatprep.subr.bf16.mxu0 0
        %1873 = vmatpush1.bf16.msra.mxu0 %v1812
        %1874 = vmatprep.subr.bf16.mxu0 0
        %1875 = vmatpush1.bf16.msra.mxu0 %v1813
        %1876 = vmatprep.subr.bf16.mxu0 0
        %1877 = vmatpush1.bf16.msra.mxu0 %v1814
        %1878 = vmatprep.subr.bf16.mxu0 0
        %1879 = vmatpush1.bf16.msra.mxu0 %v1815
        %1880 = vmatprep.subr.bf16.mxu0 0
        %1881 = vmatpush1.bf16.msra.mxu0 %v1816
        %1882 = vmatprep.subr.bf16.mxu0 0
        %1883 = vmatpush1.bf16.msra.mxu0 %v1817
        %1884 = vmatprep.subr.bf16.mxu0 0
        %1885 = vmatpush1.bf16.msra.mxu0 %v1818
        %1886 = vmatprep.subr.bf16.mxu0 0
        %1887 = vmatpush1.bf16.msra.mxu0 %v1819
        %1888 = vmatprep.subr.bf16.mxu0 0
        %1889 = vmatpush1.bf16.msra.mxu0 %v1820
        %1890 = vmatprep.subr.bf16.mxu0 0
        %1891 = vmatpush1.bf16.msra.mxu0 %v1821
        %1892 = vmatprep.subr.bf16.mxu0 0
        %1893 = vmatpush1.bf16.msra.mxu0 %v1822
        %1894 = vmatprep.subr.bf16.mxu0 0
        %1895 = vmatpush1.bf16.msra.mxu0 %v1823
        %1896 = vmatprep.mubr.bf16.mxu0 %v1849
        %1897 = vmatmul.mubr.bf16.gmra.mrb[0].mxu0 %v1848
        %v1898 = vpop.f32.mrb[0].mxu0
        %v1899 = vadd.f32 0.0, %v1898
        %v1900 = vpop.f32.mrb[0].mxu0
        %v1901 = vpop.f32.mrb[0].mxu0
        %v1902 = vadd.f32 0.0, %v1901
        %v1903 = vpop.f32.mrb[0].mxu0
        %1904 = vmatprep.mubr.bf16.mxu0 %v1851
        %1905 = vmatmul.mubr.bf16.gmra.mrb[0].mxu0 %v1850
        %v1906 = vpop.f32.mrb[0].mxu0
        %v1907 = vadd.f32 0.0, %v1906
        %v1908 = vpop.f32.mrb[0].mxu0
        %v1909 = vpop.f32.mrb[0].mxu0
        %v1910 = vadd.f32 0.0, %v1909
        %v1911 = vpop.f32.mrb[0].mxu0
        %1912 = vmatprep.mubr.bf16.mxu0 %v1853
        %1913 = vmatmul.mubr.bf16.gmra.mrb[0].mxu0 %v1852
        %v1914 = vpop.f32.mrb[0].mxu0
        %v1915 = vadd.f32 0.0, %v1914
        %v1916 = vpop.f32.mrb[0].mxu0
        %v1917 = vpop.f32.mrb[0].mxu0
        %v1918 = vadd.f32 0.0, %v1917
        %v1919 = vpop.f32.mrb[0].mxu0
        %1920 = vmatprep.mubr.bf16.mxu0 %v1855
        %1921 = vmatmul.mubr.bf16.gmra.mrb[0].mxu0 %v1854
        %v1922 = vpop.f32.mrb[0].mxu0
        %v1923 = vadd.f32 0.0, %v1922
        %v1924 = vpop.f32.mrb[0].mxu0
        %v1925 = vpop.f32.mrb[0].mxu0
        %v1926 = vadd.f32 0.0, %v1925
        %v1927 = vpop.f32.mrb[0].mxu0
        %1928 = vdwg.mxu0
        %v1929 = vadd.f32 %v1752, %v1899
        %v1930 = vadd.f32 %v1753, %v1902
        %v1931 = vadd.f32 %v1754, %v1907
        %v1932 = vadd.f32 %v1755, %v1910
        %v1933 = vadd.f32 %v1756, %v1915
        %v1934 = vadd.f32 %v1757, %v1918
        %v1935 = vadd.f32 %v1758, %v1923
        %v1936 = vadd.f32 %v1759, %v1926
        %s1937 = scalar_lea.vmem %s1, 448
        %v1938 = vld [vmem:[%s1937] sm:$0xff]
        %v1939 = vld [vmem:[%s1937 + $0x8] sm:$0xff]
        %v1940 = vld [vmem:[%s1937 + $0x10] sm:$0xff]
        %v1941 = vld [vmem:[%s1937 + $0x18] sm:$0xff]
        %v1942 = vld [vmem:[%s1937 + $0x20] sm:$0xff]
        %v1943 = vld [vmem:[%s1937 + $0x28] sm:$0xff]
        %v1944 = vld [vmem:[%s1937 + $0x30] sm:$0xff]
        %v1945 = vld [vmem:[%s1937 + $0x38] sm:$0xff]
        %s1946 = scalar_lea.vmem %s2, 7
        %v1947 = vld [vmem:[%s1946] sm:$0x1]
        %v1948 = vunpack.c.l.bf16 %v1947
        %v1949 = vlaneseq
        %v1950 = vshrl.u32 %v1949, 7
        %v1951 = vsub.s32 0, %v1950
        %v1952 = vrot.slane %v1948, %v1951
        %v1953 = vmul.f32 %v569, %v1952
        %v1954 = vmul.f32 %v574, %v1952
        %v1955 = vmul.f32 %v579, %v1952
        %v1956 = vmul.f32 %v584, %v1952
        %v1957 = vmul.f32 %v589, %v1952
        %v1958 = vmul.f32 %v594, %v1952
        %v1959 = vmul.f32 %v599, %v1952
        %v1960 = vmul.f32 %v604, %v1952
        %v1961 = vmul.f32 %v609, %v1952
        %v1962 = vmul.f32 %v614, %v1952
        %v1963 = vmul.f32 %v619, %v1952
        %v1964 = vmul.f32 %v624, %v1952
        %v1965 = vmul.f32 %v629, %v1952
        %v1966 = vmul.f32 %v634, %v1952
        %v1967 = vmul.f32 %v639, %v1952
        %v1968 = vmul.f32 %v644, %v1952
        %v1969 = vmul.f32 %v649, %v1952
        %v1970 = vmul.f32 %v654, %v1952
        %v1971 = vmul.f32 %v659, %v1952
        %v1972 = vmul.f32 %v664, %v1952
        %v1973 = vmul.f32 %v669, %v1952
        %v1974 = vmul.f32 %v674, %v1952
        %v1975 = vmul.f32 %v679, %v1952
        %v1976 = vmul.f32 %v684, %v1952
        %v1977 = vmul.f32 %v689, %v1952
        %v1978 = vmul.f32 %v694, %v1952
        %v1979 = vmul.f32 %v699, %v1952
        %v1980 = vmul.f32 %v704, %v1952
        %v1981 = vmul.f32 %v709, %v1952
        %v1982 = vmul.f32 %v714, %v1952
        %v1983 = vmul.f32 %v719, %v1952
        %v1984 = vmul.f32 %v724, %v1952
        %v1985 = vpack.c.bf16 %v1954, %v1953
        %v1986 = vpack.c.bf16 %v1956, %v1955
        %v1987 = vpack.c.bf16 %v1958, %v1957
        %v1988 = vpack.c.bf16 %v1960, %v1959
        %v1989 = vpack.c.bf16 %v1962, %v1961
        %v1990 = vpack.c.bf16 %v1964, %v1963
        %v1991 = vpack.c.bf16 %v1966, %v1965
        %v1992 = vpack.c.bf16 %v1968, %v1967
        %v1993 = vpack.c.bf16 %v1970, %v1969
        %v1994 = vpack.c.bf16 %v1972, %v1971
        %v1995 = vpack.c.bf16 %v1974, %v1973
        %v1996 = vpack.c.bf16 %v1976, %v1975
        %v1997 = vpack.c.bf16 %v1978, %v1977
        %v1998 = vpack.c.bf16 %v1980, %v1979
        %v1999 = vpack.c.bf16 %v1982, %v1981
        %v2000 = vpack.c.bf16 %v1984, %v1983
        %v2009 = vunpack.c.l.b16 %v1938
        %v2010 = vunpack.c.h.b16 %v1938
        %v2011 = vunpack.c.l.b16 %v1939
        %v2012 = vunpack.c.h.b16 %v1939
        %v2013 = vunpack.c.l.b16 %v1940
        %v2014 = vunpack.c.h.b16 %v1940
        %v2015 = vunpack.c.l.b16 %v1941
        %v2016 = vunpack.c.h.b16 %v1941
        %v2017 = vunpack.c.l.b16 %v1942
        %v2018 = vunpack.c.h.b16 %v1942
        %v2019 = vunpack.c.l.b16 %v1943
        %v2020 = vunpack.c.h.b16 %v1943
        %v2021 = vunpack.c.l.b16 %v1944
        %v2022 = vunpack.c.h.b16 %v1944
        %v2023 = vunpack.c.l.b16 %v1945
        %v2024 = vunpack.c.h.b16 %v1945
        %v2025 = vpack.c.b16 %v2011, %v2009
        %v2026 = vpack.c.b16 %v2012, %v2010
        %v2027 = vpack.c.b16 %v2015, %v2013
        %v2028 = vpack.c.b16 %v2016, %v2014
        %v2029 = vpack.c.b16 %v2019, %v2017
        %v2030 = vpack.c.b16 %v2020, %v2018
        %v2031 = vpack.c.b16 %v2023, %v2021
        %v2032 = vpack.c.b16 %v2024, %v2022
        %2041 = vmatprep.subr.bf16.mxu0 0
        %2042 = vmatpush1.bf16.msra.mxu0 %v1985
        %2043 = vmatprep.subr.bf16.mxu0 0
        %2044 = vmatpush1.bf16.msra.mxu0 %v1986
        %2045 = vmatprep.subr.bf16.mxu0 0
        %2046 = vmatpush1.bf16.msra.mxu0 %v1987
        %2047 = vmatprep.subr.bf16.mxu0 0
        %2048 = vmatpush1.bf16.msra.mxu0 %v1988
        %2049 = vmatprep.subr.bf16.mxu0 0
        %2050 = vmatpush1.bf16.msra.mxu0 %v1989
        %2051 = vmatprep.subr.bf16.mxu0 0
        %2052 = vmatpush1.bf16.msra.mxu0 %v1990
        %2053 = vmatprep.subr.bf16.mxu0 0
        %2054 = vmatpush1.bf16.msra.mxu0 %v1991
        %2055 = vmatprep.subr.bf16.mxu0 0
        %2056 = vmatpush1.bf16.msra.mxu0 %v1992
        %2057 = vmatprep.subr.bf16.mxu0 0
        %2058 = vmatpush1.bf16.msra.mxu0 %v1993
        %2059 = vmatprep.subr.bf16.mxu0 0
        %2060 = vmatpush1.bf16.msra.mxu0 %v1994
        %2061 = vmatprep.subr.bf16.mxu0 0
        %2062 = vmatpush1.bf16.msra.mxu0 %v1995
        %2063 = vmatprep.subr.bf16.mxu0 0
        %2064 = vmatpush1.bf16.msra.mxu0 %v1996
        %2065 = vmatprep.subr.bf16.mxu0 0
        %2066 = vmatpush1.bf16.msra.mxu0 %v1997
        %2067 = vmatprep.subr.bf16.mxu0 0
        %2068 = vmatpush1.bf16.msra.mxu0 %v1998
        %2069 = vmatprep.subr.bf16.mxu0 0
        %2070 = vmatpush1.bf16.msra.mxu0 %v1999
        %2071 = vmatprep.subr.bf16.mxu0 0
        %2072 = vmatpush1.bf16.msra.mxu0 %v2000
        %2073 = vmatprep.mubr.bf16.mxu0 %v2026
        %2074 = vmatmul.mubr.bf16.gmra.mrb[0].mxu0 %v2025
        %v2075 = vpop.f32.mrb[0].mxu0
        %v2076 = vadd.f32 0.0, %v2075
        %v2077 = vpop.f32.mrb[0].mxu0
        %v2078 = vpop.f32.mrb[0].mxu0
        %v2079 = vadd.f32 0.0, %v2078
        %v2080 = vpop.f32.mrb[0].mxu0
        %2081 = vmatprep.mubr.bf16.mxu0 %v2028
        %2082 = vmatmul.mubr.bf16.gmra.mrb[0].mxu0 %v2027
        %v2083 = vpop.f32.mrb[0].mxu0
        %v2084 = vadd.f32 0.0, %v2083
        %v2085 = vpop.f32.mrb[0].mxu0
        %v2086 = vpop.f32.mrb[0].mxu0
        %v2087 = vadd.f32 0.0, %v2086
        %v2088 = vpop.f32.mrb[0].mxu0
        %2089 = vmatprep.mubr.bf16.mxu0 %v2030
        %2090 = vmatmul.mubr.bf16.gmra.mrb[0].mxu0 %v2029
        %v2091 = vpop.f32.mrb[0].mxu0
        %v2092 = vadd.f32 0.0, %v2091
        %v2093 = vpop.f32.mrb[0].mxu0
        %v2094 = vpop.f32.mrb[0].mxu0
        %v2095 = vadd.f32 0.0, %v2094
        %v2096 = vpop.f32.mrb[0].mxu0
        %2097 = vmatprep.mubr.bf16.mxu0 %v2032
        %2098 = vmatmul.mubr.bf16.gmra.mrb[0].mxu0 %v2031
        %v2099 = vpop.f32.mrb[0].mxu0
        %v2100 = vadd.f32 0.0, %v2099
        %v2101 = vpop.f32.mrb[0].mxu0
        %v2102 = vpop.f32.mrb[0].mxu0
        %v2103 = vadd.f32 0.0, %v2102
        %v2104 = vpop.f32.mrb[0].mxu0
        %2105 = vdwg.mxu0
        %v2106 = vadd.f32 %v1929, %v2076
        %v2107 = vadd.f32 %v1930, %v2079
        %v2108 = vadd.f32 %v1931, %v2084
        %v2109 = vadd.f32 %v1932, %v2087
        %v2110 = vadd.f32 %v1933, %v2092
        %v2111 = vadd.f32 %v1934, %v2095
        %v2112 = vadd.f32 %v1935, %v2100
        %v2113 = vadd.f32 %v1936, %v2103
        %s2114 = scalar_lea.vmem %s1, 512
        %v2115 = vld [vmem:[%s2114] sm:$0xff]
        %v2116 = vld [vmem:[%s2114 + $0x8] sm:$0xff]
        %v2117 = vld [vmem:[%s2114 + $0x10] sm:$0xff]
        %v2118 = vld [vmem:[%s2114 + $0x18] sm:$0xff]
        %v2119 = vld [vmem:[%s2114 + $0x20] sm:$0xff]
        %v2120 = vld [vmem:[%s2114 + $0x28] sm:$0xff]
        %v2121 = vld [vmem:[%s2114 + $0x30] sm:$0xff]
        %v2122 = vld [vmem:[%s2114 + $0x38] sm:$0xff]
        %s2123 = scalar_lea.vmem %s2, 8
        %v2124 = vld [vmem:[%s2123] sm:$0x1]
        %v2125 = vunpack.c.l.bf16 %v2124
        %v2126 = vlaneseq
        %v2127 = vshrl.u32 %v2126, 7
        %v2128 = vsub.s32 0, %v2127
        %v2129 = vrot.slane %v2125, %v2128
        %v2130 = vmul.f32 %v569, %v2129
        %v2131 = vmul.f32 %v574, %v2129
        %v2132 = vmul.f32 %v579, %v2129
        %v2133 = vmul.f32 %v584, %v2129
        %v2134 = vmul.f32 %v589, %v2129
        %v2135 = vmul.f32 %v594, %v2129
        %v2136 = vmul.f32 %v599, %v2129
        %v2137 = vmul.f32 %v604, %v2129
        %v2138 = vmul.f32 %v609, %v2129
        %v2139 = vmul.f32 %v614, %v2129
        %v2140 = vmul.f32 %v619, %v2129
        %v2141 = vmul.f32 %v624, %v2129
        %v2142 = vmul.f32 %v629, %v2129
        %v2143 = vmul.f32 %v634, %v2129
        %v2144 = vmul.f32 %v639, %v2129
        %v2145 = vmul.f32 %v644, %v2129
        %v2146 = vmul.f32 %v649, %v2129
        %v2147 = vmul.f32 %v654, %v2129
        %v2148 = vmul.f32 %v659, %v2129
        %v2149 = vmul.f32 %v664, %v2129
        %v2150 = vmul.f32 %v669, %v2129
        %v2151 = vmul.f32 %v674, %v2129
        %v2152 = vmul.f32 %v679, %v2129
        %v2153 = vmul.f32 %v684, %v2129
        %v2154 = vmul.f32 %v689, %v2129
        %v2155 = vmul.f32 %v694, %v2129
        %v2156 = vmul.f32 %v699, %v2129
        %v2157 = vmul.f32 %v704, %v2129
        %v2158 = vmul.f32 %v709, %v2129
        %v2159 = vmul.f32 %v714, %v2129
        %v2160 = vmul.f32 %v719, %v2129
        %v2161 = vmul.f32 %v724, %v2129
        %v2162 = vpack.c.bf16 %v2131, %v2130
        %v2163 = vpack.c.bf16 %v2133, %v2132
        %v2164 = vpack.c.bf16 %v2135, %v2134
        %v2165 = vpack.c.bf16 %v2137, %v2136
        %v2166 = vpack.c.bf16 %v2139, %v2138
        %v2167 = vpack.c.bf16 %v2141, %v2140
        %v2168 = vpack.c.bf16 %v2143, %v2142
        %v2169 = vpack.c.bf16 %v2145, %v2144
        %v2170 = vpack.c.bf16 %v2147, %v2146
        %v2171 = vpack.c.bf16 %v2149, %v2148
        %v2172 = vpack.c.bf16 %v2151, %v2150
        %v2173 = vpack.c.bf16 %v2153, %v2152
        %v2174 = vpack.c.bf16 %v2155, %v2154
        %v2175 = vpack.c.bf16 %v2157, %v2156
        %v2176 = vpack.c.bf16 %v2159, %v2158
        %v2177 = vpack.c.bf16 %v2161, %v2160
        %v2186 = vunpack.c.l.b16 %v2115
        %v2187 = vunpack.c.h.b16 %v2115
        %v2188 = vunpack.c.l.b16 %v2116
        %v2189 = vunpack.c.h.b16 %v2116
        %v2190 = vunpack.c.l.b16 %v2117
        %v2191 = vunpack.c.h.b16 %v2117
        %v2192 = vunpack.c.l.b16 %v2118
        %v2193 = vunpack.c.h.b16 %v2118
        %v2194 = vunpack.c.l.b16 %v2119
        %v2195 = vunpack.c.h.b16 %v2119
        %v2196 = vunpack.c.l.b16 %v2120
        %v2197 = vunpack.c.h.b16 %v2120
        %v2198 = vunpack.c.l.b16 %v2121
        %v2199 = vunpack.c.h.b16 %v2121
        %v2200 = vunpack.c.l.b16 %v2122
        %v2201 = vunpack.c.h.b16 %v2122
        %v2202 = vpack.c.b16 %v2188, %v2186
        %v2203 = vpack.c.b16 %v2189, %v2187
        %v2204 = vpack.c.b16 %v2192, %v2190
        %v2205 = vpack.c.b16 %v2193, %v2191
        %v2206 = vpack.c.b16 %v2196, %v2194
        %v2207 = vpack.c.b16 %v2197, %v2195
        %v2208 = vpack.c.b16 %v2200, %v2198
        %v2209 = vpack.c.b16 %v2201, %v2199
        %2218 = vmatprep.subr.bf16.mxu0 0
        %2219 = vmatpush1.bf16.msra.mxu0 %v2162
        %2220 = vmatprep.subr.bf16.mxu0 0
        %2221 = vmatpush1.bf16.msra.mxu0 %v2163
        %2222 = vmatprep.subr.bf16.mxu0 0
        %2223 = vmatpush1.bf16.msra.mxu0 %v2164
        %2224 = vmatprep.subr.bf16.mxu0 0
        %2225 = vmatpush1.bf16.msra.mxu0 %v2165
        %2226 = vmatprep.subr.bf16.mxu0 0
        %2227 = vmatpush1.bf16.msra.mxu0 %v2166
        %2228 = vmatprep.subr.bf16.mxu0 0
        %2229 = vmatpush1.bf16.msra.mxu0 %v2167
        %2230 = vmatprep.subr.bf16.mxu0 0
        %2231 = vmatpush1.bf16.msra.mxu0 %v2168
        %2232 = vmatprep.subr.bf16.mxu0 0
        %2233 = vmatpush1.bf16.msra.mxu0 %v2169
        %2234 = vmatprep.subr.bf16.mxu0 0
        %2235 = vmatpush1.bf16.msra.mxu0 %v2170
        %2236 = vmatprep.subr.bf16.mxu0 0
        %2237 = vmatpush1.bf16.msra.mxu0 %v2171
        %2238 = vmatprep.subr.bf16.mxu0 0
        %2239 = vmatpush1.bf16.msra.mxu0 %v2172
        %2240 = vmatprep.subr.bf16.mxu0 0
        %2241 = vmatpush1.bf16.msra.mxu0 %v2173
        %2242 = vmatprep.subr.bf16.mxu0 0
        %2243 = vmatpush1.bf16.msra.mxu0 %v2174
        %2244 = vmatprep.subr.bf16.mxu0 0
        %2245 = vmatpush1.bf16.msra.mxu0 %v2175
        %2246 = vmatprep.subr.bf16.mxu0 0
        %2247 = vmatpush1.bf16.msra.mxu0 %v2176
        %2248 = vmatprep.subr.bf16.mxu0 0
        %2249 = vmatpush1.bf16.msra.mxu0 %v2177
        %2250 = vmatprep.mubr.bf16.mxu0 %v2203
        %2251 = vmatmul.mubr.bf16.gmra.mrb[0].mxu0 %v2202
        %v2252 = vpop.f32.mrb[0].mxu0
        %v2253 = vadd.f32 0.0, %v2252
        %v2254 = vpop.f32.mrb[0].mxu0
        %v2255 = vpop.f32.mrb[0].mxu0
        %v2256 = vadd.f32 0.0, %v2255
        %v2257 = vpop.f32.mrb[0].mxu0
        %2258 = vmatprep.mubr.bf16.mxu0 %v2205
        %2259 = vmatmul.mubr.bf16.gmra.mrb[0].mxu0 %v2204
        %v2260 = vpop.f32.mrb[0].mxu0
        %v2261 = vadd.f32 0.0, %v2260
        %v2262 = vpop.f32.mrb[0].mxu0
        %v2263 = vpop.f32.mrb[0].mxu0
        %v2264 = vadd.f32 0.0, %v2263
        %v2265 = vpop.f32.mrb[0].mxu0
        %2266 = vmatprep.mubr.bf16.mxu0 %v2207
        %2267 = vmatmul.mubr.bf16.gmra.mrb[0].mxu0 %v2206
        %v2268 = vpop.f32.mrb[0].mxu0
        %v2269 = vadd.f32 0.0, %v2268
        %v2270 = vpop.f32.mrb[0].mxu0
        %v2271 = vpop.f32.mrb[0].mxu0
        %v2272 = vadd.f32 0.0, %v2271
        %v2273 = vpop.f32.mrb[0].mxu0
        %2274 = vmatprep.mubr.bf16.mxu0 %v2209
        %2275 = vmatmul.mubr.bf16.gmra.mrb[0].mxu0 %v2208
        %v2276 = vpop.f32.mrb[0].mxu0
        %v2277 = vadd.f32 0.0, %v2276
        %v2278 = vpop.f32.mrb[0].mxu0
        %v2279 = vpop.f32.mrb[0].mxu0
        %v2280 = vadd.f32 0.0, %v2279
        %v2281 = vpop.f32.mrb[0].mxu0
        %2282 = vdwg.mxu0
        %v2283 = vadd.f32 %v2106, %v2253
        %v2284 = vadd.f32 %v2107, %v2256
        %v2285 = vadd.f32 %v2108, %v2261
        %v2286 = vadd.f32 %v2109, %v2264
        %v2287 = vadd.f32 %v2110, %v2269
        %v2288 = vadd.f32 %v2111, %v2272
        %v2289 = vadd.f32 %v2112, %v2277
        %v2290 = vadd.f32 %v2113, %v2280
        %v2291 = vld [vmem:[#allocation2] sm:$0x1]
        %v2293 = vlaneseq
        %v2294 = vshrl.u32 %v2293, 7
        %v2295 = vsub.s32 0, %v2294
        %v2296 = vrot.slane %v2291, %v2295
        %v2298 = vadd.f32 %v2283, %v2296
        %v2299 = vadd.f32 %v2284, %v2296
        %v2300 = vadd.f32 %v2285, %v2296
        %v2301 = vadd.f32 %v2286, %v2296
        %v2302 = vadd.f32 %v2287, %v2296
        %v2303 = vadd.f32 %v2288, %v2296
        %v2304 = vadd.f32 %v2289, %v2296
        %v2305 = vadd.f32 %v2290, %v2296
        %v2306 = vmax.f32 %v2298, 0.0
        %v2307 = vmax.f32 %v2299, 0.0
        %v2308 = vmax.f32 %v2300, 0.0
        %v2309 = vmax.f32 %v2301, 0.0
        %v2310 = vmax.f32 %v2302, 0.0
        %v2311 = vmax.f32 %v2303, 0.0
        %v2312 = vmax.f32 %v2304, 0.0
        %v2313 = vmax.f32 %v2305, 0.0
        %v2314 = vpack.c.bf16 %v2307, %v2306
        %v2315 = vpack.c.bf16 %v2309, %v2308
        %v2316 = vpack.c.bf16 %v2311, %v2310
        %v2317 = vpack.c.bf16 %v2313, %v2312
        %v2318 = vld [vmem:[%s4] sm:$0xf]
        %v2319 = vld [vmem:[%s4 + $0x4] sm:$0xf]
        %v2320 = vld [vmem:[#allocation5] sm:$0xf]
        %v2321 = vld [vmem:[#allocation5 + $0x4] sm:$0xf]
        %v2322 = vld [vmem:[#allocation5 + $0x8] sm:$0xf]
        %v2323 = vld [vmem:[#allocation5 + $0xc] sm:$0xf]
        %v2326 = vunpack.c.l.b16 %v2318
        %v2327 = vunpack.c.l.b16 %v2319
        %v2328 = vpack.c.b16 %v2327, %v2326
        %vm2329 = vcmask 523264
        %v2331 = vsel %vm2329, %v2328, 0
        %2333 = vmatprep.subr.bf16.mxu0 0
        %2334 = vmatpush1.bf16.msra.mxu0 %v2314
        %2335 = vmatprep.subr.bf16.mxu0 0
        %2336 = vmatpush1.bf16.msra.mxu0 %v2315
        %2337 = vmatprep.subr.bf16.mxu0 0
        %2338 = vmatpush1.bf16.msra.mxu0 %v2316
        %2339 = vmatprep.subr.bf16.mxu0 0
        %2340 = vmatpush1.bf16.msra.mxu0 %v2317
        %2341 = vmatprep.subr.bf16.mxu0 0
        %2342 = vmatpush1.bf16.msra.mxu0 0
        %2343 = vmatprep.subr.bf16.mxu0 0
        %2344 = vmatpush1.bf16.msra.mxu0 0
        %2345 = vmatprep.subr.bf16.mxu0 0
        %2346 = vmatpush1.bf16.msra.mxu0 0
        %2347 = vmatprep.subr.bf16.mxu0 0
        %2348 = vmatpush1.bf16.msra.mxu0 0
        %2349 = vmatprep.subr.bf16.mxu0 0
        %2350 = vmatpush1.bf16.msra.mxu0 0
        %2351 = vmatprep.subr.bf16.mxu0 0
        %2352 = vmatpush1.bf16.msra.mxu0 0
        %2353 = vmatprep.subr.bf16.mxu0 0
        %2354 = vmatpush1.bf16.msra.mxu0 0
        %2355 = vmatprep.subr.bf16.mxu0 0
        %2356 = vmatpush1.bf16.msra.mxu0 0
        %2357 = vmatprep.subr.bf16.mxu0 0
        %2358 = vmatpush1.bf16.msra.mxu0 0
        %2359 = vmatprep.subr.bf16.mxu0 0
        %2360 = vmatpush1.bf16.msra.mxu0 0
        %2361 = vmatprep.subr.bf16.mxu0 0
        %2362 = vmatpush1.bf16.msra.mxu0 0
        %2363 = vmatprep.subr.bf16.mxu0 0
        %2364 = vmatpush1.bf16.msra.mxu0 0
        %2365 = vmatprep.mubr.bf16.mxu0 0
        %2366 = vmatmul.mubr.bf16.gmra.mrb[0].mxu0 %v2331
        %v2367 = vpop.f32.mrb[0].mxu0
        %v2368 = vadd.f32 0.0, %v2367
        %v2369 = vpop.f32.mrb[0].mxu0
        %v2370 = vpop.f32.mrb[0].mxu0
        %v2371 = vadd.f32 0.0, %v2370
        %v2372 = vpop.f32.mrb[0].mxu0
        %2373 = vdwg.mxu0
        %v2374 = vpack.c.bf16 %v2371, %v2368
        %s2375 = scalar_lea.vmem %s4, 8
        %v2376 = vld [vmem:[%s2375] sm:$0xf]
        %v2377 = vld [vmem:[%s2375 + $0x4] sm:$0xf]
        %s2378 = scalar_lea.vmem [#allocation5], 16
        %v2379 = vld [vmem:[%s2378] sm:$0xf]
        %v2380 = vld [vmem:[%s2378 + $0x4] sm:$0xf]
        %v2381 = vld [vmem:[%s2378 + $0x8] sm:$0xf]
        %v2382 = vld [vmem:[%s2378 + $0xc] sm:$0xf]
        %v2385 = vunpack.c.l.b16 %v2376
        %v2386 = vunpack.c.l.b16 %v2377
        %v2387 = vpack.c.b16 %v2386, %v2385
        %v2389 = vsel %vm2329, %v2387, 0
        %2391 = vmatprep.subr.bf16.mxu0 0
        %2392 = vmatpush1.bf16.msra.mxu0 %v2314
        %2393 = vmatprep.subr.bf16.mxu0 0
        %2394 = vmatpush1.bf16.msra.mxu0 %v2315
        %2395 = vmatprep.subr.bf16.mxu0 0
        %2396 = vmatpush1.bf16.msra.mxu0 %v2316
        %2397 = vmatprep.subr.bf16.mxu0 0
        %2398 = vmatpush1.bf16.msra.mxu0 %v2317
        %2399 = vmatprep.subr.bf16.mxu0 0
        %2400 = vmatpush1.bf16.msra.mxu0 0
        %2401 = vmatprep.subr.bf16.mxu0 0
        %2402 = vmatpush1.bf16.msra.mxu0 0
        %2403 = vmatprep.subr.bf16.mxu0 0
        %2404 = vmatpush1.bf16.msra.mxu0 0
        %2405 = vmatprep.subr.bf16.mxu0 0
        %2406 = vmatpush1.bf16.msra.mxu0 0
        %2407 = vmatprep.subr.bf16.mxu0 0
        %2408 = vmatpush1.bf16.msra.mxu0 0
        %2409 = vmatprep.subr.bf16.mxu0 0
        %2410 = vmatpush1.bf16.msra.mxu0 0
        %2411 = vmatprep.subr.bf16.mxu0 0
        %2412 = vmatpush1.bf16.msra.mxu0 0
        %2413 = vmatprep.subr.bf16.mxu0 0
        %2414 = vmatpush1.bf16.msra.mxu0 0
        %2415 = vmatprep.subr.bf16.mxu0 0
        %2416 = vmatpush1.bf16.msra.mxu0 0
        %2417 = vmatprep.subr.bf16.mxu0 0
        %2418 = vmatpush1.bf16.msra.mxu0 0
        %2419 = vmatprep.subr.bf16.mxu0 0
        %2420 = vmatpush1.bf16.msra.mxu0 0
        %2421 = vmatprep.subr.bf16.mxu0 0
        %2422 = vmatpush1.bf16.msra.mxu0 0
        %2423 = vmatprep.mubr.bf16.mxu0 0
        %2424 = vmatmul.mubr.bf16.gmra.mrb[0].mxu0 %v2389
        %v2425 = vpop.f32.mrb[0].mxu0
        %v2426 = vadd.f32 0.0, %v2425
        %v2427 = vpop.f32.mrb[0].mxu0
        %v2428 = vpop.f32.mrb[0].mxu0
        %v2429 = vadd.f32 0.0, %v2428
        %v2430 = vpop.f32.mrb[0].mxu0
        %2431 = vdwg.mxu0
        %v2432 = vpack.c.bf16 %v2429, %v2426
        %v2437 = vunpack.c.l.b16 %v2379
        %v2438 = vunpack.c.l.b16 %v2380
        %v2439 = vunpack.c.l.b16 %v2381
        %v2440 = vunpack.c.l.b16 %v2382
        %v2441 = vpack.c.b16 %v2438, %v2437
        %v2442 = vpack.c.b16 %v2440, %v2439
        %vm2445 = vcmask 261120
        %v2447 = vsel %vm2445, %v2432, 0
        %2449 = vmatprep.subr.bf16.mxu0 0
        %2450 = vmatpush1.bf16.msra.mxu0 %v2441
        %2451 = vmatprep.subr.bf16.mxu0 0
        %2452 = vmatpush1.bf16.msra.mxu0 %v2442
        %2453 = vmatprep.subr.bf16.mxu0 0
        %2454 = vmatpush1.bf16.msra.mxu0 0
        %2455 = vmatprep.subr.bf16.mxu0 0
        %2456 = vmatpush1.bf16.msra.mxu0 0
        %2457 = vmatprep.subr.bf16.mxu0 0
        %2458 = vmatpush1.bf16.msra.mxu0 0
        %2459 = vmatprep.subr.bf16.mxu0 0
        %2460 = vmatpush1.bf16.msra.mxu0 0
        %2461 = vmatprep.subr.bf16.mxu0 0
        %2462 = vmatpush1.bf16.msra.mxu0 0
        %2463 = vmatprep.subr.bf16.mxu0 0
        %2464 = vmatpush1.bf16.msra.mxu0 0
        %2465 = vmatprep.subr.bf16.mxu0 0
        %2466 = vmatpush1.bf16.msra.mxu0 0
        %2467 = vmatprep.subr.bf16.mxu0 0
        %2468 = vmatpush1.bf16.msra.mxu0 0
        %2469 = vmatprep.subr.bf16.mxu0 0
        %2470 = vmatpush1.bf16.msra.mxu0 0
        %2471 = vmatprep.subr.bf16.mxu0 0
        %2472 = vmatpush1.bf16.msra.mxu0 0
        %2473 = vmatprep.subr.bf16.mxu0 0
        %2474 = vmatpush1.bf16.msra.mxu0 0
        %2475 = vmatprep.subr.bf16.mxu0 0
        %2476 = vmatpush1.bf16.msra.mxu0 0
        %2477 = vmatprep.subr.bf16.mxu0 0
        %2478 = vmatpush1.bf16.msra.mxu0 0
        %2479 = vmatprep.subr.bf16.mxu0 0
        %2480 = vmatpush1.bf16.msra.mxu0 0
        %2481 = vmatprep.mubr.bf16.mxu0 0
        %2482 = vmatmul.mubr.bf16.gmra.mrb[0].mxu0 %v2447
        %v2483 = vpop.f32.mrb[0].mxu0
        %v2484 = vadd.f32 0.0, %v2483
        %v2485 = vpop.f32.mrb[0].mxu0
        %v2486 = vpop.f32.mrb[0].mxu0
        %v2487 = vadd.f32 0.0, %v2486
        %v2488 = vpop.f32.mrb[0].mxu0
        %2489 = vdwg.mxu0
        %v2494 = vunpack.c.l.b16 %v2320
        %v2495 = vunpack.c.l.b16 %v2321
        %v2496 = vunpack.c.l.b16 %v2322
        %v2497 = vunpack.c.l.b16 %v2323
        %v2498 = vpack.c.b16 %v2495, %v2494
        %v2499 = vpack.c.b16 %v2497, %v2496
        %v2503 = vsel %vm2445, %v2374, 0
        %2505 = vmatprep.subr.bf16.mxu0 0
        %2506 = vmatpush1.bf16.msra.mxu0 %v2498
        %2507 = vmatprep.subr.bf16.mxu0 0
        %2508 = vmatpush1.bf16.msra.mxu0 %v2499
        %2509 = vmatprep.subr.bf16.mxu0 0
        %2510 = vmatpush1.bf16.msra.mxu0 0
        %2511 = vmatprep.subr.bf16.mxu0 0
        %2512 = vmatpush1.bf16.msra.mxu0 0
        %2513 = vmatprep.subr.bf16.mxu0 0
        %2514 = vmatpush1.bf16.msra.mxu0 0
        %2515 = vmatprep.subr.bf16.mxu0 0
        %2516 = vmatpush1.bf16.msra.mxu0 0
        %2517 = vmatprep.subr.bf16.mxu0 0
        %2518 = vmatpush1.bf16.msra.mxu0 0
        %2519 = vmatprep.subr.bf16.mxu0 0
        %2520 = vmatpush1.bf16.msra.mxu0 0
        %2521 = vmatprep.subr.bf16.mxu0 0
        %2522 = vmatpush1.bf16.msra.mxu0 0
        %2523 = vmatprep.subr.bf16.mxu0 0
        %2524 = vmatpush1.bf16.msra.mxu0 0
        %2525 = vmatprep.subr.bf16.mxu0 0
        %2526 = vmatpush1.bf16.msra.mxu0 0
        %2527 = vmatprep.subr.bf16.mxu0 0
        %2528 = vmatpush1.bf16.msra.mxu0 0
        %2529 = vmatprep.subr.bf16.mxu0 0
        %2530 = vmatpush1.bf16.msra.mxu0 0
        %2531 = vmatprep.subr.bf16.mxu0 0
        %2532 = vmatpush1.bf16.msra.mxu0 0
        %2533 = vmatprep.subr.bf16.mxu0 0
        %2534 = vmatpush1.bf16.msra.mxu0 0
        %2535 = vmatprep.subr.bf16.mxu0 0
        %2536 = vmatpush1.bf16.msra.mxu0 0
        %2537 = vmatprep.mubr.bf16.mxu0 0
        %2538 = vmatmul.mubr.bf16.gmra.mrb[0].mxu0 %v2503
        %v2539 = vpop.f32.mrb[0].mxu0
        %v2540 = vadd.f32 %v2484, %v2539
        %v2541 = vpop.f32.mrb[0].mxu0
        %v2542 = vpop.f32.mrb[0].mxu0
        %v2543 = vadd.f32 %v2487, %v2542
        %v2544 = vpop.f32.mrb[0].mxu0
        %2545 = vdwg.mxu0
        %s2546 = scalar_lea.vmem %s4, 16
        %v2547 = vld [vmem:[%s2546] sm:$0xf]
        %v2548 = vld [vmem:[%s2546 + $0x4] sm:$0xf]
        %s2549 = scalar_lea.vmem [#allocation5], 32
        %v2550 = vld [vmem:[%s2549] sm:$0xf]
        %v2551 = vld [vmem:[%s2549 + $0x4] sm:$0xf]
        %v2552 = vld [vmem:[%s2549 + $0x8] sm:$0xf]
        %v2553 = vld [vmem:[%s2549 + $0xc] sm:$0xf]
        %v2556 = vunpack.c.l.b16 %v2547
        %v2557 = vunpack.c.l.b16 %v2548
        %v2558 = vpack.c.b16 %v2557, %v2556
        %v2560 = vsel %vm2329, %v2558, 0
        %2562 = vmatprep.subr.bf16.mxu0 0
        %2563 = vmatpush1.bf16.msra.mxu0 %v2314
        %2564 = vmatprep.subr.bf16.mxu0 0
        %2565 = vmatpush1.bf16.msra.mxu0 %v2315
        %2566 = vmatprep.subr.bf16.mxu0 0
        %2567 = vmatpush1.bf16.msra.mxu0 %v2316
        %2568 = vmatprep.subr.bf16.mxu0 0
        %2569 = vmatpush1.bf16.msra.mxu0 %v2317
        %2570 = vmatprep.subr.bf16.mxu0 0
        %2571 = vmatpush1.bf16.msra.mxu0 0
        %2572 = vmatprep.subr.bf16.mxu0 0
        %2573 = vmatpush1.bf16.msra.mxu0 0
        %2574 = vmatprep.subr.bf16.mxu0 0
        %2575 = vmatpush1.bf16.msra.mxu0 0
        %2576 = vmatprep.subr.bf16.mxu0 0
        %2577 = vmatpush1.bf16.msra.mxu0 0
        %2578 = vmatprep.subr.bf16.mxu0 0
        %2579 = vmatpush1.bf16.msra.mxu0 0
        %2580 = vmatprep.subr.bf16.mxu0 0
        %2581 = vmatpush1.bf16.msra.mxu0 0
        %2582 = vmatprep.subr.bf16.mxu0 0
        %2583 = vmatpush1.bf16.msra.mxu0 0
        %2584 = vmatprep.subr.bf16.mxu0 0
        %2585 = vmatpush1.bf16.msra.mxu0 0
        %2586 = vmatprep.subr.bf16.mxu0 0
        %2587 = vmatpush1.bf16.msra.mxu0 0
        %2588 = vmatprep.subr.bf16.mxu0 0
        %2589 = vmatpush1.bf16.msra.mxu0 0
        %2590 = vmatprep.subr.bf16.mxu0 0
        %2591 = vmatpush1.bf16.msra.mxu0 0
        %2592 = vmatprep.subr.bf16.mxu0 0
        %2593 = vmatpush1.bf16.msra.mxu0 0
        %2594 = vmatprep.mubr.bf16.mxu0 0
        %2595 = vmatmul.mubr.bf16.gmra.mrb[0].mxu0 %v2560
        %v2596 = vpop.f32.mrb[0].mxu0
        %v2597 = vadd.f32 0.0, %v2596
        %v2598 = vpop.f32.mrb[0].mxu0
        %v2599 = vpop.f32.mrb[0].mxu0
        %v2600 = vadd.f32 0.0, %v2599
        %v2601 = vpop.f32.mrb[0].mxu0
        %2602 = vdwg.mxu0
        %v2603 = vpack.c.bf16 %v2600, %v2597
        %v2608 = vunpack.c.l.b16 %v2550
        %v2609 = vunpack.c.l.b16 %v2551
        %v2610 = vunpack.c.l.b16 %v2552
        %v2611 = vunpack.c.l.b16 %v2553
        %v2612 = vpack.c.b16 %v2609, %v2608
        %v2613 = vpack.c.b16 %v2611, %v2610
        %v2617 = vsel %vm2445, %v2603, 0
        %2619 = vmatprep.subr.bf16.mxu0 0
        %2620 = vmatpush1.bf16.msra.mxu0 %v2612
        %2621 = vmatprep.subr.bf16.mxu0 0
        %2622 = vmatpush1.bf16.msra.mxu0 %v2613
        %2623 = vmatprep.subr.bf16.mxu0 0
        %2624 = vmatpush1.bf16.msra.mxu0 0
        %2625 = vmatprep.subr.bf16.mxu0 0
        %2626 = vmatpush1.bf16.msra.mxu0 0
        %2627 = vmatprep.subr.bf16.mxu0 0
        %2628 = vmatpush1.bf16.msra.mxu0 0
        %2629 = vmatprep.subr.bf16.mxu0 0
        %2630 = vmatpush1.bf16.msra.mxu0 0
        %2631 = vmatprep.subr.bf16.mxu0 0
        %2632 = vmatpush1.bf16.msra.mxu0 0
        %2633 = vmatprep.subr.bf16.mxu0 0
        %2634 = vmatpush1.bf16.msra.mxu0 0
        %2635 = vmatprep.subr.bf16.mxu0 0
        %2636 = vmatpush1.bf16.msra.mxu0 0
        %2637 = vmatprep.subr.bf16.mxu0 0
        %2638 = vmatpush1.bf16.msra.mxu0 0
        %2639 = vmatprep.subr.bf16.mxu0 0
        %2640 = vmatpush1.bf16.msra.mxu0 0
        %2641 = vmatprep.subr.bf16.mxu0 0
        %2642 = vmatpush1.bf16.msra.mxu0 0
        %2643 = vmatprep.subr.bf16.mxu0 0
        %2644 = vmatpush1.bf16.msra.mxu0 0
        %2645 = vmatprep.subr.bf16.mxu0 0
        %2646 = vmatpush1.bf16.msra.mxu0 0
        %2647 = vmatprep.subr.bf16.mxu0 0
        %2648 = vmatpush1.bf16.msra.mxu0 0
        %2649 = vmatprep.subr.bf16.mxu0 0
        %2650 = vmatpush1.bf16.msra.mxu0 0
        %2651 = vmatprep.mubr.bf16.mxu0 0
        %2652 = vmatmul.mubr.bf16.gmra.mrb[0].mxu0 %v2617
        %v2653 = vpop.f32.mrb[0].mxu0
        %v2654 = vadd.f32 0.0, %v2653
        %v2655 = vpop.f32.mrb[0].mxu0
        %v2656 = vpop.f32.mrb[0].mxu0
        %v2657 = vadd.f32 0.0, %v2656
        %v2658 = vpop.f32.mrb[0].mxu0
        %2659 = vdwg.mxu0
        %v2660 = vadd.f32 %v2540, %v2654
        %v2661 = vadd.f32 %v2543, %v2657
        %s2662 = scalar_lea.vmem %s4, 24
        %v2663 = vld [vmem:[%s2662] sm:$0xf]
        %v2664 = vld [vmem:[%s2662 + $0x4] sm:$0xf]
        %s2665 = scalar_lea.vmem [#allocation5], 48
        %v2666 = vld [vmem:[%s2665] sm:$0xf]
        %v2667 = vld [vmem:[%s2665 + $0x4] sm:$0xf]
        %v2668 = vld [vmem:[%s2665 + $0x8] sm:$0xf]
        %v2669 = vld [vmem:[%s2665 + $0xc] sm:$0xf]
        %v2672 = vunpack.c.l.b16 %v2663
        %v2673 = vunpack.c.l.b16 %v2664
        %v2674 = vpack.c.b16 %v2673, %v2672
        %v2676 = vsel %vm2329, %v2674, 0
        %2678 = vmatprep.subr.bf16.mxu0 0
        %2679 = vmatpush1.bf16.msra.mxu0 %v2314
        %2680 = vmatprep.subr.bf16.mxu0 0
        %2681 = vmatpush1.bf16.msra.mxu0 %v2315
        %2682 = vmatprep.subr.bf16.mxu0 0
        %2683 = vmatpush1.bf16.msra.mxu0 %v2316
        %2684 = vmatprep.subr.bf16.mxu0 0
        %2685 = vmatpush1.bf16.msra.mxu0 %v2317
        %2686 = vmatprep.subr.bf16.mxu0 0
        %2687 = vmatpush1.bf16.msra.mxu0 0
        %2688 = vmatprep.subr.bf16.mxu0 0
        %2689 = vmatpush1.bf16.msra.mxu0 0
        %2690 = vmatprep.subr.bf16.mxu0 0
        %2691 = vmatpush1.bf16.msra.mxu0 0
        %2692 = vmatprep.subr.bf16.mxu0 0
        %2693 = vmatpush1.bf16.msra.mxu0 0
        %2694 = vmatprep.subr.bf16.mxu0 0
        %2695 = vmatpush1.bf16.msra.mxu0 0
        %2696 = vmatprep.subr.bf16.mxu0 0
        %2697 = vmatpush1.bf16.msra.mxu0 0
        %2698 = vmatprep.subr.bf16.mxu0 0
        %2699 = vmatpush1.bf16.msra.mxu0 0
        %2700 = vmatprep.subr.bf16.mxu0 0
        %2701 = vmatpush1.bf16.msra.mxu0 0
        %2702 = vmatprep.subr.bf16.mxu0 0
        %2703 = vmatpush1.bf16.msra.mxu0 0
        %2704 = vmatprep.subr.bf16.mxu0 0
        %2705 = vmatpush1.bf16.msra.mxu0 0
        %2706 = vmatprep.subr.bf16.mxu0 0
        %2707 = vmatpush1.bf16.msra.mxu0 0
        %2708 = vmatprep.subr.bf16.mxu0 0
        %2709 = vmatpush1.bf16.msra.mxu0 0
        %2710 = vmatprep.mubr.bf16.mxu0 0
        %2711 = vmatmul.mubr.bf16.gmra.mrb[0].mxu0 %v2676
        %v2712 = vpop.f32.mrb[0].mxu0
        %v2713 = vadd.f32 0.0, %v2712
        %v2714 = vpop.f32.mrb[0].mxu0
        %v2715 = vpop.f32.mrb[0].mxu0
        %v2716 = vadd.f32 0.0, %v2715
        %v2717 = vpop.f32.mrb[0].mxu0
        %2718 = vdwg.mxu0
        %v2719 = vpack.c.bf16 %v2716, %v2713
        %v2724 = vunpack.c.l.b16 %v2666
        %v2725 = vunpack.c.l.b16 %v2667
        %v2726 = vunpack.c.l.b16 %v2668
        %v2727 = vunpack.c.l.b16 %v2669
        %v2728 = vpack.c.b16 %v2725, %v2724
        %v2729 = vpack.c.b16 %v2727, %v2726
        %v2733 = vsel %vm2445, %v2719, 0
        %2735 = vmatprep.subr.bf16.mxu0 0
        %2736 = vmatpush1.bf16.msra.mxu0 %v2728
        %2737 = vmatprep.subr.bf16.mxu0 0
        %2738 = vmatpush1.bf16.msra.mxu0 %v2729
        %2739 = vmatprep.subr.bf16.mxu0 0
        %2740 = vmatpush1.bf16.msra.mxu0 0
        %2741 = vmatprep.subr.bf16.mxu0 0
        %2742 = vmatpush1.bf16.msra.mxu0 0
        %2743 = vmatprep.subr.bf16.mxu0 0
        %2744 = vmatpush1.bf16.msra.mxu0 0
        %2745 = vmatprep.subr.bf16.mxu0 0
        %2746 = vmatpush1.bf16.msra.mxu0 0
        %2747 = vmatprep.subr.bf16.mxu0 0
        %2748 = vmatpush1.bf16.msra.mxu0 0
        %2749 = vmatprep.subr.bf16.mxu0 0
        %2750 = vmatpush1.bf16.msra.mxu0 0
        %2751 = vmatprep.subr.bf16.mxu0 0
        %2752 = vmatpush1.bf16.msra.mxu0 0
        %2753 = vmatprep.subr.bf16.mxu0 0
        %2754 = vmatpush1.bf16.msra.mxu0 0
        %2755 = vmatprep.subr.bf16.mxu0 0
        %2756 = vmatpush1.bf16.msra.mxu0 0
        %2757 = vmatprep.subr.bf16.mxu0 0
        %2758 = vmatpush1.bf16.msra.mxu0 0
        %2759 = vmatprep.subr.bf16.mxu0 0
        %2760 = vmatpush1.bf16.msra.mxu0 0
        %2761 = vmatprep.subr.bf16.mxu0 0
        %2762 = vmatpush1.bf16.msra.mxu0 0
        %2763 = vmatprep.subr.bf16.mxu0 0
        %2764 = vmatpush1.bf16.msra.mxu0 0
        %2765 = vmatprep.subr.bf16.mxu0 0
        %2766 = vmatpush1.bf16.msra.mxu0 0
        %2767 = vmatprep.mubr.bf16.mxu0 0
        %2768 = vmatmul.mubr.bf16.gmra.mrb[0].mxu0 %v2733
        %v2769 = vpop.f32.mrb[0].mxu0
        %v2770 = vadd.f32 0.0, %v2769
        %v2771 = vpop.f32.mrb[0].mxu0
        %v2772 = vpop.f32.mrb[0].mxu0
        %v2773 = vadd.f32 0.0, %v2772
        %v2774 = vpop.f32.mrb[0].mxu0
        %2775 = vdwg.mxu0
        %v2776 = vadd.f32 %v2660, %v2770
        %v2777 = vadd.f32 %v2661, %v2773
        %s2778 = scalar_lea.vmem %s4, 32
        %v2779 = vld [vmem:[%s2778] sm:$0xf]
        %v2780 = vld [vmem:[%s2778 + $0x4] sm:$0xf]
        %s2781 = scalar_lea.vmem [#allocation5], 64
        %v2782 = vld [vmem:[%s2781] sm:$0xf]
        %v2783 = vld [vmem:[%s2781 + $0x4] sm:$0xf]
        %v2784 = vld [vmem:[%s2781 + $0x8] sm:$0xf]
        %v2785 = vld [vmem:[%s2781 + $0xc] sm:$0xf]
        %v2788 = vunpack.c.l.b16 %v2779
        %v2789 = vunpack.c.l.b16 %v2780
        %v2790 = vpack.c.b16 %v2789, %v2788
        %v2792 = vsel %vm2329, %v2790, 0
        %2794 = vmatprep.subr.bf16.mxu0 0
        %2795 = vmatpush1.bf16.msra.mxu0 %v2314
        %2796 = vmatprep.subr.bf16.mxu0 0
        %2797 = vmatpush1.bf16.msra.mxu0 %v2315
        %2798 = vmatprep.subr.bf16.mxu0 0
        %2799 = vmatpush1.bf16.msra.mxu0 %v2316
        %2800 = vmatprep.subr.bf16.mxu0 0
        %2801 = vmatpush1.bf16.msra.mxu0 %v2317
        %2802 = vmatprep.subr.bf16.mxu0 0
        %2803 = vmatpush1.bf16.msra.mxu0 0
        %2804 = vmatprep.subr.bf16.mxu0 0
        %2805 = vmatpush1.bf16.msra.mxu0 0
        %2806 = vmatprep.subr.bf16.mxu0 0
        %2807 = vmatpush1.bf16.msra.mxu0 0
        %2808 = vmatprep.subr.bf16.mxu0 0
        %2809 = vmatpush1.bf16.msra.mxu0 0
        %2810 = vmatprep.subr.bf16.mxu0 0
        %2811 = vmatpush1.bf16.msra.mxu0 0
        %2812 = vmatprep.subr.bf16.mxu0 0
        %2813 = vmatpush1.bf16.msra.mxu0 0
        %2814 = vmatprep.subr.bf16.mxu0 0
        %2815 = vmatpush1.bf16.msra.mxu0 0
        %2816 = vmatprep.subr.bf16.mxu0 0
        %2817 = vmatpush1.bf16.msra.mxu0 0
        %2818 = vmatprep.subr.bf16.mxu0 0
        %2819 = vmatpush1.bf16.msra.mxu0 0
        %2820 = vmatprep.subr.bf16.mxu0 0
        %2821 = vmatpush1.bf16.msra.mxu0 0
        %2822 = vmatprep.subr.bf16.mxu0 0
        %2823 = vmatpush1.bf16.msra.mxu0 0
        %2824 = vmatprep.subr.bf16.mxu0 0
        %2825 = vmatpush1.bf16.msra.mxu0 0
        %2826 = vmatprep.mubr.bf16.mxu0 0
        %2827 = vmatmul.mubr.bf16.gmra.mrb[0].mxu0 %v2792
        %v2828 = vpop.f32.mrb[0].mxu0
        %v2829 = vadd.f32 0.0, %v2828
        %v2830 = vpop.f32.mrb[0].mxu0
        %v2831 = vpop.f32.mrb[0].mxu0
        %v2832 = vadd.f32 0.0, %v2831
        %v2833 = vpop.f32.mrb[0].mxu0
        %2834 = vdwg.mxu0
        %v2835 = vpack.c.bf16 %v2832, %v2829
        %v2840 = vunpack.c.l.b16 %v2782
        %v2841 = vunpack.c.l.b16 %v2783
        %v2842 = vunpack.c.l.b16 %v2784
        %v2843 = vunpack.c.l.b16 %v2785
        %v2844 = vpack.c.b16 %v2841, %v2840
        %v2845 = vpack.c.b16 %v2843, %v2842
        %v2849 = vsel %vm2445, %v2835, 0
        %2851 = vmatprep.subr.bf16.mxu0 0
        %2852 = vmatpush1.bf16.msra.mxu0 %v2844
        %2853 = vmatprep.subr.bf16.mxu0 0
        %2854 = vmatpush1.bf16.msra.mxu0 %v2845
        %2855 = vmatprep.subr.bf16.mxu0 0
        %2856 = vmatpush1.bf16.msra.mxu0 0
        %2857 = vmatprep.subr.bf16.mxu0 0
        %2858 = vmatpush1.bf16.msra.mxu0 0
        %2859 = vmatprep.subr.bf16.mxu0 0
        %2860 = vmatpush1.bf16.msra.mxu0 0
        %2861 = vmatprep.subr.bf16.mxu0 0
        %2862 = vmatpush1.bf16.msra.mxu0 0
        %2863 = vmatprep.subr.bf16.mxu0 0
        %2864 = vmatpush1.bf16.msra.mxu0 0
        %2865 = vmatprep.subr.bf16.mxu0 0
        %2866 = vmatpush1.bf16.msra.mxu0 0
        %2867 = vmatprep.subr.bf16.mxu0 0
        %2868 = vmatpush1.bf16.msra.mxu0 0
        %2869 = vmatprep.subr.bf16.mxu0 0
        %2870 = vmatpush1.bf16.msra.mxu0 0
        %2871 = vmatprep.subr.bf16.mxu0 0
        %2872 = vmatpush1.bf16.msra.mxu0 0
        %2873 = vmatprep.subr.bf16.mxu0 0
        %2874 = vmatpush1.bf16.msra.mxu0 0
        %2875 = vmatprep.subr.bf16.mxu0 0
        %2876 = vmatpush1.bf16.msra.mxu0 0
        %2877 = vmatprep.subr.bf16.mxu0 0
        %2878 = vmatpush1.bf16.msra.mxu0 0
        %2879 = vmatprep.subr.bf16.mxu0 0
        %2880 = vmatpush1.bf16.msra.mxu0 0
        %2881 = vmatprep.subr.bf16.mxu0 0
        %2882 = vmatpush1.bf16.msra.mxu0 0
        %2883 = vmatprep.mubr.bf16.mxu0 0
        %2884 = vmatmul.mubr.bf16.gmra.mrb[0].mxu0 %v2849
        %v2885 = vpop.f32.mrb[0].mxu0
        %v2886 = vadd.f32 0.0, %v2885
        %v2887 = vpop.f32.mrb[0].mxu0
        %v2888 = vpop.f32.mrb[0].mxu0
        %v2889 = vadd.f32 0.0, %v2888
        %v2890 = vpop.f32.mrb[0].mxu0
        %2891 = vdwg.mxu0
        %v2892 = vadd.f32 %v2776, %v2886
        %v2893 = vadd.f32 %v2777, %v2889
        %s2894 = scalar_lea.vmem %s4, 40
        %v2895 = vld [vmem:[%s2894] sm:$0xf]
        %v2896 = vld [vmem:[%s2894 + $0x4] sm:$0xf]
        %s2897 = scalar_lea.vmem [#allocation5], 80
        %v2898 = vld [vmem:[%s2897] sm:$0xf]
        %v2899 = vld [vmem:[%s2897 + $0x4] sm:$0xf]
        %v2900 = vld [vmem:[%s2897 + $0x8] sm:$0xf]
        %v2901 = vld [vmem:[%s2897 + $0xc] sm:$0xf]
        %v2904 = vunpack.c.l.b16 %v2895
        %v2905 = vunpack.c.l.b16 %v2896
        %v2906 = vpack.c.b16 %v2905, %v2904
        %v2908 = vsel %vm2329, %v2906, 0
        %2910 = vmatprep.subr.bf16.mxu0 0
        %2911 = vmatpush1.bf16.msra.mxu0 %v2314
        %2912 = vmatprep.subr.bf16.mxu0 0
        %2913 = vmatpush1.bf16.msra.mxu0 %v2315
        %2914 = vmatprep.subr.bf16.mxu0 0
        %2915 = vmatpush1.bf16.msra.mxu0 %v2316
        %2916 = vmatprep.subr.bf16.mxu0 0
        %2917 = vmatpush1.bf16.msra.mxu0 %v2317
        %2918 = vmatprep.subr.bf16.mxu0 0
        %2919 = vmatpush1.bf16.msra.mxu0 0
        %2920 = vmatprep.subr.bf16.mxu0 0
        %2921 = vmatpush1.bf16.msra.mxu0 0
        %2922 = vmatprep.subr.bf16.mxu0 0
        %2923 = vmatpush1.bf16.msra.mxu0 0
        %2924 = vmatprep.subr.bf16.mxu0 0
        %2925 = vmatpush1.bf16.msra.mxu0 0
        %2926 = vmatprep.subr.bf16.mxu0 0
        %2927 = vmatpush1.bf16.msra.mxu0 0
        %2928 = vmatprep.subr.bf16.mxu0 0
        %2929 = vmatpush1.bf16.msra.mxu0 0
        %2930 = vmatprep.subr.bf16.mxu0 0
        %2931 = vmatpush1.bf16.msra.mxu0 0
        %2932 = vmatprep.subr.bf16.mxu0 0
        %2933 = vmatpush1.bf16.msra.mxu0 0
        %2934 = vmatprep.subr.bf16.mxu0 0
        %2935 = vmatpush1.bf16.msra.mxu0 0
        %2936 = vmatprep.subr.bf16.mxu0 0
        %2937 = vmatpush1.bf16.msra.mxu0 0
        %2938 = vmatprep.subr.bf16.mxu0 0
        %2939 = vmatpush1.bf16.msra.mxu0 0
        %2940 = vmatprep.subr.bf16.mxu0 0
        %2941 = vmatpush1.bf16.msra.mxu0 0
        %2942 = vmatprep.mubr.bf16.mxu0 0
        %2943 = vmatmul.mubr.bf16.gmra.mrb[0].mxu0 %v2908
        %v2944 = vpop.f32.mrb[0].mxu0
        %v2945 = vadd.f32 0.0, %v2944
        %v2946 = vpop.f32.mrb[0].mxu0
        %v2947 = vpop.f32.mrb[0].mxu0
        %v2948 = vadd.f32 0.0, %v2947
        %v2949 = vpop.f32.mrb[0].mxu0
        %2950 = vdwg.mxu0
        %v2951 = vpack.c.bf16 %v2948, %v2945
        %v2956 = vunpack.c.l.b16 %v2898
        %v2957 = vunpack.c.l.b16 %v2899
        %v2958 = vunpack.c.l.b16 %v2900
        %v2959 = vunpack.c.l.b16 %v2901
        %v2960 = vpack.c.b16 %v2957, %v2956
        %v2961 = vpack.c.b16 %v2959, %v2958
        %v2965 = vsel %vm2445, %v2951, 0
        %2967 = vmatprep.subr.bf16.mxu0 0
        %2968 = vmatpush1.bf16.msra.mxu0 %v2960
        %2969 = vmatprep.subr.bf16.mxu0 0
        %2970 = vmatpush1.bf16.msra.mxu0 %v2961
        %2971 = vmatprep.subr.bf16.mxu0 0
        %2972 = vmatpush1.bf16.msra.mxu0 0
        %2973 = vmatprep.subr.bf16.mxu0 0
        %2974 = vmatpush1.bf16.msra.mxu0 0
        %2975 = vmatprep.subr.bf16.mxu0 0
        %2976 = vmatpush1.bf16.msra.mxu0 0
        %2977 = vmatprep.subr.bf16.mxu0 0
        %2978 = vmatpush1.bf16.msra.mxu0 0
        %2979 = vmatprep.subr.bf16.mxu0 0
        %2980 = vmatpush1.bf16.msra.mxu0 0
        %2981 = vmatprep.subr.bf16.mxu0 0
        %2982 = vmatpush1.bf16.msra.mxu0 0
        %2983 = vmatprep.subr.bf16.mxu0 0
        %2984 = vmatpush1.bf16.msra.mxu0 0
        %2985 = vmatprep.subr.bf16.mxu0 0
        %2986 = vmatpush1.bf16.msra.mxu0 0
        %2987 = vmatprep.subr.bf16.mxu0 0
        %2988 = vmatpush1.bf16.msra.mxu0 0
        %2989 = vmatprep.subr.bf16.mxu0 0
        %2990 = vmatpush1.bf16.msra.mxu0 0
        %2991 = vmatprep.subr.bf16.mxu0 0
        %2992 = vmatpush1.bf16.msra.mxu0 0
        %2993 = vmatprep.subr.bf16.mxu0 0
        %2994 = vmatpush1.bf16.msra.mxu0 0
        %2995 = vmatprep.subr.bf16.mxu0 0
        %2996 = vmatpush1.bf16.msra.mxu0 0
        %2997 = vmatprep.subr.bf16.mxu0 0
        %2998 = vmatpush1.bf16.msra.mxu0 0
        %2999 = vmatprep.mubr.bf16.mxu0 0
        %3000 = vmatmul.mubr.bf16.gmra.mrb[0].mxu0 %v2965
        %v3001 = vpop.f32.mrb[0].mxu0
        %v3002 = vadd.f32 0.0, %v3001
        %v3003 = vpop.f32.mrb[0].mxu0
        %v3004 = vpop.f32.mrb[0].mxu0
        %v3005 = vadd.f32 0.0, %v3004
        %v3006 = vpop.f32.mrb[0].mxu0
        %3007 = vdwg.mxu0
        %v3008 = vadd.f32 %v2892, %v3002
        %v3009 = vadd.f32 %v2893, %v3005
        %s3010 = scalar_lea.vmem %s4, 48
        %v3011 = vld [vmem:[%s3010] sm:$0xf]
        %v3012 = vld [vmem:[%s3010 + $0x4] sm:$0xf]
        %s3013 = scalar_lea.vmem [#allocation5], 96
        %v3014 = vld [vmem:[%s3013] sm:$0xf]
        %v3015 = vld [vmem:[%s3013 + $0x4] sm:$0xf]
        %v3016 = vld [vmem:[%s3013 + $0x8] sm:$0xf]
        %v3017 = vld [vmem:[%s3013 + $0xc] sm:$0xf]
        %v3020 = vunpack.c.l.b16 %v3011
        %v3021 = vunpack.c.l.b16 %v3012
        %v3022 = vpack.c.b16 %v3021, %v3020
        %v3024 = vsel %vm2329, %v3022, 0
        %3026 = vmatprep.subr.bf16.mxu0 0
        %3027 = vmatpush1.bf16.msra.mxu0 %v2314
        %3028 = vmatprep.subr.bf16.mxu0 0
        %3029 = vmatpush1.bf16.msra.mxu0 %v2315
        %3030 = vmatprep.subr.bf16.mxu0 0
        %3031 = vmatpush1.bf16.msra.mxu0 %v2316
        %3032 = vmatprep.subr.bf16.mxu0 0
        %3033 = vmatpush1.bf16.msra.mxu0 %v2317
        %3034 = vmatprep.subr.bf16.mxu0 0
        %3035 = vmatpush1.bf16.msra.mxu0 0
        %3036 = vmatprep.subr.bf16.mxu0 0
        %3037 = vmatpush1.bf16.msra.mxu0 0
        %3038 = vmatprep.subr.bf16.mxu0 0
        %3039 = vmatpush1.bf16.msra.mxu0 0
        %3040 = vmatprep.subr.bf16.mxu0 0
        %3041 = vmatpush1.bf16.msra.mxu0 0
        %3042 = vmatprep.subr.bf16.mxu0 0
        %3043 = vmatpush1.bf16.msra.mxu0 0
        %3044 = vmatprep.subr.bf16.mxu0 0
        %3045 = vmatpush1.bf16.msra.mxu0 0
        %3046 = vmatprep.subr.bf16.mxu0 0
        %3047 = vmatpush1.bf16.msra.mxu0 0
        %3048 = vmatprep.subr.bf16.mxu0 0
        %3049 = vmatpush1.bf16.msra.mxu0 0
        %3050 = vmatprep.subr.bf16.mxu0 0
        %3051 = vmatpush1.bf16.msra.mxu0 0
        %3052 = vmatprep.subr.bf16.mxu0 0
        %3053 = vmatpush1.bf16.msra.mxu0 0
        %3054 = vmatprep.subr.bf16.mxu0 0
        %3055 = vmatpush1.bf16.msra.mxu0 0
        %3056 = vmatprep.subr.bf16.mxu0 0
        %3057 = vmatpush1.bf16.msra.mxu0 0
        %3058 = vmatprep.mubr.bf16.mxu0 0
        %3059 = vmatmul.mubr.bf16.gmra.mrb[0].mxu0 %v3024
        %v3060 = vpop.f32.mrb[0].mxu0
        %v3061 = vadd.f32 0.0, %v3060
        %v3062 = vpop.f32.mrb[0].mxu0
        %v3063 = vpop.f32.mrb[0].mxu0
        %v3064 = vadd.f32 0.0, %v3063
        %v3065 = vpop.f32.mrb[0].mxu0
        %3066 = vdwg.mxu0
        %v3067 = vpack.c.bf16 %v3064, %v3061
        %v3072 = vunpack.c.l.b16 %v3014
        %v3073 = vunpack.c.l.b16 %v3015
        %v3074 = vunpack.c.l.b16 %v3016
        %v3075 = vunpack.c.l.b16 %v3017
        %v3076 = vpack.c.b16 %v3073, %v3072
        %v3077 = vpack.c.b16 %v3075, %v3074
        %v3081 = vsel %vm2445, %v3067, 0
        %3083 = vmatprep.subr.bf16.mxu0 0
        %3084 = vmatpush1.bf16.msra.mxu0 %v3076
        %3085 = vmatprep.subr.bf16.mxu0 0
        %3086 = vmatpush1.bf16.msra.mxu0 %v3077
        %3087 = vmatprep.subr.bf16.mxu0 0
        %3088 = vmatpush1.bf16.msra.mxu0 0
        %3089 = vmatprep.subr.bf16.mxu0 0
        %3090 = vmatpush1.bf16.msra.mxu0 0
        %3091 = vmatprep.subr.bf16.mxu0 0
        %3092 = vmatpush1.bf16.msra.mxu0 0
        %3093 = vmatprep.subr.bf16.mxu0 0
        %3094 = vmatpush1.bf16.msra.mxu0 0
        %3095 = vmatprep.subr.bf16.mxu0 0
        %3096 = vmatpush1.bf16.msra.mxu0 0
        %3097 = vmatprep.subr.bf16.mxu0 0
        %3098 = vmatpush1.bf16.msra.mxu0 0
        %3099 = vmatprep.subr.bf16.mxu0 0
        %3100 = vmatpush1.bf16.msra.mxu0 0
        %3101 = vmatprep.subr.bf16.mxu0 0
        %3102 = vmatpush1.bf16.msra.mxu0 0
        %3103 = vmatprep.subr.bf16.mxu0 0
        %3104 = vmatpush1.bf16.msra.mxu0 0
        %3105 = vmatprep.subr.bf16.mxu0 0
        %3106 = vmatpush1.bf16.msra.mxu0 0
        %3107 = vmatprep.subr.bf16.mxu0 0
        %3108 = vmatpush1.bf16.msra.mxu0 0
        %3109 = vmatprep.subr.bf16.mxu0 0
        %3110 = vmatpush1.bf16.msra.mxu0 0
        %3111 = vmatprep.subr.bf16.mxu0 0
        %3112 = vmatpush1.bf16.msra.mxu0 0
        %3113 = vmatprep.subr.bf16.mxu0 0
        %3114 = vmatpush1.bf16.msra.mxu0 0
        %3115 = vmatprep.mubr.bf16.mxu0 0
        %3116 = vmatmul.mubr.bf16.gmra.mrb[0].mxu0 %v3081
        %v3117 = vpop.f32.mrb[0].mxu0
        %v3118 = vadd.f32 0.0, %v3117
        %v3119 = vpop.f32.mrb[0].mxu0
        %v3120 = vpop.f32.mrb[0].mxu0
        %v3121 = vadd.f32 0.0, %v3120
        %v3122 = vpop.f32.mrb[0].mxu0
        %3123 = vdwg.mxu0
        %v3124 = vadd.f32 %v3008, %v3118
        %v3125 = vadd.f32 %v3009, %v3121
        %s3126 = scalar_lea.vmem %s4, 56
        %v3127 = vld [vmem:[%s3126] sm:$0xf]
        %v3128 = vld [vmem:[%s3126 + $0x4] sm:$0xf]
        %s3129 = scalar_lea.vmem [#allocation5], 112
        %v3130 = vld [vmem:[%s3129] sm:$0xf]
        %v3131 = vld [vmem:[%s3129 + $0x4] sm:$0xf]
        %v3132 = vld [vmem:[%s3129 + $0x8] sm:$0xf]
        %v3133 = vld [vmem:[%s3129 + $0xc] sm:$0xf]
        %v3136 = vunpack.c.l.b16 %v3127
        %v3137 = vunpack.c.l.b16 %v3128
        %v3138 = vpack.c.b16 %v3137, %v3136
        %v3140 = vsel %vm2329, %v3138, 0
        %3142 = vmatprep.subr.bf16.mxu0 0
        %3143 = vmatpush1.bf16.msra.mxu0 %v2314
        %3144 = vmatprep.subr.bf16.mxu0 0
        %3145 = vmatpush1.bf16.msra.mxu0 %v2315
        %3146 = vmatprep.subr.bf16.mxu0 0
        %3147 = vmatpush1.bf16.msra.mxu0 %v2316
        %3148 = vmatprep.subr.bf16.mxu0 0
        %3149 = vmatpush1.bf16.msra.mxu0 %v2317
        %3150 = vmatprep.subr.bf16.mxu0 0
        %3151 = vmatpush1.bf16.msra.mxu0 0
        %3152 = vmatprep.subr.bf16.mxu0 0
        %3153 = vmatpush1.bf16.msra.mxu0 0
        %3154 = vmatprep.subr.bf16.mxu0 0
        %3155 = vmatpush1.bf16.msra.mxu0 0
        %3156 = vmatprep.subr.bf16.mxu0 0
        %3157 = vmatpush1.bf16.msra.mxu0 0
        %3158 = vmatprep.subr.bf16.mxu0 0
        %3159 = vmatpush1.bf16.msra.mxu0 0
        %3160 = vmatprep.subr.bf16.mxu0 0
        %3161 = vmatpush1.bf16.msra.mxu0 0
        %3162 = vmatprep.subr.bf16.mxu0 0
        %3163 = vmatpush1.bf16.msra.mxu0 0
        %3164 = vmatprep.subr.bf16.mxu0 0
        %3165 = vmatpush1.bf16.msra.mxu0 0
        %3166 = vmatprep.subr.bf16.mxu0 0
        %3167 = vmatpush1.bf16.msra.mxu0 0
        %3168 = vmatprep.subr.bf16.mxu0 0
        %3169 = vmatpush1.bf16.msra.mxu0 0
        %3170 = vmatprep.subr.bf16.mxu0 0
        %3171 = vmatpush1.bf16.msra.mxu0 0
        %3172 = vmatprep.subr.bf16.mxu0 0
        %3173 = vmatpush1.bf16.msra.mxu0 0
        %3174 = vmatprep.mubr.bf16.mxu0 0
        %3175 = vmatmul.mubr.bf16.gmra.mrb[0].mxu0 %v3140
        %v3176 = vpop.f32.mrb[0].mxu0
        %v3177 = vadd.f32 0.0, %v3176
        %v3178 = vpop.f32.mrb[0].mxu0
        %v3179 = vpop.f32.mrb[0].mxu0
        %v3180 = vadd.f32 0.0, %v3179
        %v3181 = vpop.f32.mrb[0].mxu0
        %3182 = vdwg.mxu0
        %v3183 = vpack.c.bf16 %v3180, %v3177
        %v3188 = vunpack.c.l.b16 %v3130
        %v3189 = vunpack.c.l.b16 %v3131
        %v3190 = vunpack.c.l.b16 %v3132
        %v3191 = vunpack.c.l.b16 %v3133
        %v3192 = vpack.c.b16 %v3189, %v3188
        %v3193 = vpack.c.b16 %v3191, %v3190
        %v3197 = vsel %vm2445, %v3183, 0
        %3199 = vmatprep.subr.bf16.mxu0 0
        %3200 = vmatpush1.bf16.msra.mxu0 %v3192
        %3201 = vmatprep.subr.bf16.mxu0 0
        %3202 = vmatpush1.bf16.msra.mxu0 %v3193
        %3203 = vmatprep.subr.bf16.mxu0 0
        %3204 = vmatpush1.bf16.msra.mxu0 0
        %3205 = vmatprep.subr.bf16.mxu0 0
        %3206 = vmatpush1.bf16.msra.mxu0 0
        %3207 = vmatprep.subr.bf16.mxu0 0
        %3208 = vmatpush1.bf16.msra.mxu0 0
        %3209 = vmatprep.subr.bf16.mxu0 0
        %3210 = vmatpush1.bf16.msra.mxu0 0
        %3211 = vmatprep.subr.bf16.mxu0 0
        %3212 = vmatpush1.bf16.msra.mxu0 0
        %3213 = vmatprep.subr.bf16.mxu0 0
        %3214 = vmatpush1.bf16.msra.mxu0 0
        %3215 = vmatprep.subr.bf16.mxu0 0
        %3216 = vmatpush1.bf16.msra.mxu0 0
        %3217 = vmatprep.subr.bf16.mxu0 0
        %3218 = vmatpush1.bf16.msra.mxu0 0
        %3219 = vmatprep.subr.bf16.mxu0 0
        %3220 = vmatpush1.bf16.msra.mxu0 0
        %3221 = vmatprep.subr.bf16.mxu0 0
        %3222 = vmatpush1.bf16.msra.mxu0 0
        %3223 = vmatprep.subr.bf16.mxu0 0
        %3224 = vmatpush1.bf16.msra.mxu0 0
        %3225 = vmatprep.subr.bf16.mxu0 0
        %3226 = vmatpush1.bf16.msra.mxu0 0
        %3227 = vmatprep.subr.bf16.mxu0 0
        %3228 = vmatpush1.bf16.msra.mxu0 0
        %3229 = vmatprep.subr.bf16.mxu0 0
        %3230 = vmatpush1.bf16.msra.mxu0 0
        %3231 = vmatprep.mubr.bf16.mxu0 0
        %3232 = vmatmul.mubr.bf16.gmra.mrb[0].mxu0 %v3197
        %v3233 = vpop.f32.mrb[0].mxu0
        %v3234 = vadd.f32 0.0, %v3233
        %v3235 = vpop.f32.mrb[0].mxu0
        %v3236 = vpop.f32.mrb[0].mxu0
        %v3237 = vadd.f32 0.0, %v3236
        %v3238 = vpop.f32.mrb[0].mxu0
        %3239 = vdwg.mxu0
        %v3240 = vadd.f32 %v3124, %v3234
        %v3241 = vadd.f32 %v3125, %v3237
        %s3242 = scalar_lea.vmem %s4, 64
        %v3243 = vld [vmem:[%s3242] sm:$0xf]
        %v3244 = vld [vmem:[%s3242 + $0x4] sm:$0xf]
        %s3245 = scalar_lea.vmem [#allocation5], 128
        %v3246 = vld [vmem:[%s3245] sm:$0xf]
        %v3247 = vld [vmem:[%s3245 + $0x4] sm:$0xf]
        %v3248 = vld [vmem:[%s3245 + $0x8] sm:$0xf]
        %v3249 = vld [vmem:[%s3245 + $0xc] sm:$0xf]
        %v3252 = vunpack.c.l.b16 %v3243
        %v3253 = vunpack.c.l.b16 %v3244
        %v3254 = vpack.c.b16 %v3253, %v3252
        %v3256 = vsel %vm2329, %v3254, 0
        %3258 = vmatprep.subr.bf16.mxu0 0
        %3259 = vmatpush1.bf16.msra.mxu0 %v2314
        %3260 = vmatprep.subr.bf16.mxu0 0
        %3261 = vmatpush1.bf16.msra.mxu0 %v2315
        %3262 = vmatprep.subr.bf16.mxu0 0
        %3263 = vmatpush1.bf16.msra.mxu0 %v2316
        %3264 = vmatprep.subr.bf16.mxu0 0
        %3265 = vmatpush1.bf16.msra.mxu0 %v2317
        %3266 = vmatprep.subr.bf16.mxu0 0
        %3267 = vmatpush1.bf16.msra.mxu0 0
        %3268 = vmatprep.subr.bf16.mxu0 0
        %3269 = vmatpush1.bf16.msra.mxu0 0
        %3270 = vmatprep.subr.bf16.mxu0 0
        %3271 = vmatpush1.bf16.msra.mxu0 0
        %3272 = vmatprep.subr.bf16.mxu0 0
        %3273 = vmatpush1.bf16.msra.mxu0 0
        %3274 = vmatprep.subr.bf16.mxu0 0
        %3275 = vmatpush1.bf16.msra.mxu0 0
        %3276 = vmatprep.subr.bf16.mxu0 0
        %3277 = vmatpush1.bf16.msra.mxu0 0
        %3278 = vmatprep.subr.bf16.mxu0 0
        %3279 = vmatpush1.bf16.msra.mxu0 0
        %3280 = vmatprep.subr.bf16.mxu0 0
        %3281 = vmatpush1.bf16.msra.mxu0 0
        %3282 = vmatprep.subr.bf16.mxu0 0
        %3283 = vmatpush1.bf16.msra.mxu0 0
        %3284 = vmatprep.subr.bf16.mxu0 0
        %3285 = vmatpush1.bf16.msra.mxu0 0
        %3286 = vmatprep.subr.bf16.mxu0 0
        %3287 = vmatpush1.bf16.msra.mxu0 0
        %3288 = vmatprep.subr.bf16.mxu0 0
        %3289 = vmatpush1.bf16.msra.mxu0 0
        %3290 = vmatprep.mubr.bf16.mxu0 0
        %3291 = vmatmul.mubr.bf16.gmra.mrb[0].mxu0 %v3256
        %v3292 = vpop.f32.mrb[0].mxu0
        %v3293 = vadd.f32 0.0, %v3292
        %v3294 = vpop.f32.mrb[0].mxu0
        %v3295 = vpop.f32.mrb[0].mxu0
        %v3296 = vadd.f32 0.0, %v3295
        %v3297 = vpop.f32.mrb[0].mxu0
        %3298 = vdwg.mxu0
        %v3299 = vpack.c.bf16 %v3296, %v3293
        %v3304 = vunpack.c.l.b16 %v3246
        %v3305 = vunpack.c.l.b16 %v3247
        %v3306 = vunpack.c.l.b16 %v3248
        %v3307 = vunpack.c.l.b16 %v3249
        %v3308 = vpack.c.b16 %v3305, %v3304
        %v3309 = vpack.c.b16 %v3307, %v3306
        %v3313 = vsel %vm2445, %v3299, 0
        %3315 = vmatprep.subr.bf16.mxu0 0
        %3316 = vmatpush1.bf16.msra.mxu0 %v3308
        %3317 = vmatprep.subr.bf16.mxu0 0
        %3318 = vmatpush1.bf16.msra.mxu0 %v3309
        %3319 = vmatprep.subr.bf16.mxu0 0
        %3320 = vmatpush1.bf16.msra.mxu0 0
        %3321 = vmatprep.subr.bf16.mxu0 0
        %3322 = vmatpush1.bf16.msra.mxu0 0
        %3323 = vmatprep.subr.bf16.mxu0 0
        %3324 = vmatpush1.bf16.msra.mxu0 0
        %3325 = vmatprep.subr.bf16.mxu0 0
        %3326 = vmatpush1.bf16.msra.mxu0 0
        %3327 = vmatprep.subr.bf16.mxu0 0
        %3328 = vmatpush1.bf16.msra.mxu0 0
        %3329 = vmatprep.subr.bf16.mxu0 0
        %3330 = vmatpush1.bf16.msra.mxu0 0
        %3331 = vmatprep.subr.bf16.mxu0 0
        %3332 = vmatpush1.bf16.msra.mxu0 0
        %3333 = vmatprep.subr.bf16.mxu0 0
        %3334 = vmatpush1.bf16.msra.mxu0 0
        %3335 = vmatprep.subr.bf16.mxu0 0
        %3336 = vmatpush1.bf16.msra.mxu0 0
        %3337 = vmatprep.subr.bf16.mxu0 0
        %3338 = vmatpush1.bf16.msra.mxu0 0
        %3339 = vmatprep.subr.bf16.mxu0 0
        %3340 = vmatpush1.bf16.msra.mxu0 0
        %3341 = vmatprep.subr.bf16.mxu0 0
        %3342 = vmatpush1.bf16.msra.mxu0 0
        %3343 = vmatprep.subr.bf16.mxu0 0
        %3344 = vmatpush1.bf16.msra.mxu0 0
        %3345 = vmatprep.subr.bf16.mxu0 0
        %3346 = vmatpush1.bf16.msra.mxu0 0
        %3347 = vmatprep.mubr.bf16.mxu0 0
        %3348 = vmatmul.mubr.bf16.gmra.mrb[0].mxu0 %v3313
        %v3349 = vpop.f32.mrb[0].mxu0
        %v3350 = vadd.f32 0.0, %v3349
        %v3351 = vpop.f32.mrb[0].mxu0
        %v3352 = vpop.f32.mrb[0].mxu0
        %v3353 = vadd.f32 0.0, %v3352
        %v3354 = vpop.f32.mrb[0].mxu0
        %3355 = vdwg.mxu0
        %v3356 = vadd.f32 %v3240, %v3350
        %v3357 = vadd.f32 %v3241, %v3353
        %v3358 = vld [vmem:[#allocation7] sm:$0x1]
        %v3360 = vlaneseq
        %v3361 = vshrl.u32 %v3360, 7
        %v3362 = vsub.s32 0, %v3361
        %v3363 = vrot.slane %v3358, %v3362
        %v3365 = vadd.f32 %v3356, %v3363
        %v3366 = vadd.f32 %v3357, %v3363
        %v3367 = vmax.f32 %v3365, 0.0
        %v3368 = vmax.f32 %v3366, 0.0
        %v3369 = vpack.c.bf16 %v3368, %v3367
        %v3370 = vld [vmem:[%s7] sm:$0x3]
        %v3371 = vld [vmem:[#allocation8] sm:$0xf]
        %v3372 = vld [vmem:[#allocation8 + $0x4] sm:$0xf]
        %v3373 = vld [vmem:[#allocation8 + $0x8] sm:$0xf]
        %v3374 = vld [vmem:[#allocation8 + $0xc] sm:$0xf]
        %v3375 = vld [vmem:[#allocation8 + $0x10] sm:$0xf]
        %v3376 = vld [vmem:[#allocation8 + $0x14] sm:$0xf]
        %v3377 = vld [vmem:[#allocation8 + $0x18] sm:$0xf]
        %v3378 = vld [vmem:[#allocation8 + $0x1c] sm:$0xf]
        %vm3379 = vcmask 130048
        %v3381 = vsel %vm3379, %v3370, 0
        %3383 = vmatprep.subr.bf16.mxu0 0
        %3384 = vmatpush1.bf16.msra.mxu0 %v3369
        %3385 = vmatprep.subr.bf16.mxu0 0
        %3386 = vmatpush1.bf16.msra.mxu0 0
        %3387 = vmatprep.subr.bf16.mxu0 0
        %3388 = vmatpush1.bf16.msra.mxu0 0
        %3389 = vmatprep.subr.bf16.mxu0 0
        %3390 = vmatpush1.bf16.msra.mxu0 0
        %3391 = vmatprep.subr.bf16.mxu0 0
        %3392 = vmatpush1.bf16.msra.mxu0 0
        %3393 = vmatprep.subr.bf16.mxu0 0
        %3394 = vmatpush1.bf16.msra.mxu0 0
        %3395 = vmatprep.subr.bf16.mxu0 0
        %3396 = vmatpush1.bf16.msra.mxu0 0
        %3397 = vmatprep.subr.bf16.mxu0 0
        %3398 = vmatpush1.bf16.msra.mxu0 0
        %3399 = vmatprep.subr.bf16.mxu0 0
        %3400 = vmatpush1.bf16.msra.mxu0 0
        %3401 = vmatprep.subr.bf16.mxu0 0
        %3402 = vmatpush1.bf16.msra.mxu0 0
        %3403 = vmatprep.subr.bf16.mxu0 0
        %3404 = vmatpush1.bf16.msra.mxu0 0
        %3405 = vmatprep.subr.bf16.mxu0 0
        %3406 = vmatpush1.bf16.msra.mxu0 0
        %3407 = vmatprep.subr.bf16.mxu0 0
        %3408 = vmatpush1.bf16.msra.mxu0 0
        %3409 = vmatprep.subr.bf16.mxu0 0
        %3410 = vmatpush1.bf16.msra.mxu0 0
        %3411 = vmatprep.subr.bf16.mxu0 0
        %3412 = vmatpush1.bf16.msra.mxu0 0
        %3413 = vmatprep.subr.bf16.mxu0 0
        %3414 = vmatpush1.bf16.msra.mxu0 0
        %3415 = vmatprep.mubr.bf16.mxu0 0
        %3416 = vmatmul.mubr.bf16.gmra.mrb[0].mxu0 %v3381
        %v3417 = vpop.f32.mrb[0].mxu0
        %v3418 = vadd.f32 0.0, %v3417
        %v3419 = vpop.f32.mrb[0].mxu0
        %v3420 = vpop.f32.mrb[0].mxu0
        %v3421 = vpop.f32.mrb[0].mxu0
        %3422 = vdwg.mxu0
        %v3423 = vpack.c.bf16 %v3418, %v3418
        %s3424 = scalar_lea.vmem %s7, 2
        %v3425 = vld [vmem:[%s3424] sm:$0x3]
        %s3426 = scalar_lea.vmem [#allocation8], 32
        %v3427 = vld [vmem:[%s3426] sm:$0xf]
        %v3428 = vld [vmem:[%s3426 + $0x4] sm:$0xf]
        %v3429 = vld [vmem:[%s3426 + $0x8] sm:$0xf]
        %v3430 = vld [vmem:[%s3426 + $0xc] sm:$0xf]
        %v3431 = vld [vmem:[%s3426 + $0x10] sm:$0xf]
        %v3432 = vld [vmem:[%s3426 + $0x14] sm:$0xf]
        %v3433 = vld [vmem:[%s3426 + $0x18] sm:$0xf]
        %v3434 = vld [vmem:[%s3426 + $0x1c] sm:$0xf]
        %v3436 = vsel %vm3379, %v3425, 0
        %3438 = vmatprep.subr.bf16.mxu0 0
        %3439 = vmatpush1.bf16.msra.mxu0 %v3369
        %3440 = vmatprep.subr.bf16.mxu0 0
        %3441 = vmatpush1.bf16.msra.mxu0 0
        %3442 = vmatprep.subr.bf16.mxu0 0
        %3443 = vmatpush1.bf16.msra.mxu0 0
        %3444 = vmatprep.subr.bf16.mxu0 0
        %3445 = vmatpush1.bf16.msra.mxu0 0
        %3446 = vmatprep.subr.bf16.mxu0 0
        %3447 = vmatpush1.bf16.msra.mxu0 0
        %3448 = vmatprep.subr.bf16.mxu0 0
        %3449 = vmatpush1.bf16.msra.mxu0 0
        %3450 = vmatprep.subr.bf16.mxu0 0
        %3451 = vmatpush1.bf16.msra.mxu0 0
        %3452 = vmatprep.subr.bf16.mxu0 0
        %3453 = vmatpush1.bf16.msra.mxu0 0
        %3454 = vmatprep.subr.bf16.mxu0 0
        %3455 = vmatpush1.bf16.msra.mxu0 0
        %3456 = vmatprep.subr.bf16.mxu0 0
        %3457 = vmatpush1.bf16.msra.mxu0 0
        %3458 = vmatprep.subr.bf16.mxu0 0
        %3459 = vmatpush1.bf16.msra.mxu0 0
        %3460 = vmatprep.subr.bf16.mxu0 0
        %3461 = vmatpush1.bf16.msra.mxu0 0
        %3462 = vmatprep.subr.bf16.mxu0 0
        %3463 = vmatpush1.bf16.msra.mxu0 0
        %3464 = vmatprep.subr.bf16.mxu0 0
        %3465 = vmatpush1.bf16.msra.mxu0 0
        %3466 = vmatprep.subr.bf16.mxu0 0
        %3467 = vmatpush1.bf16.msra.mxu0 0
        %3468 = vmatprep.subr.bf16.mxu0 0
        %3469 = vmatpush1.bf16.msra.mxu0 0
        %3470 = vmatprep.mubr.bf16.mxu0 0
        %3471 = vmatmul.mubr.bf16.gmra.mrb[0].mxu0 %v3436
        %v3472 = vpop.f32.mrb[0].mxu0
        %v3473 = vadd.f32 0.0, %v3472
        %v3474 = vpop.f32.mrb[0].mxu0
        %v3475 = vpop.f32.mrb[0].mxu0
        %v3476 = vpop.f32.mrb[0].mxu0
        %3477 = vdwg.mxu0
        %v3478 = vpack.c.bf16 %v3473, %v3473
        %v3487 = vunpack.c.l.b16 %v3427
        %v3488 = vunpack.c.l.b16 %v3428
        %v3489 = vunpack.c.l.b16 %v3429
        %v3490 = vunpack.c.l.b16 %v3430
        %v3491 = vunpack.c.l.b16 %v3431
        %v3492 = vunpack.c.l.b16 %v3432
        %v3493 = vunpack.c.l.b16 %v3433
        %v3494 = vunpack.c.l.b16 %v3434
        %v3495 = vpack.c.b16 %v3488, %v3487
        %v3496 = vpack.c.b16 %v3490, %v3489
        %v3497 = vpack.c.b16 %v3492, %v3491
        %v3498 = vpack.c.b16 %v3494, %v3493
        %v3504 = vsel %vm2329, %v3478, 0
        %3506 = vmatprep.subr.bf16.mxu0 0
        %3507 = vmatpush1.bf16.msra.mxu0 %v3495
        %3508 = vmatprep.subr.bf16.mxu0 0
        %3509 = vmatpush1.bf16.msra.mxu0 %v3496
        %3510 = vmatprep.subr.bf16.mxu0 0
        %3511 = vmatpush1.bf16.msra.mxu0 %v3497
        %3512 = vmatprep.subr.bf16.mxu0 0
        %3513 = vmatpush1.bf16.msra.mxu0 %v3498
        %3514 = vmatprep.subr.bf16.mxu0 0
        %3515 = vmatpush1.bf16.msra.mxu0 0
        %3516 = vmatprep.subr.bf16.mxu0 0
        %3517 = vmatpush1.bf16.msra.mxu0 0
        %3518 = vmatprep.subr.bf16.mxu0 0
        %3519 = vmatpush1.bf16.msra.mxu0 0
        %3520 = vmatprep.subr.bf16.mxu0 0
        %3521 = vmatpush1.bf16.msra.mxu0 0
        %3522 = vmatprep.subr.bf16.mxu0 0
        %3523 = vmatpush1.bf16.msra.mxu0 0
        %3524 = vmatprep.subr.bf16.mxu0 0
        %3525 = vmatpush1.bf16.msra.mxu0 0
        %3526 = vmatprep.subr.bf16.mxu0 0
        %3527 = vmatpush1.bf16.msra.mxu0 0
        %3528 = vmatprep.subr.bf16.mxu0 0
        %3529 = vmatpush1.bf16.msra.mxu0 0
        %3530 = vmatprep.subr.bf16.mxu0 0
        %3531 = vmatpush1.bf16.msra.mxu0 0
        %3532 = vmatprep.subr.bf16.mxu0 0
        %3533 = vmatpush1.bf16.msra.mxu0 0
        %3534 = vmatprep.subr.bf16.mxu0 0
        %3535 = vmatpush1.bf16.msra.mxu0 0
        %3536 = vmatprep.subr.bf16.mxu0 0
        %3537 = vmatpush1.bf16.msra.mxu0 0
        %3538 = vmatprep.mubr.bf16.mxu0 0
        %3539 = vmatmul.mubr.bf16.gmra.mrb[0].mxu0 %v3504
        %v3540 = vpop.f32.mrb[0].mxu0
        %v3541 = vadd.f32 0.0, %v3540
        %v3542 = vpop.f32.mrb[0].mxu0
        %v3543 = vpop.f32.mrb[0].mxu0
        %v3544 = vpop.f32.mrb[0].mxu0
        %3545 = vdwg.mxu0
        %v3554 = vunpack.c.l.b16 %v3371
        %v3555 = vunpack.c.l.b16 %v3372
        %v3556 = vunpack.c.l.b16 %v3373
        %v3557 = vunpack.c.l.b16 %v3374
        %v3558 = vunpack.c.l.b16 %v3375
        %v3559 = vunpack.c.l.b16 %v3376
        %v3560 = vunpack.c.l.b16 %v3377
        %v3561 = vunpack.c.l.b16 %v3378
        %v3562 = vpack.c.b16 %v3555, %v3554
        %v3563 = vpack.c.b16 %v3557, %v3556
        %v3564 = vpack.c.b16 %v3559, %v3558
        %v3565 = vpack.c.b16 %v3561, %v3560
        %v3571 = vsel %vm2329, %v3423, 0
        %3573 = vmatprep.subr.bf16.mxu0 0
        %3574 = vmatpush1.bf16.msra.mxu0 %v3562
        %3575 = vmatprep.subr.bf16.mxu0 0
        %3576 = vmatpush1.bf16.msra.mxu0 %v3563
        %3577 = vmatprep.subr.bf16.mxu0 0
        %3578 = vmatpush1.bf16.msra.mxu0 %v3564
        %3579 = vmatprep.subr.bf16.mxu0 0
        %3580 = vmatpush1.bf16.msra.mxu0 %v3565
        %3581 = vmatprep.subr.bf16.mxu0 0
        %3582 = vmatpush1.bf16.msra.mxu0 0
        %3583 = vmatprep.subr.bf16.mxu0 0
        %3584 = vmatpush1.bf16.msra.mxu0 0
        %3585 = vmatprep.subr.bf16.mxu0 0
        %3586 = vmatpush1.bf16.msra.mxu0 0
        %3587 = vmatprep.subr.bf16.mxu0 0
        %3588 = vmatpush1.bf16.msra.mxu0 0
        %3589 = vmatprep.subr.bf16.mxu0 0
        %3590 = vmatpush1.bf16.msra.mxu0 0
        %3591 = vmatprep.subr.bf16.mxu0 0
        %3592 = vmatpush1.bf16.msra.mxu0 0
        %3593 = vmatprep.subr.bf16.mxu0 0
        %3594 = vmatpush1.bf16.msra.mxu0 0
        %3595 = vmatprep.subr.bf16.mxu0 0
        %3596 = vmatpush1.bf16.msra.mxu0 0
        %3597 = vmatprep.subr.bf16.mxu0 0
        %3598 = vmatpush1.bf16.msra.mxu0 0
        %3599 = vmatprep.subr.bf16.mxu0 0
        %3600 = vmatpush1.bf16.msra.mxu0 0
        %3601 = vmatprep.subr.bf16.mxu0 0
        %3602 = vmatpush1.bf16.msra.mxu0 0
        %3603 = vmatprep.subr.bf16.mxu0 0
        %3604 = vmatpush1.bf16.msra.mxu0 0
        %3605 = vmatprep.mubr.bf16.mxu0 0
        %3606 = vmatmul.mubr.bf16.gmra.mrb[0].mxu0 %v3571
        %v3607 = vpop.f32.mrb[0].mxu0
        %v3608 = vadd.f32 %v3541, %v3607
        %v3609 = vpop.f32.mrb[0].mxu0
        %v3610 = vpop.f32.mrb[0].mxu0
        %v3611 = vpop.f32.mrb[0].mxu0
        %3612 = vdwg.mxu0
        %s3613 = scalar_lea.vmem %s7, 4
        %v3614 = vld [vmem:[%s3613] sm:$0x3]
        %s3615 = scalar_lea.vmem [#allocation8], 64
        %v3616 = vld [vmem:[%s3615] sm:$0xf]
        %v3617 = vld [vmem:[%s3615 + $0x4] sm:$0xf]
        %v3618 = vld [vmem:[%s3615 + $0x8] sm:$0xf]
        %v3619 = vld [vmem:[%s3615 + $0xc] sm:$0xf]
        %v3620 = vld [vmem:[%s3615 + $0x10] sm:$0xf]
        %v3621 = vld [vmem:[%s3615 + $0x14] sm:$0xf]
        %v3622 = vld [vmem:[%s3615 + $0x18] sm:$0xf]
        %v3623 = vld [vmem:[%s3615 + $0x1c] sm:$0xf]
        %v3625 = vsel %vm3379, %v3614, 0
        %3627 = vmatprep.subr.bf16.mxu0 0
        %3628 = vmatpush1.bf16.msra.mxu0 %v3369
        %3629 = vmatprep.subr.bf16.mxu0 0
        %3630 = vmatpush1.bf16.msra.mxu0 0
        %3631 = vmatprep.subr.bf16.mxu0 0
        %3632 = vmatpush1.bf16.msra.mxu0 0
        %3633 = vmatprep.subr.bf16.mxu0 0
        %3634 = vmatpush1.bf16.msra.mxu0 0
        %3635 = vmatprep.subr.bf16.mxu0 0
        %3636 = vmatpush1.bf16.msra.mxu0 0
        %3637 = vmatprep.subr.bf16.mxu0 0
        %3638 = vmatpush1.bf16.msra.mxu0 0
        %3639 = vmatprep.subr.bf16.mxu0 0
        %3640 = vmatpush1.bf16.msra.mxu0 0
        %3641 = vmatprep.subr.bf16.mxu0 0
        %3642 = vmatpush1.bf16.msra.mxu0 0
        %3643 = vmatprep.subr.bf16.mxu0 0
        %3644 = vmatpush1.bf16.msra.mxu0 0
        %3645 = vmatprep.subr.bf16.mxu0 0
        %3646 = vmatpush1.bf16.msra.mxu0 0
        %3647 = vmatprep.subr.bf16.mxu0 0
        %3648 = vmatpush1.bf16.msra.mxu0 0
        %3649 = vmatprep.subr.bf16.mxu0 0
        %3650 = vmatpush1.bf16.msra.mxu0 0
        %3651 = vmatprep.subr.bf16.mxu0 0
        %3652 = vmatpush1.bf16.msra.mxu0 0
        %3653 = vmatprep.subr.bf16.mxu0 0
        %3654 = vmatpush1.bf16.msra.mxu0 0
        %3655 = vmatprep.subr.bf16.mxu0 0
        %3656 = vmatpush1.bf16.msra.mxu0 0
        %3657 = vmatprep.subr.bf16.mxu0 0
        %3658 = vmatpush1.bf16.msra.mxu0 0
        %3659 = vmatprep.mubr.bf16.mxu0 0
        %3660 = vmatmul.mubr.bf16.gmra.mrb[0].mxu0 %v3625
        %v3661 = vpop.f32.mrb[0].mxu0
        %v3662 = vadd.f32 0.0, %v3661
        %v3663 = vpop.f32.mrb[0].mxu0
        %v3664 = vpop.f32.mrb[0].mxu0
        %v3665 = vpop.f32.mrb[0].mxu0
        %3666 = vdwg.mxu0
        %v3667 = vpack.c.bf16 %v3662, %v3662
        %v3676 = vunpack.c.l.b16 %v3616
        %v3677 = vunpack.c.l.b16 %v3617
        %v3678 = vunpack.c.l.b16 %v3618
        %v3679 = vunpack.c.l.b16 %v3619
        %v3680 = vunpack.c.l.b16 %v3620
        %v3681 = vunpack.c.l.b16 %v3621
        %v3682 = vunpack.c.l.b16 %v3622
        %v3683 = vunpack.c.l.b16 %v3623
        %v3684 = vpack.c.b16 %v3677, %v3676
        %v3685 = vpack.c.b16 %v3679, %v3678
        %v3686 = vpack.c.b16 %v3681, %v3680
        %v3687 = vpack.c.b16 %v3683, %v3682
        %v3693 = vsel %vm2329, %v3667, 0
        %3695 = vmatprep.subr.bf16.mxu0 0
        %3696 = vmatpush1.bf16.msra.mxu0 %v3684
        %3697 = vmatprep.subr.bf16.mxu0 0
        %3698 = vmatpush1.bf16.msra.mxu0 %v3685
        %3699 = vmatprep.subr.bf16.mxu0 0
        %3700 = vmatpush1.bf16.msra.mxu0 %v3686
        %3701 = vmatprep.subr.bf16.mxu0 0
        %3702 = vmatpush1.bf16.msra.mxu0 %v3687
        %3703 = vmatprep.subr.bf16.mxu0 0
        %3704 = vmatpush1.bf16.msra.mxu0 0
        %3705 = vmatprep.subr.bf16.mxu0 0
        %3706 = vmatpush1.bf16.msra.mxu0 0
        %3707 = vmatprep.subr.bf16.mxu0 0
        %3708 = vmatpush1.bf16.msra.mxu0 0
        %3709 = vmatprep.subr.bf16.mxu0 0
        %3710 = vmatpush1.bf16.msra.mxu0 0
        %3711 = vmatprep.subr.bf16.mxu0 0
        %3712 = vmatpush1.bf16.msra.mxu0 0
        %3713 = vmatprep.subr.bf16.mxu0 0
        %3714 = vmatpush1.bf16.msra.mxu0 0
        %3715 = vmatprep.subr.bf16.mxu0 0
        %3716 = vmatpush1.bf16.msra.mxu0 0
        %3717 = vmatprep.subr.bf16.mxu0 0
        %3718 = vmatpush1.bf16.msra.mxu0 0
        %3719 = vmatprep.subr.bf16.mxu0 0
        %3720 = vmatpush1.bf16.msra.mxu0 0
        %3721 = vmatprep.subr.bf16.mxu0 0
        %3722 = vmatpush1.bf16.msra.mxu0 0
        %3723 = vmatprep.subr.bf16.mxu0 0
        %3724 = vmatpush1.bf16.msra.mxu0 0
        %3725 = vmatprep.subr.bf16.mxu0 0
        %3726 = vmatpush1.bf16.msra.mxu0 0
        %3727 = vmatprep.mubr.bf16.mxu0 0
        %3728 = vmatmul.mubr.bf16.gmra.mrb[0].mxu0 %v3693
        %v3729 = vpop.f32.mrb[0].mxu0
        %v3730 = vadd.f32 0.0, %v3729
        %v3731 = vpop.f32.mrb[0].mxu0
        %v3732 = vpop.f32.mrb[0].mxu0
        %v3733 = vpop.f32.mrb[0].mxu0
        %3734 = vdwg.mxu0
        %v3735 = vadd.f32 %v3608, %v3730
        %s3736 = scalar_lea.vmem %s7, 6
        %v3737 = vld [vmem:[%s3736] sm:$0x3]
        %s3738 = scalar_lea.vmem [#allocation8], 96
        %v3739 = vld [vmem:[%s3738] sm:$0xf]
        %v3740 = vld [vmem:[%s3738 + $0x4] sm:$0xf]
        %v3741 = vld [vmem:[%s3738 + $0x8] sm:$0xf]
        %v3742 = vld [vmem:[%s3738 + $0xc] sm:$0xf]
        %v3743 = vld [vmem:[%s3738 + $0x10] sm:$0xf]
        %v3744 = vld [vmem:[%s3738 + $0x14] sm:$0xf]
        %v3745 = vld [vmem:[%s3738 + $0x18] sm:$0xf]
        %v3746 = vld [vmem:[%s3738 + $0x1c] sm:$0xf]
        %v3748 = vsel %vm3379, %v3737, 0
        %3750 = vmatprep.subr.bf16.mxu0 0
        %3751 = vmatpush1.bf16.msra.mxu0 %v3369
        %3752 = vmatprep.subr.bf16.mxu0 0
        %3753 = vmatpush1.bf16.msra.mxu0 0
        %3754 = vmatprep.subr.bf16.mxu0 0
        %3755 = vmatpush1.bf16.msra.mxu0 0
        %3756 = vmatprep.subr.bf16.mxu0 0
        %3757 = vmatpush1.bf16.msra.mxu0 0
        %3758 = vmatprep.subr.bf16.mxu0 0
        %3759 = vmatpush1.bf16.msra.mxu0 0
        %3760 = vmatprep.subr.bf16.mxu0 0
        %3761 = vmatpush1.bf16.msra.mxu0 0
        %3762 = vmatprep.subr.bf16.mxu0 0
        %3763 = vmatpush1.bf16.msra.mxu0 0
        %3764 = vmatprep.subr.bf16.mxu0 0
        %3765 = vmatpush1.bf16.msra.mxu0 0
        %3766 = vmatprep.subr.bf16.mxu0 0
        %3767 = vmatpush1.bf16.msra.mxu0 0
        %3768 = vmatprep.subr.bf16.mxu0 0
        %3769 = vmatpush1.bf16.msra.mxu0 0
        %3770 = vmatprep.subr.bf16.mxu0 0
        %3771 = vmatpush1.bf16.msra.mxu0 0
        %3772 = vmatprep.subr.bf16.mxu0 0
        %3773 = vmatpush1.bf16.msra.mxu0 0
        %3774 = vmatprep.subr.bf16.mxu0 0
        %3775 = vmatpush1.bf16.msra.mxu0 0
        %3776 = vmatprep.subr.bf16.mxu0 0
        %3777 = vmatpush1.bf16.msra.mxu0 0
        %3778 = vmatprep.subr.bf16.mxu0 0
        %3779 = vmatpush1.bf16.msra.mxu0 0
        %3780 = vmatprep.subr.bf16.mxu0 0
        %3781 = vmatpush1.bf16.msra.mxu0 0
        %3782 = vmatprep.mubr.bf16.mxu0 0
        %3783 = vmatmul.mubr.bf16.gmra.mrb[0].mxu0 %v3748
        %v3784 = vpop.f32.mrb[0].mxu0
        %v3785 = vadd.f32 0.0, %v3784
        %v3786 = vpop.f32.mrb[0].mxu0
        %v3787 = vpop.f32.mrb[0].mxu0
        %v3788 = vpop.f32.mrb[0].mxu0
        %3789 = vdwg.mxu0
        %v3790 = vpack.c.bf16 %v3785, %v3785
        %v3799 = vunpack.c.l.b16 %v3739
        %v3800 = vunpack.c.l.b16 %v3740
        %v3801 = vunpack.c.l.b16 %v3741
        %v3802 = vunpack.c.l.b16 %v3742
        %v3803 = vunpack.c.l.b16 %v3743
        %v3804 = vunpack.c.l.b16 %v3744
        %v3805 = vunpack.c.l.b16 %v3745
        %v3806 = vunpack.c.l.b16 %v3746
        %v3807 = vpack.c.b16 %v3800, %v3799
        %v3808 = vpack.c.b16 %v3802, %v3801
        %v3809 = vpack.c.b16 %v3804, %v3803
        %v3810 = vpack.c.b16 %v3806, %v3805
        %v3816 = vsel %vm2329, %v3790, 0
        %3818 = vmatprep.subr.bf16.mxu0 0
        %3819 = vmatpush1.bf16.msra.mxu0 %v3807
        %3820 = vmatprep.subr.bf16.mxu0 0
        %3821 = vmatpush1.bf16.msra.mxu0 %v3808
        %3822 = vmatprep.subr.bf16.mxu0 0
        %3823 = vmatpush1.bf16.msra.mxu0 %v3809
        %3824 = vmatprep.subr.bf16.mxu0 0
        %3825 = vmatpush1.bf16.msra.mxu0 %v3810
        %3826 = vmatprep.subr.bf16.mxu0 0
        %3827 = vmatpush1.bf16.msra.mxu0 0
        %3828 = vmatprep.subr.bf16.mxu0 0
        %3829 = vmatpush1.bf16.msra.mxu0 0
        %3830 = vmatprep.subr.bf16.mxu0 0
        %3831 = vmatpush1.bf16.msra.mxu0 0
        %3832 = vmatprep.subr.bf16.mxu0 0
        %3833 = vmatpush1.bf16.msra.mxu0 0
        %3834 = vmatprep.subr.bf16.mxu0 0
        %3835 = vmatpush1.bf16.msra.mxu0 0
        %3836 = vmatprep.subr.bf16.mxu0 0
        %3837 = vmatpush1.bf16.msra.mxu0 0
        %3838 = vmatprep.subr.bf16.mxu0 0
        %3839 = vmatpush1.bf16.msra.mxu0 0
        %3840 = vmatprep.subr.bf16.mxu0 0
        %3841 = vmatpush1.bf16.msra.mxu0 0
        %3842 = vmatprep.subr.bf16.mxu0 0
        %3843 = vmatpush1.bf16.msra.mxu0 0
        %3844 = vmatprep.subr.bf16.mxu0 0
        %3845 = vmatpush1.bf16.msra.mxu0 0
        %3846 = vmatprep.subr.bf16.mxu0 0
        %3847 = vmatpush1.bf16.msra.mxu0 0
        %3848 = vmatprep.subr.bf16.mxu0 0
        %3849 = vmatpush1.bf16.msra.mxu0 0
        %3850 = vmatprep.mubr.bf16.mxu0 0
        %3851 = vmatmul.mubr.bf16.gmra.mrb[0].mxu0 %v3816
        %v3852 = vpop.f32.mrb[0].mxu0
        %v3853 = vadd.f32 0.0, %v3852
        %v3854 = vpop.f32.mrb[0].mxu0
        %v3855 = vpop.f32.mrb[0].mxu0
        %v3856 = vpop.f32.mrb[0].mxu0
        %3857 = vdwg.mxu0
        %v3858 = vadd.f32 %v3735, %v3853
        %s3859 = scalar_lea.vmem %s7, 8
        %v3860 = vld [vmem:[%s3859] sm:$0x3]
        %s3861 = scalar_lea.vmem [#allocation8], 128
        %v3862 = vld [vmem:[%s3861] sm:$0xf]
        %v3863 = vld [vmem:[%s3861 + $0x4] sm:$0xf]
        %v3864 = vld [vmem:[%s3861 + $0x8] sm:$0xf]
        %v3865 = vld [vmem:[%s3861 + $0xc] sm:$0xf]
        %v3866 = vld [vmem:[%s3861 + $0x10] sm:$0xf]
        %v3867 = vld [vmem:[%s3861 + $0x14] sm:$0xf]
        %v3868 = vld [vmem:[%s3861 + $0x18] sm:$0xf]
        %v3869 = vld [vmem:[%s3861 + $0x1c] sm:$0xf]
        %v3871 = vsel %vm3379, %v3860, 0
        %3873 = vmatprep.subr.bf16.mxu0 0
        %3874 = vmatpush1.bf16.msra.mxu0 %v3369
        %3875 = vmatprep.subr.bf16.mxu0 0
        %3876 = vmatpush1.bf16.msra.mxu0 0
        %3877 = vmatprep.subr.bf16.mxu0 0
        %3878 = vmatpush1.bf16.msra.mxu0 0
        %3879 = vmatprep.subr.bf16.mxu0 0
        %3880 = vmatpush1.bf16.msra.mxu0 0
        %3881 = vmatprep.subr.bf16.mxu0 0
        %3882 = vmatpush1.bf16.msra.mxu0 0
        %3883 = vmatprep.subr.bf16.mxu0 0
        %3884 = vmatpush1.bf16.msra.mxu0 0
        %3885 = vmatprep.subr.bf16.mxu0 0
        %3886 = vmatpush1.bf16.msra.mxu0 0
        %3887 = vmatprep.subr.bf16.mxu0 0
        %3888 = vmatpush1.bf16.msra.mxu0 0
        %3889 = vmatprep.subr.bf16.mxu0 0
        %3890 = vmatpush1.bf16.msra.mxu0 0
        %3891 = vmatprep.subr.bf16.mxu0 0
        %3892 = vmatpush1.bf16.msra.mxu0 0
        %3893 = vmatprep.subr.bf16.mxu0 0
        %3894 = vmatpush1.bf16.msra.mxu0 0
        %3895 = vmatprep.subr.bf16.mxu0 0
        %3896 = vmatpush1.bf16.msra.mxu0 0
        %3897 = vmatprep.subr.bf16.mxu0 0
        %3898 = vmatpush1.bf16.msra.mxu0 0
        %3899 = vmatprep.subr.bf16.mxu0 0
        %3900 = vmatpush1.bf16.msra.mxu0 0
        %3901 = vmatprep.subr.bf16.mxu0 0
        %3902 = vmatpush1.bf16.msra.mxu0 0
        %3903 = vmatprep.subr.bf16.mxu0 0
        %3904 = vmatpush1.bf16.msra.mxu0 0
        %3905 = vmatprep.mubr.bf16.mxu0 0
        %3906 = vmatmul.mubr.bf16.gmra.mrb[0].mxu0 %v3871
        %v3907 = vpop.f32.mrb[0].mxu0
        %v3908 = vadd.f32 0.0, %v3907
        %v3909 = vpop.f32.mrb[0].mxu0
        %v3910 = vpop.f32.mrb[0].mxu0
        %v3911 = vpop.f32.mrb[0].mxu0
        %3912 = vdwg.mxu0
        %v3913 = vpack.c.bf16 %v3908, %v3908
        %v3922 = vunpack.c.l.b16 %v3862
        %v3923 = vunpack.c.l.b16 %v3863
        %v3924 = vunpack.c.l.b16 %v3864
        %v3925 = vunpack.c.l.b16 %v3865
        %v3926 = vunpack.c.l.b16 %v3866
        %v3927 = vunpack.c.l.b16 %v3867
        %v3928 = vunpack.c.l.b16 %v3868
        %v3929 = vunpack.c.l.b16 %v3869
        %v3930 = vpack.c.b16 %v3923, %v3922
        %v3931 = vpack.c.b16 %v3925, %v3924
        %v3932 = vpack.c.b16 %v3927, %v3926
        %v3933 = vpack.c.b16 %v3929, %v3928
        %v3939 = vsel %vm2329, %v3913, 0
        %3941 = vmatprep.subr.bf16.mxu0 0
        %3942 = vmatpush1.bf16.msra.mxu0 %v3930
        %3943 = vmatprep.subr.bf16.mxu0 0
        %3944 = vmatpush1.bf16.msra.mxu0 %v3931
        %3945 = vmatprep.subr.bf16.mxu0 0
        %3946 = vmatpush1.bf16.msra.mxu0 %v3932
        %3947 = vmatprep.subr.bf16.mxu0 0
        %3948 = vmatpush1.bf16.msra.mxu0 %v3933
        %3949 = vmatprep.subr.bf16.mxu0 0
        %3950 = vmatpush1.bf16.msra.mxu0 0
        %3951 = vmatprep.subr.bf16.mxu0 0
        %3952 = vmatpush1.bf16.msra.mxu0 0
        %3953 = vmatprep.subr.bf16.mxu0 0
        %3954 = vmatpush1.bf16.msra.mxu0 0
        %3955 = vmatprep.subr.bf16.mxu0 0
        %3956 = vmatpush1.bf16.msra.mxu0 0
        %3957 = vmatprep.subr.bf16.mxu0 0
        %3958 = vmatpush1.bf16.msra.mxu0 0
        %3959 = vmatprep.subr.bf16.mxu0 0
        %3960 = vmatpush1.bf16.msra.mxu0 0
        %3961 = vmatprep.subr.bf16.mxu0 0
        %3962 = vmatpush1.bf16.msra.mxu0 0
        %3963 = vmatprep.subr.bf16.mxu0 0
        %3964 = vmatpush1.bf16.msra.mxu0 0
        %3965 = vmatprep.subr.bf16.mxu0 0
        %3966 = vmatpush1.bf16.msra.mxu0 0
        %3967 = vmatprep.subr.bf16.mxu0 0
        %3968 = vmatpush1.bf16.msra.mxu0 0
        %3969 = vmatprep.subr.bf16.mxu0 0
        %3970 = vmatpush1.bf16.msra.mxu0 0
        %3971 = vmatprep.subr.bf16.mxu0 0
        %3972 = vmatpush1.bf16.msra.mxu0 0
        %3973 = vmatprep.mubr.bf16.mxu0 0
        %3974 = vmatmul.mubr.bf16.gmra.mrb[0].mxu0 %v3939
        %v3975 = vpop.f32.mrb[0].mxu0
        %v3976 = vadd.f32 0.0, %v3975
        %v3977 = vpop.f32.mrb[0].mxu0
        %v3978 = vpop.f32.mrb[0].mxu0
        %v3979 = vpop.f32.mrb[0].mxu0
        %3980 = vdwg.mxu0
        %v3981 = vadd.f32 %v3858, %v3976
        %s3982 = scalar_lea.vmem %s7, 10
        %v3983 = vld [vmem:[%s3982] sm:$0x3]
        %s3984 = scalar_lea.vmem [#allocation8], 160
        %v3985 = vld [vmem:[%s3984] sm:$0xf]
        %v3986 = vld [vmem:[%s3984 + $0x4] sm:$0xf]
        %v3987 = vld [vmem:[%s3984 + $0x8] sm:$0xf]
        %v3988 = vld [vmem:[%s3984 + $0xc] sm:$0xf]
        %v3989 = vld [vmem:[%s3984 + $0x10] sm:$0xf]
        %v3990 = vld [vmem:[%s3984 + $0x14] sm:$0xf]
        %v3991 = vld [vmem:[%s3984 + $0x18] sm:$0xf]
        %v3992 = vld [vmem:[%s3984 + $0x1c] sm:$0xf]
        %v3994 = vsel %vm3379, %v3983, 0
        %3996 = vmatprep.subr.bf16.mxu0 0
        %3997 = vmatpush1.bf16.msra.mxu0 %v3369
        %3998 = vmatprep.subr.bf16.mxu0 0
        %3999 = vmatpush1.bf16.msra.mxu0 0
        %4000 = vmatprep.subr.bf16.mxu0 0
        %4001 = vmatpush1.bf16.msra.mxu0 0
        %4002 = vmatprep.subr.bf16.mxu0 0
        %4003 = vmatpush1.bf16.msra.mxu0 0
        %4004 = vmatprep.subr.bf16.mxu0 0
        %4005 = vmatpush1.bf16.msra.mxu0 0
        %4006 = vmatprep.subr.bf16.mxu0 0
        %4007 = vmatpush1.bf16.msra.mxu0 0
        %4008 = vmatprep.subr.bf16.mxu0 0
        %4009 = vmatpush1.bf16.msra.mxu0 0
        %4010 = vmatprep.subr.bf16.mxu0 0
        %4011 = vmatpush1.bf16.msra.mxu0 0
        %4012 = vmatprep.subr.bf16.mxu0 0
        %4013 = vmatpush1.bf16.msra.mxu0 0
        %4014 = vmatprep.subr.bf16.mxu0 0
        %4015 = vmatpush1.bf16.msra.mxu0 0
        %4016 = vmatprep.subr.bf16.mxu0 0
        %4017 = vmatpush1.bf16.msra.mxu0 0
        %4018 = vmatprep.subr.bf16.mxu0 0
        %4019 = vmatpush1.bf16.msra.mxu0 0
        %4020 = vmatprep.subr.bf16.mxu0 0
        %4021 = vmatpush1.bf16.msra.mxu0 0
        %4022 = vmatprep.subr.bf16.mxu0 0
        %4023 = vmatpush1.bf16.msra.mxu0 0
        %4024 = vmatprep.subr.bf16.mxu0 0
        %4025 = vmatpush1.bf16.msra.mxu0 0
        %4026 = vmatprep.subr.bf16.mxu0 0
        %4027 = vmatpush1.bf16.msra.mxu0 0
        %4028 = vmatprep.mubr.bf16.mxu0 0
        %4029 = vmatmul.mubr.bf16.gmra.mrb[0].mxu0 %v3994
        %v4030 = vpop.f32.mrb[0].mxu0
        %v4031 = vadd.f32 0.0, %v4030
        %v4032 = vpop.f32.mrb[0].mxu0
        %v4033 = vpop.f32.mrb[0].mxu0
        %v4034 = vpop.f32.mrb[0].mxu0
        %4035 = vdwg.mxu0
        %v4036 = vpack.c.bf16 %v4031, %v4031
        %v4045 = vunpack.c.l.b16 %v3985
        %v4046 = vunpack.c.l.b16 %v3986
        %v4047 = vunpack.c.l.b16 %v3987
        %v4048 = vunpack.c.l.b16 %v3988
        %v4049 = vunpack.c.l.b16 %v3989
        %v4050 = vunpack.c.l.b16 %v3990
        %v4051 = vunpack.c.l.b16 %v3991
        %v4052 = vunpack.c.l.b16 %v3992
        %v4053 = vpack.c.b16 %v4046, %v4045
        %v4054 = vpack.c.b16 %v4048, %v4047
        %v4055 = vpack.c.b16 %v4050, %v4049
        %v4056 = vpack.c.b16 %v4052, %v4051
        %v4062 = vsel %vm2329, %v4036, 0
        %4064 = vmatprep.subr.bf16.mxu0 0
        %4065 = vmatpush1.bf16.msra.mxu0 %v4053
        %4066 = vmatprep.subr.bf16.mxu0 0
        %4067 = vmatpush1.bf16.msra.mxu0 %v4054
        %4068 = vmatprep.subr.bf16.mxu0 0
        %4069 = vmatpush1.bf16.msra.mxu0 %v4055
        %4070 = vmatprep.subr.bf16.mxu0 0
        %4071 = vmatpush1.bf16.msra.mxu0 %v4056
        %4072 = vmatprep.subr.bf16.mxu0 0
        %4073 = vmatpush1.bf16.msra.mxu0 0
        %4074 = vmatprep.subr.bf16.mxu0 0
        %4075 = vmatpush1.bf16.msra.mxu0 0
        %4076 = vmatprep.subr.bf16.mxu0 0
        %4077 = vmatpush1.bf16.msra.mxu0 0
        %4078 = vmatprep.subr.bf16.mxu0 0
        %4079 = vmatpush1.bf16.msra.mxu0 0
        %4080 = vmatprep.subr.bf16.mxu0 0
        %4081 = vmatpush1.bf16.msra.mxu0 0
        %4082 = vmatprep.subr.bf16.mxu0 0
        %4083 = vmatpush1.bf16.msra.mxu0 0
        %4084 = vmatprep.subr.bf16.mxu0 0
        %4085 = vmatpush1.bf16.msra.mxu0 0
        %4086 = vmatprep.subr.bf16.mxu0 0
        %4087 = vmatpush1.bf16.msra.mxu0 0
        %4088 = vmatprep.subr.bf16.mxu0 0
        %4089 = vmatpush1.bf16.msra.mxu0 0
        %4090 = vmatprep.subr.bf16.mxu0 0
        %4091 = vmatpush1.bf16.msra.mxu0 0
        %4092 = vmatprep.subr.bf16.mxu0 0
        %4093 = vmatpush1.bf16.msra.mxu0 0
        %4094 = vmatprep.subr.bf16.mxu0 0
        %4095 = vmatpush1.bf16.msra.mxu0 0
        %4096 = vmatprep.mubr.bf16.mxu0 0
        %4097 = vmatmul.mubr.bf16.gmra.mrb[0].mxu0 %v4062
        %v4098 = vpop.f32.mrb[0].mxu0
        %v4099 = vadd.f32 0.0, %v4098
        %v4100 = vpop.f32.mrb[0].mxu0
        %v4101 = vpop.f32.mrb[0].mxu0
        %v4102 = vpop.f32.mrb[0].mxu0
        %4103 = vdwg.mxu0
        %v4104 = vadd.f32 %v3981, %v4099
        %s4105 = scalar_lea.vmem %s7, 12
        %v4106 = vld [vmem:[%s4105] sm:$0x3]
        %s4107 = scalar_lea.vmem [#allocation8], 192
        %v4108 = vld [vmem:[%s4107] sm:$0xf]
        %v4109 = vld [vmem:[%s4107 + $0x4] sm:$0xf]
        %v4110 = vld [vmem:[%s4107 + $0x8] sm:$0xf]
        %v4111 = vld [vmem:[%s4107 + $0xc] sm:$0xf]
        %v4112 = vld [vmem:[%s4107 + $0x10] sm:$0xf]
        %v4113 = vld [vmem:[%s4107 + $0x14] sm:$0xf]
        %v4114 = vld [vmem:[%s4107 + $0x18] sm:$0xf]
        %v4115 = vld [vmem:[%s4107 + $0x1c] sm:$0xf]
        %v4117 = vsel %vm3379, %v4106, 0
        %4119 = vmatprep.subr.bf16.mxu0 0
        %4120 = vmatpush1.bf16.msra.mxu0 %v3369
        %4121 = vmatprep.subr.bf16.mxu0 0
        %4122 = vmatpush1.bf16.msra.mxu0 0
        %4123 = vmatprep.subr.bf16.mxu0 0
        %4124 = vmatpush1.bf16.msra.mxu0 0
        %4125 = vmatprep.subr.bf16.mxu0 0
        %4126 = vmatpush1.bf16.msra.mxu0 0
        %4127 = vmatprep.subr.bf16.mxu0 0
        %4128 = vmatpush1.bf16.msra.mxu0 0
        %4129 = vmatprep.subr.bf16.mxu0 0
        %4130 = vmatpush1.bf16.msra.mxu0 0
        %4131 = vmatprep.subr.bf16.mxu0 0
        %4132 = vmatpush1.bf16.msra.mxu0 0
        %4133 = vmatprep.subr.bf16.mxu0 0
        %4134 = vmatpush1.bf16.msra.mxu0 0
        %4135 = vmatprep.subr.bf16.mxu0 0
        %4136 = vmatpush1.bf16.msra.mxu0 0
        %4137 = vmatprep.subr.bf16.mxu0 0
        %4138 = vmatpush1.bf16.msra.mxu0 0
        %4139 = vmatprep.subr.bf16.mxu0 0
        %4140 = vmatpush1.bf16.msra.mxu0 0
        %4141 = vmatprep.subr.bf16.mxu0 0
        %4142 = vmatpush1.bf16.msra.mxu0 0
        %4143 = vmatprep.subr.bf16.mxu0 0
        %4144 = vmatpush1.bf16.msra.mxu0 0
        %4145 = vmatprep.subr.bf16.mxu0 0
        %4146 = vmatpush1.bf16.msra.mxu0 0
        %4147 = vmatprep.subr.bf16.mxu0 0
        %4148 = vmatpush1.bf16.msra.mxu0 0
        %4149 = vmatprep.subr.bf16.mxu0 0
        %4150 = vmatpush1.bf16.msra.mxu0 0
        %4151 = vmatprep.mubr.bf16.mxu0 0
        %4152 = vmatmul.mubr.bf16.gmra.mrb[0].mxu0 %v4117
        %v4153 = vpop.f32.mrb[0].mxu0
        %v4154 = vadd.f32 0.0, %v4153
        %v4155 = vpop.f32.mrb[0].mxu0
        %v4156 = vpop.f32.mrb[0].mxu0
        %v4157 = vpop.f32.mrb[0].mxu0
        %4158 = vdwg.mxu0
        %v4159 = vpack.c.bf16 %v4154, %v4154
        %v4168 = vunpack.c.l.b16 %v4108
        %v4169 = vunpack.c.l.b16 %v4109
        %v4170 = vunpack.c.l.b16 %v4110
        %v4171 = vunpack.c.l.b16 %v4111
        %v4172 = vunpack.c.l.b16 %v4112
        %v4173 = vunpack.c.l.b16 %v4113
        %v4174 = vunpack.c.l.b16 %v4114
        %v4175 = vunpack.c.l.b16 %v4115
        %v4176 = vpack.c.b16 %v4169, %v4168
        %v4177 = vpack.c.b16 %v4171, %v4170
        %v4178 = vpack.c.b16 %v4173, %v4172
        %v4179 = vpack.c.b16 %v4175, %v4174
        %v4185 = vsel %vm2329, %v4159, 0
        %4187 = vmatprep.subr.bf16.mxu0 0
        %4188 = vmatpush1.bf16.msra.mxu0 %v4176
        %4189 = vmatprep.subr.bf16.mxu0 0
        %4190 = vmatpush1.bf16.msra.mxu0 %v4177
        %4191 = vmatprep.subr.bf16.mxu0 0
        %4192 = vmatpush1.bf16.msra.mxu0 %v4178
        %4193 = vmatprep.subr.bf16.mxu0 0
        %4194 = vmatpush1.bf16.msra.mxu0 %v4179
        %4195 = vmatprep.subr.bf16.mxu0 0
        %4196 = vmatpush1.bf16.msra.mxu0 0
        %4197 = vmatprep.subr.bf16.mxu0 0
        %4198 = vmatpush1.bf16.msra.mxu0 0
        %4199 = vmatprep.subr.bf16.mxu0 0
        %4200 = vmatpush1.bf16.msra.mxu0 0
        %4201 = vmatprep.subr.bf16.mxu0 0
        %4202 = vmatpush1.bf16.msra.mxu0 0
        %4203 = vmatprep.subr.bf16.mxu0 0
        %4204 = vmatpush1.bf16.msra.mxu0 0
        %4205 = vmatprep.subr.bf16.mxu0 0
        %4206 = vmatpush1.bf16.msra.mxu0 0
        %4207 = vmatprep.subr.bf16.mxu0 0
        %4208 = vmatpush1.bf16.msra.mxu0 0
        %4209 = vmatprep.subr.bf16.mxu0 0
        %4210 = vmatpush1.bf16.msra.mxu0 0
        %4211 = vmatprep.subr.bf16.mxu0 0
        %4212 = vmatpush1.bf16.msra.mxu0 0
        %4213 = vmatprep.subr.bf16.mxu0 0
        %4214 = vmatpush1.bf16.msra.mxu0 0
        %4215 = vmatprep.subr.bf16.mxu0 0
        %4216 = vmatpush1.bf16.msra.mxu0 0
        %4217 = vmatprep.subr.bf16.mxu0 0
        %4218 = vmatpush1.bf16.msra.mxu0 0
        %4219 = vmatprep.mubr.bf16.mxu0 0
        %4220 = vmatmul.mubr.bf16.gmra.mrb[0].mxu0 %v4185
        %v4221 = vpop.f32.mrb[0].mxu0
        %v4222 = vadd.f32 0.0, %v4221
        %v4223 = vpop.f32.mrb[0].mxu0
        %v4224 = vpop.f32.mrb[0].mxu0
        %v4225 = vpop.f32.mrb[0].mxu0
        %4226 = vdwg.mxu0
        %v4227 = vadd.f32 %v4104, %v4222
        %s4228 = scalar_lea.vmem %s7, 14
        %v4229 = vld [vmem:[%s4228] sm:$0x3]
        %s4230 = scalar_lea.vmem [#allocation8], 224
        %v4231 = vld [vmem:[%s4230] sm:$0xf]
        %v4232 = vld [vmem:[%s4230 + $0x4] sm:$0xf]
        %v4233 = vld [vmem:[%s4230 + $0x8] sm:$0xf]
        %v4234 = vld [vmem:[%s4230 + $0xc] sm:$0xf]
        %v4235 = vld [vmem:[%s4230 + $0x10] sm:$0xf]
        %v4236 = vld [vmem:[%s4230 + $0x14] sm:$0xf]
        %v4237 = vld [vmem:[%s4230 + $0x18] sm:$0xf]
        %v4238 = vld [vmem:[%s4230 + $0x1c] sm:$0xf]
        %v4240 = vsel %vm3379, %v4229, 0
        %4242 = vmatprep.subr.bf16.mxu0 0
        %4243 = vmatpush1.bf16.msra.mxu0 %v3369
        %4244 = vmatprep.subr.bf16.mxu0 0
        %4245 = vmatpush1.bf16.msra.mxu0 0
        %4246 = vmatprep.subr.bf16.mxu0 0
        %4247 = vmatpush1.bf16.msra.mxu0 0
        %4248 = vmatprep.subr.bf16.mxu0 0
        %4249 = vmatpush1.bf16.msra.mxu0 0
        %4250 = vmatprep.subr.bf16.mxu0 0
        %4251 = vmatpush1.bf16.msra.mxu0 0
        %4252 = vmatprep.subr.bf16.mxu0 0
        %4253 = vmatpush1.bf16.msra.mxu0 0
        %4254 = vmatprep.subr.bf16.mxu0 0
        %4255 = vmatpush1.bf16.msra.mxu0 0
        %4256 = vmatprep.subr.bf16.mxu0 0
        %4257 = vmatpush1.bf16.msra.mxu0 0
        %4258 = vmatprep.subr.bf16.mxu0 0
        %4259 = vmatpush1.bf16.msra.mxu0 0
        %4260 = vmatprep.subr.bf16.mxu0 0
        %4261 = vmatpush1.bf16.msra.mxu0 0
        %4262 = vmatprep.subr.bf16.mxu0 0
        %4263 = vmatpush1.bf16.msra.mxu0 0
        %4264 = vmatprep.subr.bf16.mxu0 0
        %4265 = vmatpush1.bf16.msra.mxu0 0
        %4266 = vmatprep.subr.bf16.mxu0 0
        %4267 = vmatpush1.bf16.msra.mxu0 0
        %4268 = vmatprep.subr.bf16.mxu0 0
        %4269 = vmatpush1.bf16.msra.mxu0 0
        %4270 = vmatprep.subr.bf16.mxu0 0
        %4271 = vmatpush1.bf16.msra.mxu0 0
        %4272 = vmatprep.subr.bf16.mxu0 0
        %4273 = vmatpush1.bf16.msra.mxu0 0
        %4274 = vmatprep.mubr.bf16.mxu0 0
        %4275 = vmatmul.mubr.bf16.gmra.mrb[0].mxu0 %v4240
        %v4276 = vpop.f32.mrb[0].mxu0
        %v4277 = vadd.f32 0.0, %v4276
        %v4278 = vpop.f32.mrb[0].mxu0
        %v4279 = vpop.f32.mrb[0].mxu0
        %v4280 = vpop.f32.mrb[0].mxu0
        %4281 = vdwg.mxu0
        %v4282 = vpack.c.bf16 %v4277, %v4277
        %v4291 = vunpack.c.l.b16 %v4231
        %v4292 = vunpack.c.l.b16 %v4232
        %v4293 = vunpack.c.l.b16 %v4233
        %v4294 = vunpack.c.l.b16 %v4234
        %v4295 = vunpack.c.l.b16 %v4235
        %v4296 = vunpack.c.l.b16 %v4236
        %v4297 = vunpack.c.l.b16 %v4237
        %v4298 = vunpack.c.l.b16 %v4238
        %v4299 = vpack.c.b16 %v4292, %v4291
        %v4300 = vpack.c.b16 %v4294, %v4293
        %v4301 = vpack.c.b16 %v4296, %v4295
        %v4302 = vpack.c.b16 %v4298, %v4297
        %v4308 = vsel %vm2329, %v4282, 0
        %4310 = vmatprep.subr.bf16.mxu0 0
        %4311 = vmatpush1.bf16.msra.mxu0 %v4299
        %4312 = vmatprep.subr.bf16.mxu0 0
        %4313 = vmatpush1.bf16.msra.mxu0 %v4300
        %4314 = vmatprep.subr.bf16.mxu0 0
        %4315 = vmatpush1.bf16.msra.mxu0 %v4301
        %4316 = vmatprep.subr.bf16.mxu0 0
        %4317 = vmatpush1.bf16.msra.mxu0 %v4302
        %4318 = vmatprep.subr.bf16.mxu0 0
        %4319 = vmatpush1.bf16.msra.mxu0 0
        %4320 = vmatprep.subr.bf16.mxu0 0
        %4321 = vmatpush1.bf16.msra.mxu0 0
        %4322 = vmatprep.subr.bf16.mxu0 0
        %4323 = vmatpush1.bf16.msra.mxu0 0
        %4324 = vmatprep.subr.bf16.mxu0 0
        %4325 = vmatpush1.bf16.msra.mxu0 0
        %4326 = vmatprep.subr.bf16.mxu0 0
        %4327 = vmatpush1.bf16.msra.mxu0 0
        %4328 = vmatprep.subr.bf16.mxu0 0
        %4329 = vmatpush1.bf16.msra.mxu0 0
        %4330 = vmatprep.subr.bf16.mxu0 0
        %4331 = vmatpush1.bf16.msra.mxu0 0
        %4332 = vmatprep.subr.bf16.mxu0 0
        %4333 = vmatpush1.bf16.msra.mxu0 0
        %4334 = vmatprep.subr.bf16.mxu0 0
        %4335 = vmatpush1.bf16.msra.mxu0 0
        %4336 = vmatprep.subr.bf16.mxu0 0
        %4337 = vmatpush1.bf16.msra.mxu0 0
        %4338 = vmatprep.subr.bf16.mxu0 0
        %4339 = vmatpush1.bf16.msra.mxu0 0
        %4340 = vmatprep.subr.bf16.mxu0 0
        %4341 = vmatpush1.bf16.msra.mxu0 0
        %4342 = vmatprep.mubr.bf16.mxu0 0
        %4343 = vmatmul.mubr.bf16.gmra.mrb[0].mxu0 %v4308
        %v4344 = vpop.f32.mrb[0].mxu0
        %v4345 = vadd.f32 0.0, %v4344
        %v4346 = vpop.f32.mrb[0].mxu0
        %v4347 = vpop.f32.mrb[0].mxu0
        %v4348 = vpop.f32.mrb[0].mxu0
        %4349 = vdwg.mxu0
        %v4350 = vadd.f32 %v4227, %v4345
        %s4351 = scalar_lea.vmem %s7, 16
        %v4352 = vld [vmem:[%s4351] sm:$0x3]
        %s4353 = scalar_lea.vmem [#allocation8], 256
        %v4354 = vld [vmem:[%s4353] sm:$0xf]
        %v4355 = vld [vmem:[%s4353 + $0x4] sm:$0xf]
        %v4356 = vld [vmem:[%s4353 + $0x8] sm:$0xf]
        %v4357 = vld [vmem:[%s4353 + $0xc] sm:$0xf]
        %v4358 = vld [vmem:[%s4353 + $0x10] sm:$0xf]
        %v4359 = vld [vmem:[%s4353 + $0x14] sm:$0xf]
        %v4360 = vld [vmem:[%s4353 + $0x18] sm:$0xf]
        %v4361 = vld [vmem:[%s4353 + $0x1c] sm:$0xf]
        %v4363 = vsel %vm3379, %v4352, 0
        %4365 = vmatprep.subr.bf16.mxu0 0
        %4366 = vmatpush1.bf16.msra.mxu0 %v3369
        %4367 = vmatprep.subr.bf16.mxu0 0
        %4368 = vmatpush1.bf16.msra.mxu0 0
        %4369 = vmatprep.subr.bf16.mxu0 0
        %4370 = vmatpush1.bf16.msra.mxu0 0
        %4371 = vmatprep.subr.bf16.mxu0 0
        %4372 = vmatpush1.bf16.msra.mxu0 0
        %4373 = vmatprep.subr.bf16.mxu0 0
        %4374 = vmatpush1.bf16.msra.mxu0 0
        %4375 = vmatprep.subr.bf16.mxu0 0
        %4376 = vmatpush1.bf16.msra.mxu0 0
        %4377 = vmatprep.subr.bf16.mxu0 0
        %4378 = vmatpush1.bf16.msra.mxu0 0
        %4379 = vmatprep.subr.bf16.mxu0 0
        %4380 = vmatpush1.bf16.msra.mxu0 0
        %4381 = vmatprep.subr.bf16.mxu0 0
        %4382 = vmatpush1.bf16.msra.mxu0 0
        %4383 = vmatprep.subr.bf16.mxu0 0
        %4384 = vmatpush1.bf16.msra.mxu0 0
        %4385 = vmatprep.subr.bf16.mxu0 0
        %4386 = vmatpush1.bf16.msra.mxu0 0
        %4387 = vmatprep.subr.bf16.mxu0 0
        %4388 = vmatpush1.bf16.msra.mxu0 0
        %4389 = vmatprep.subr.bf16.mxu0 0
        %4390 = vmatpush1.bf16.msra.mxu0 0
        %4391 = vmatprep.subr.bf16.mxu0 0
        %4392 = vmatpush1.bf16.msra.mxu0 0
        %4393 = vmatprep.subr.bf16.mxu0 0
        %4394 = vmatpush1.bf16.msra.mxu0 0
        %4395 = vmatprep.subr.bf16.mxu0 0
        %4396 = vmatpush1.bf16.msra.mxu0 0
        %4397 = vmatprep.mubr.bf16.mxu0 0
        %4398 = vmatmul.mubr.bf16.gmra.mrb[0].mxu0 %v4363
        %v4399 = vpop.f32.mrb[0].mxu0
        %v4400 = vadd.f32 0.0, %v4399
        %v4401 = vpop.f32.mrb[0].mxu0
        %v4402 = vpop.f32.mrb[0].mxu0
        %v4403 = vpop.f32.mrb[0].mxu0
        %4404 = vdwg.mxu0
        %v4405 = vpack.c.bf16 %v4400, %v4400
        %v4414 = vunpack.c.l.b16 %v4354
        %v4415 = vunpack.c.l.b16 %v4355
        %v4416 = vunpack.c.l.b16 %v4356
        %v4417 = vunpack.c.l.b16 %v4357
        %v4418 = vunpack.c.l.b16 %v4358
        %v4419 = vunpack.c.l.b16 %v4359
        %v4420 = vunpack.c.l.b16 %v4360
        %v4421 = vunpack.c.l.b16 %v4361
        %v4422 = vpack.c.b16 %v4415, %v4414
        %v4423 = vpack.c.b16 %v4417, %v4416
        %v4424 = vpack.c.b16 %v4419, %v4418
        %v4425 = vpack.c.b16 %v4421, %v4420
        %v4431 = vsel %vm2329, %v4405, 0
        %4433 = vmatprep.subr.bf16.mxu0 0
        %4434 = vmatpush1.bf16.msra.mxu0 %v4422
        %4435 = vmatprep.subr.bf16.mxu0 0
        %4436 = vmatpush1.bf16.msra.mxu0 %v4423
        %4437 = vmatprep.subr.bf16.mxu0 0
        %4438 = vmatpush1.bf16.msra.mxu0 %v4424
        %4439 = vmatprep.subr.bf16.mxu0 0
        %4440 = vmatpush1.bf16.msra.mxu0 %v4425
        %4441 = vmatprep.subr.bf16.mxu0 0
        %4442 = vmatpush1.bf16.msra.mxu0 0
        %4443 = vmatprep.subr.bf16.mxu0 0
        %4444 = vmatpush1.bf16.msra.mxu0 0
        %4445 = vmatprep.subr.bf16.mxu0 0
        %4446 = vmatpush1.bf16.msra.mxu0 0
        %4447 = vmatprep.subr.bf16.mxu0 0
        %4448 = vmatpush1.bf16.msra.mxu0 0
        %4449 = vmatprep.subr.bf16.mxu0 0
        %4450 = vmatpush1.bf16.msra.mxu0 0
        %4451 = vmatprep.subr.bf16.mxu0 0
        %4452 = vmatpush1.bf16.msra.mxu0 0
        %4453 = vmatprep.subr.bf16.mxu0 0
        %4454 = vmatpush1.bf16.msra.mxu0 0
        %4455 = vmatprep.subr.bf16.mxu0 0
        %4456 = vmatpush1.bf16.msra.mxu0 0
        %4457 = vmatprep.subr.bf16.mxu0 0
        %4458 = vmatpush1.bf16.msra.mxu0 0
        %4459 = vmatprep.subr.bf16.mxu0 0
        %4460 = vmatpush1.bf16.msra.mxu0 0
        %4461 = vmatprep.subr.bf16.mxu0 0
        %4462 = vmatpush1.bf16.msra.mxu0 0
        %4463 = vmatprep.subr.bf16.mxu0 0
        %4464 = vmatpush1.bf16.msra.mxu0 0
        %4465 = vmatprep.mubr.bf16.mxu0 0
        %4466 = vmatmul.mubr.bf16.gmra.mrb[0].mxu0 %v4431
        %v4467 = vpop.f32.mrb[0].mxu0
        %v4468 = vadd.f32 0.0, %v4467
        %v4469 = vpop.f32.mrb[0].mxu0
        %v4470 = vpop.f32.mrb[0].mxu0
        %v4471 = vpop.f32.mrb[0].mxu0
        %4472 = vdwg.mxu0
        %v4473 = vadd.f32 %v4350, %v4468
        %v4474 = vld [vmem:[#allocation10] sm:$0x1]
        %v4476 = vlaneseq
        %v4477 = vshrl.u32 %v4476, 7
        %v4478 = vsub.s32 0, %v4477
        %v4479 = vrot.slane %v4474, %v4478
        %v4481 = vadd.f32 %v4473, %v4479
        %v4482 = vmax.f32 %v4481, 0.0
        %v4483 = vpack.c.bf16 %v4482, %v4482
        %v4484 = vld [vmem:[%s10] sm:$0xf]
        %v4485 = vld [vmem:[%s10 + $0x4] sm:$0xf]
        %v4486 = vld [vmem:[%s10 + $0x8] sm:$0xf]
        %v4487 = vld [vmem:[%s10 + $0xc] sm:$0xf]
        %v4488 = vld [vmem:[%s10 + $0x10] sm:$0xf]
        %v4489 = vld [vmem:[%s10 + $0x14] sm:$0xf]
        %v4490 = vld [vmem:[%s10 + $0x18] sm:$0xf]
        %v4491 = vld [vmem:[%s10 + $0x1c] sm:$0xf]
        %v4492 = vld [vmem:[%s10 + $0x20] sm:$0xf]
        %v4493 = vld [vmem:[%s10 + $0x24] sm:$0xf]
        %v4494 = vld [vmem:[%s10 + $0x28] sm:$0xf]
        %v4495 = vld [vmem:[%s10 + $0x2c] sm:$0xf]
        %v4496 = vld [vmem:[%s10 + $0x30] sm:$0xf]
        %v4497 = vld [vmem:[%s10 + $0x34] sm:$0xf]
        %v4498 = vld [vmem:[%s10 + $0x38] sm:$0xf]
        %v4499 = vld [vmem:[%s10 + $0x3c] sm:$0xf]
        %s4500 = scalar_lea.vmem %s10, 64
        %v4501 = vld [vmem:[%s4500] sm:$0xf]
        %v4502 = vld [vmem:[%s4500 + $0x4] sm:$0xf]
        %v4503 = vld [vmem:[%s4500 + $0x8] sm:$0xf]
        %v4504 = vld [vmem:[%s4500 + $0xc] sm:$0xf]
        %v4505 = vld [vmem:[%s4500 + $0x10] sm:$0xf]
        %v4506 = vld [vmem:[%s4500 + $0x14] sm:$0xf]
        %v4507 = vld [vmem:[%s4500 + $0x18] sm:$0xf]
        %v4508 = vld [vmem:[%s4500 + $0x1c] sm:$0xf]
        %v4509 = vld [vmem:[%s4500 + $0x20] sm:$0xf]
        %v4510 = vld [vmem:[%s4500 + $0x24] sm:$0xf]
        %v4511 = vld [vmem:[%s4500 + $0x28] sm:$0xf]
        %v4512 = vld [vmem:[%s4500 + $0x2c] sm:$0xf]
        %v4513 = vld [vmem:[%s4500 + $0x30] sm:$0xf]
        %v4514 = vld [vmem:[%s4500 + $0x34] sm:$0xf]
        %v4515 = vld [vmem:[%s4500 + $0x38] sm:$0xf]
        %v4516 = vld [vmem:[%s4500 + $0x3c] sm:$0xf]
        %v4518 = vshrl.u32 %v4483, 16
        %v4537 = vunpack.c.l.b16 %v4501
        %v4538 = vunpack.c.l.b16 %v4502
        %v4539 = vunpack.c.l.b16 %v4503
        %v4540 = vunpack.c.l.b16 %v4504
        %v4541 = vunpack.c.l.b16 %v4505
        %v4542 = vunpack.c.l.b16 %v4506
        %v4543 = vunpack.c.l.b16 %v4507
        %v4544 = vunpack.c.l.b16 %v4508
        %v4545 = vunpack.c.l.b16 %v4509
        %v4546 = vunpack.c.l.b16 %v4510
        %v4547 = vunpack.c.l.b16 %v4511
        %v4548 = vunpack.c.l.b16 %v4512
        %v4549 = vunpack.c.l.b16 %v4513
        %v4550 = vunpack.c.l.b16 %v4514
        %v4551 = vunpack.c.l.b16 %v4515
        %v4552 = vunpack.c.l.b16 %v4516
        %v4553 = vpack.c.b16 %v4538, %v4537
        %v4554 = vpack.c.b16 %v4540, %v4539
        %v4555 = vpack.c.b16 %v4542, %v4541
        %v4556 = vpack.c.b16 %v4544, %v4543
        %v4557 = vpack.c.b16 %v4546, %v4545
        %v4558 = vpack.c.b16 %v4548, %v4547
        %v4559 = vpack.c.b16 %v4550, %v4549
        %v4560 = vpack.c.b16 %v4552, %v4551
        %4569 = vmatprep.subr.bf16.mxu0 0
        %4570 = vmatpush1.bf16.msra.mxu0 %v4553
        %4571 = vmatprep.subr.bf16.mxu0 0
        %4572 = vmatpush1.bf16.msra.mxu0 %v4554
        %4573 = vmatprep.subr.bf16.mxu0 0
        %4574 = vmatpush1.bf16.msra.mxu0 %v4555
        %4575 = vmatprep.subr.bf16.mxu0 0
        %4576 = vmatpush1.bf16.msra.mxu0 %v4556
        %4577 = vmatprep.subr.bf16.mxu0 0
        %4578 = vmatpush1.bf16.msra.mxu0 %v4557
        %4579 = vmatprep.subr.bf16.mxu0 0
        %4580 = vmatpush1.bf16.msra.mxu0 %v4558
        %4581 = vmatprep.subr.bf16.mxu0 0
        %4582 = vmatpush1.bf16.msra.mxu0 %v4559
        %4583 = vmatprep.subr.bf16.mxu0 0
        %4584 = vmatpush1.bf16.msra.mxu0 %v4560
        %4585 = vmatprep.subr.bf16.mxu0 0
        %4586 = vmatpush1.bf16.msra.mxu0 0
        %4587 = vmatprep.subr.bf16.mxu0 0
        %4588 = vmatpush1.bf16.msra.mxu0 0
        %4589 = vmatprep.subr.bf16.mxu0 0
        %4590 = vmatpush1.bf16.msra.mxu0 0
        %4591 = vmatprep.subr.bf16.mxu0 0
        %4592 = vmatpush1.bf16.msra.mxu0 0
        %4593 = vmatprep.subr.bf16.mxu0 0
        %4594 = vmatpush1.bf16.msra.mxu0 0
        %4595 = vmatprep.subr.bf16.mxu0 0
        %4596 = vmatpush1.bf16.msra.mxu0 0
        %4597 = vmatprep.subr.bf16.mxu0 0
        %4598 = vmatpush1.bf16.msra.mxu0 0
        %4599 = vmatprep.subr.bf16.mxu0 0
        %4600 = vmatpush1.bf16.msra.mxu0 0
        %4601 = vmatprep.mubr.bf16.mxu0 0
        %4602 = vmatmul.mubr.bf16.gmra.mrb[0].mxu0 %v4518
        %v4603 = vpop.f32.mrb[0].mxu0
        %v4604 = vadd.f32 0.0, %v4603
        %v4605 = vpop.f32.mrb[0].mxu0
        %v4606 = vpop.f32.mrb[0].mxu0
        %v4607 = vpop.f32.mrb[0].mxu0
        %4608 = vdwg.mxu0
        %v4625 = vunpack.c.l.b16 %v4484
        %v4626 = vunpack.c.l.b16 %v4485
        %v4627 = vunpack.c.l.b16 %v4486
        %v4628 = vunpack.c.l.b16 %v4487
        %v4629 = vunpack.c.l.b16 %v4488
        %v4630 = vunpack.c.l.b16 %v4489
        %v4631 = vunpack.c.l.b16 %v4490
        %v4632 = vunpack.c.l.b16 %v4491
        %v4633 = vunpack.c.l.b16 %v4492
        %v4634 = vunpack.c.l.b16 %v4493
        %v4635 = vunpack.c.l.b16 %v4494
        %v4636 = vunpack.c.l.b16 %v4495
        %v4637 = vunpack.c.l.b16 %v4496
        %v4638 = vunpack.c.l.b16 %v4497
        %v4639 = vunpack.c.l.b16 %v4498
        %v4640 = vunpack.c.l.b16 %v4499
        %v4641 = vpack.c.b16 %v4626, %v4625
        %v4642 = vpack.c.b16 %v4628, %v4627
        %v4643 = vpack.c.b16 %v4630, %v4629
        %v4644 = vpack.c.b16 %v4632, %v4631
        %v4645 = vpack.c.b16 %v4634, %v4633
        %v4646 = vpack.c.b16 %v4636, %v4635
        %v4647 = vpack.c.b16 %v4638, %v4637
        %v4648 = vpack.c.b16 %v4640, %v4639
        %4657 = vmatprep.subr.bf16.mxu0 0
        %4658 = vmatpush1.bf16.msra.mxu0 %v4641
        %4659 = vmatprep.subr.bf16.mxu0 0
        %4660 = vmatpush1.bf16.msra.mxu0 %v4642
        %4661 = vmatprep.subr.bf16.mxu0 0
        %4662 = vmatpush1.bf16.msra.mxu0 %v4643
        %4663 = vmatprep.subr.bf16.mxu0 0
        %4664 = vmatpush1.bf16.msra.mxu0 %v4644
        %4665 = vmatprep.subr.bf16.mxu0 0
        %4666 = vmatpush1.bf16.msra.mxu0 %v4645
        %4667 = vmatprep.subr.bf16.mxu0 0
        %4668 = vmatpush1.bf16.msra.mxu0 %v4646
        %4669 = vmatprep.subr.bf16.mxu0 0
        %4670 = vmatpush1.bf16.msra.mxu0 %v4647
        %4671 = vmatprep.subr.bf16.mxu0 0
        %4672 = vmatpush1.bf16.msra.mxu0 %v4648
        %4673 = vmatprep.subr.bf16.mxu0 0
        %4674 = vmatpush1.bf16.msra.mxu0 0
        %4675 = vmatprep.subr.bf16.mxu0 0
        %4676 = vmatpush1.bf16.msra.mxu0 0
        %4677 = vmatprep.subr.bf16.mxu0 0
        %4678 = vmatpush1.bf16.msra.mxu0 0
        %4679 = vmatprep.subr.bf16.mxu0 0
        %4680 = vmatpush1.bf16.msra.mxu0 0
        %4681 = vmatprep.subr.bf16.mxu0 0
        %4682 = vmatpush1.bf16.msra.mxu0 0
        %4683 = vmatprep.subr.bf16.mxu0 0
        %4684 = vmatpush1.bf16.msra.mxu0 0
        %4685 = vmatprep.subr.bf16.mxu0 0
        %4686 = vmatpush1.bf16.msra.mxu0 0
        %4687 = vmatprep.subr.bf16.mxu0 0
        %4688 = vmatpush1.bf16.msra.mxu0 0
        %4689 = vmatprep.mubr.bf16.mxu0 0
        %4690 = vmatmul.mubr.bf16.gmra.mrb[0].mxu0 %v4483
        %v4691 = vpop.f32.mrb[0].mxu0
        %v4692 = vadd.f32 %v4604, %v4691
        %v4693 = vpop.f32.mrb[0].mxu0
        %v4694 = vpop.f32.mrb[0].mxu0
        %v4695 = vpop.f32.mrb[0].mxu0
        %4696 = vdwg.mxu0
        %s4697 = scalar_lea.vmem %s10, 128
        %v4698 = vld [vmem:[%s4697] sm:$0xf]
        %v4699 = vld [vmem:[%s4697 + $0x4] sm:$0xf]
        %v4700 = vld [vmem:[%s4697 + $0x8] sm:$0xf]
        %v4701 = vld [vmem:[%s4697 + $0xc] sm:$0xf]
        %v4702 = vld [vmem:[%s4697 + $0x10] sm:$0xf]
        %v4703 = vld [vmem:[%s4697 + $0x14] sm:$0xf]
        %v4704 = vld [vmem:[%s4697 + $0x18] sm:$0xf]
        %v4705 = vld [vmem:[%s4697 + $0x1c] sm:$0xf]
        %v4706 = vld [vmem:[%s4697 + $0x20] sm:$0xf]
        %v4707 = vld [vmem:[%s4697 + $0x24] sm:$0xf]
        %v4708 = vld [vmem:[%s4697 + $0x28] sm:$0xf]
        %v4709 = vld [vmem:[%s4697 + $0x2c] sm:$0xf]
        %v4710 = vld [vmem:[%s4697 + $0x30] sm:$0xf]
        %v4711 = vld [vmem:[%s4697 + $0x34] sm:$0xf]
        %v4712 = vld [vmem:[%s4697 + $0x38] sm:$0xf]
        %v4713 = vld [vmem:[%s4697 + $0x3c] sm:$0xf]
        %v4715 = vrot.slane %v4483, 1
        %v4733 = vunpack.c.l.b16 %v4698
        %v4734 = vunpack.c.l.b16 %v4699
        %v4735 = vunpack.c.l.b16 %v4700
        %v4736 = vunpack.c.l.b16 %v4701
        %v4737 = vunpack.c.l.b16 %v4702
        %v4738 = vunpack.c.l.b16 %v4703
        %v4739 = vunpack.c.l.b16 %v4704
        %v4740 = vunpack.c.l.b16 %v4705
        %v4741 = vunpack.c.l.b16 %v4706
        %v4742 = vunpack.c.l.b16 %v4707
        %v4743 = vunpack.c.l.b16 %v4708
        %v4744 = vunpack.c.l.b16 %v4709
        %v4745 = vunpack.c.l.b16 %v4710
        %v4746 = vunpack.c.l.b16 %v4711
        %v4747 = vunpack.c.l.b16 %v4712
        %v4748 = vunpack.c.l.b16 %v4713
        %v4749 = vpack.c.b16 %v4734, %v4733
        %v4750 = vpack.c.b16 %v4736, %v4735
        %v4751 = vpack.c.b16 %v4738, %v4737
        %v4752 = vpack.c.b16 %v4740, %v4739
        %v4753 = vpack.c.b16 %v4742, %v4741
        %v4754 = vpack.c.b16 %v4744, %v4743
        %v4755 = vpack.c.b16 %v4746, %v4745
        %v4756 = vpack.c.b16 %v4748, %v4747
        %4765 = vmatprep.subr.bf16.mxu0 0
        %4766 = vmatpush1.bf16.msra.mxu0 %v4749
        %4767 = vmatprep.subr.bf16.mxu0 0
        %4768 = vmatpush1.bf16.msra.mxu0 %v4750
        %4769 = vmatprep.subr.bf16.mxu0 0
        %4770 = vmatpush1.bf16.msra.mxu0 %v4751
        %4771 = vmatprep.subr.bf16.mxu0 0
        %4772 = vmatpush1.bf16.msra.mxu0 %v4752
        %4773 = vmatprep.subr.bf16.mxu0 0
        %4774 = vmatpush1.bf16.msra.mxu0 %v4753
        %4775 = vmatprep.subr.bf16.mxu0 0
        %4776 = vmatpush1.bf16.msra.mxu0 %v4754
        %4777 = vmatprep.subr.bf16.mxu0 0
        %4778 = vmatpush1.bf16.msra.mxu0 %v4755
        %4779 = vmatprep.subr.bf16.mxu0 0
        %4780 = vmatpush1.bf16.msra.mxu0 %v4756
        %4781 = vmatprep.subr.bf16.mxu0 0
        %4782 = vmatpush1.bf16.msra.mxu0 0
        %4783 = vmatprep.subr.bf16.mxu0 0
        %4784 = vmatpush1.bf16.msra.mxu0 0
        %4785 = vmatprep.subr.bf16.mxu0 0
        %4786 = vmatpush1.bf16.msra.mxu0 0
        %4787 = vmatprep.subr.bf16.mxu0 0
        %4788 = vmatpush1.bf16.msra.mxu0 0
        %4789 = vmatprep.subr.bf16.mxu0 0
        %4790 = vmatpush1.bf16.msra.mxu0 0
        %4791 = vmatprep.subr.bf16.mxu0 0
        %4792 = vmatpush1.bf16.msra.mxu0 0
        %4793 = vmatprep.subr.bf16.mxu0 0
        %4794 = vmatpush1.bf16.msra.mxu0 0
        %4795 = vmatprep.subr.bf16.mxu0 0
        %4796 = vmatpush1.bf16.msra.mxu0 0
        %4797 = vmatprep.mubr.bf16.mxu0 0
        %4798 = vmatmul.mubr.bf16.gmra.mrb[0].mxu0 %v4715
        %v4799 = vpop.f32.mrb[0].mxu0
        %v4800 = vadd.f32 0.0, %v4799
        %v4801 = vpop.f32.mrb[0].mxu0
        %v4802 = vpop.f32.mrb[0].mxu0
        %v4803 = vpop.f32.mrb[0].mxu0
        %4804 = vdwg.mxu0
        %v4805 = vadd.f32 %v4692, %v4800
        %s4806 = scalar_lea.vmem %s10, 192
        %v4807 = vld [vmem:[%s4806] sm:$0xf]
        %v4808 = vld [vmem:[%s4806 + $0x4] sm:$0xf]
        %v4809 = vld [vmem:[%s4806 + $0x8] sm:$0xf]
        %v4810 = vld [vmem:[%s4806 + $0xc] sm:$0xf]
        %v4811 = vld [vmem:[%s4806 + $0x10] sm:$0xf]
        %v4812 = vld [vmem:[%s4806 + $0x14] sm:$0xf]
        %v4813 = vld [vmem:[%s4806 + $0x18] sm:$0xf]
        %v4814 = vld [vmem:[%s4806 + $0x1c] sm:$0xf]
        %v4815 = vld [vmem:[%s4806 + $0x20] sm:$0xf]
        %v4816 = vld [vmem:[%s4806 + $0x24] sm:$0xf]
        %v4817 = vld [vmem:[%s4806 + $0x28] sm:$0xf]
        %v4818 = vld [vmem:[%s4806 + $0x2c] sm:$0xf]
        %v4819 = vld [vmem:[%s4806 + $0x30] sm:$0xf]
        %v4820 = vld [vmem:[%s4806 + $0x34] sm:$0xf]
        %v4821 = vld [vmem:[%s4806 + $0x38] sm:$0xf]
        %v4822 = vld [vmem:[%s4806 + $0x3c] sm:$0xf]
        %v4823 = vrot.slane %v4518, 1
        %v4841 = vunpack.c.l.b16 %v4807
        %v4842 = vunpack.c.l.b16 %v4808
        %v4843 = vunpack.c.l.b16 %v4809
        %v4844 = vunpack.c.l.b16 %v4810
        %v4845 = vunpack.c.l.b16 %v4811
        %v4846 = vunpack.c.l.b16 %v4812
        %v4847 = vunpack.c.l.b16 %v4813
        %v4848 = vunpack.c.l.b16 %v4814
        %v4849 = vunpack.c.l.b16 %v4815
        %v4850 = vunpack.c.l.b16 %v4816
        %v4851 = vunpack.c.l.b16 %v4817
        %v4852 = vunpack.c.l.b16 %v4818
        %v4853 = vunpack.c.l.b16 %v4819
        %v4854 = vunpack.c.l.b16 %v4820
        %v4855 = vunpack.c.l.b16 %v4821
        %v4856 = vunpack.c.l.b16 %v4822
        %v4857 = vpack.c.b16 %v4842, %v4841
        %v4858 = vpack.c.b16 %v4844, %v4843
        %v4859 = vpack.c.b16 %v4846, %v4845
        %v4860 = vpack.c.b16 %v4848, %v4847
        %v4861 = vpack.c.b16 %v4850, %v4849
        %v4862 = vpack.c.b16 %v4852, %v4851
        %v4863 = vpack.c.b16 %v4854, %v4853
        %v4864 = vpack.c.b16 %v4856, %v4855
        %4873 = vmatprep.subr.bf16.mxu0 0
        %4874 = vmatpush1.bf16.msra.mxu0 %v4857
        %4875 = vmatprep.subr.bf16.mxu0 0
        %4876 = vmatpush1.bf16.msra.mxu0 %v4858
        %4877 = vmatprep.subr.bf16.mxu0 0
        %4878 = vmatpush1.bf16.msra.mxu0 %v4859
        %4879 = vmatprep.subr.bf16.mxu0 0
        %4880 = vmatpush1.bf16.msra.mxu0 %v4860
        %4881 = vmatprep.subr.bf16.mxu0 0
        %4882 = vmatpush1.bf16.msra.mxu0 %v4861
        %4883 = vmatprep.subr.bf16.mxu0 0
        %4884 = vmatpush1.bf16.msra.mxu0 %v4862
        %4885 = vmatprep.subr.bf16.mxu0 0
        %4886 = vmatpush1.bf16.msra.mxu0 %v4863
        %4887 = vmatprep.subr.bf16.mxu0 0
        %4888 = vmatpush1.bf16.msra.mxu0 %v4864
        %4889 = vmatprep.subr.bf16.mxu0 0
        %4890 = vmatpush1.bf16.msra.mxu0 0
        %4891 = vmatprep.subr.bf16.mxu0 0
        %4892 = vmatpush1.bf16.msra.mxu0 0
        %4893 = vmatprep.subr.bf16.mxu0 0
        %4894 = vmatpush1.bf16.msra.mxu0 0
        %4895 = vmatprep.subr.bf16.mxu0 0
        %4896 = vmatpush1.bf16.msra.mxu0 0
        %4897 = vmatprep.subr.bf16.mxu0 0
        %4898 = vmatpush1.bf16.msra.mxu0 0
        %4899 = vmatprep.subr.bf16.mxu0 0
        %4900 = vmatpush1.bf16.msra.mxu0 0
        %4901 = vmatprep.subr.bf16.mxu0 0
        %4902 = vmatpush1.bf16.msra.mxu0 0
        %4903 = vmatprep.subr.bf16.mxu0 0
        %4904 = vmatpush1.bf16.msra.mxu0 0
        %4905 = vmatprep.mubr.bf16.mxu0 0
        %4906 = vmatmul.mubr.bf16.gmra.mrb[0].mxu0 %v4823
        %v4907 = vpop.f32.mrb[0].mxu0
        %v4908 = vadd.f32 0.0, %v4907
        %v4909 = vpop.f32.mrb[0].mxu0
        %v4910 = vpop.f32.mrb[0].mxu0
        %v4911 = vpop.f32.mrb[0].mxu0
        %4912 = vdwg.mxu0
        %v4913 = vadd.f32 %v4805, %v4908
        %v4914 = vld [vmem:[#allocation11] sm:$0x1]
        %v4915 = vadd.f32 %v4913, %v4914
        %vm4916 = vcmask 253952
        %4917 = vst.msk [vmem:[%s485] sm:$0x1] %vm4916, %v4915
        %s4918 = sand.u32 %s295, 1
        %s4919 = scalar_lea.sflag [#allocation4], %s4918
        %s4920 = sand.u32 %s295, 1
        %s4921 = scalar_lea.vmem [#allocation13], %s4920
        // Predicated region
        $region93: #{encoder_forward.1} parent=67 // pred_check
          %p4922 = pneg %p305
        $region94: #{encoder_forward.1} parent=67 // pred_check_branch
          %4924 = sbr.rel (%p4922) target = $region96
        $region95: #{encoder_forward.1} parent=67 // pred_region
          %s4926 = ssub.s32 16, 16
          %4927 = vsyncadd %s4919, %s4926
          %s4928 = smul.addr %s30, 16
          %s4929 = scalar_lea.hbm %s12, %s4928
          %s4931 = sshll.u32 %s4921, 4
          %s4932 = int_to_ptr.vmem [resolvable:$true] %s4931
          %4934 = dma.vmem_to_hbm [thread:$0]  %s4932, 16, %s4929, %s4919
        $region96: #{encoder_forward.1} parent=67 // pred_fallthru
          _
      $region68: #{encoder_forward.1} parent=5 // pred_fallthru
        _
      %p4935 = scmp.le.s32.totalorder 2, %s25
      // Predicated region
      $region97: #{encoder_forward.1} parent=5 // pred_check
        %p4936 = pneg %p4935
      $region98: #{encoder_forward.1} parent=5 // pred_check_branch
        %4938 = sbr.rel (%p4936) target = $region100
      $region99: #{encoder_forward.1} parent=5 // pred_region
        %s4939 = ssub.s32 %s25, 2
        // Predicated region
        $region101: #{encoder_forward.1} parent=99 // pred_check
          %p4940 = pneg %p311
        $region102: #{encoder_forward.1} parent=99 // pred_check_branch
          %4942 = sbr.rel (%p4940) target = $region104
        $region103: #{encoder_forward.1} parent=99 // pred_region
          %s4943 = sand.u32 %s296, 1
          %s4944 = scalar_lea.sflag [#allocation4], %s4943
          %s4945 = sand.u32 %s296, 1
          %s4946 = scalar_lea.vmem [#allocation13], %s4945
          %4947 = dma.done %s4944, 16
        $region104: #{encoder_forward.1} parent=99 // pred_fallthru
          _
      $region100: #{encoder_forward.1} parent=5 // pred_fallthru
        _
    $region6: #{encoder_forward.1} parent=1 // loop_footer
      %s29 = sadd.s32 1, %s25
    $region7: #{encoder_forward.1} parent=1 // loop_footer_branch
      %24 = sbr.rel target = $region3
    $region8: #{encoder_forward.1} parent=1 // loop_exit
      _
    %4948 = vsyncpa [#allocation3], 1
    %s4949 = scalar_lea.sflag [#allocation3], 1
    %4950 = vsyncpa %s4949, 1
    %4951 = vsyncpa [#allocation6], 1
    %4952 = vsyncpa [#allocation9], 1
    %4953 = vsyncpa [#allocation12], 1
    %4954 = vsyncpa [#allocation4], 1
    %s4955 = scalar_lea.sflag [#allocation4], 1
    %4956 = vsyncpa %s4955, 1

</llo_original>
